<compile_context>
chip_gen: v7x
topology: tpu7x:2x2x1
jax: 0.10.0
libtpu: 0.0.40
codegen_flags: <defaults>
</compile_context>

<pallas_src>
import math

import jax
import jax.numpy as jnp
from jax.experimental import pallas as pl
from jax.experimental.pallas import tpu as pltpu


# ---------------------------------------------------------------------------
# Pallas kernel (everything after the glue transpose happens in here)
# ---------------------------------------------------------------------------
def make_kernel(t, b, H, idx_long, idx_mid, idx_small, idx_local):
    def kernel(x_ref, wdc_ref, bdc_ref,
               wih_ref, whh_ref, brz_ref, bin_ref, bhn_ref, h0_ref,
               whead_ref, bhead_ref,
               out_ref, hs_ref):
        # ---- 1) fused front end: spatial max-pool + ReLU + down_channel + ReLU
        pooled = jnp.max(x_ref[...], axis=-1)              # (t*b, c) spatial max-pool
        pooled = jnp.maximum(pooled, 0.0)                  # ReLU
        feats = jnp.dot(pooled, wdc_ref[...],
                        preferred_element_type=jnp.float32) + bdc_ref[...]
        feats = jnp.maximum(feats, 0.0)                    # (t*b, H)

        # ---- 2) 2-layer GRU (packed gates, layers software-pipelined)
        # layer-0 input projection for every timestep in one matmul
        gi0_all = jnp.dot(feats, wih_ref[0],
                          preferred_element_type=jnp.float32)   # (t*b, 3H)

        Wih1 = wih_ref[1]
        Whh0, Whh1 = whh_ref[0], whh_ref[1]
        brz0, brz1 = brz_ref[0], brz_ref[1]                # (b, 2H) pre-broadcast
        bin0, bin1 = bin_ref[0], bin_ref[1]                # (b, H)
        bhn0, bhn1 = bhn_ref[0], bhn_ref[1]                # (b, H)

        def gru_step(gi, h, Whh, brz, bin_, bhn):
            gh = jnp.dot(h, Whh, preferred_element_type=jnp.float32)   # (b, 3H)
            rz = jax.nn.sigmoid(gi[:, :2 * H] + gh[:, :2 * H] + brz)   # one sigmoid
            r = rz[:, :H]
            z = rz[:, H:]
            n = jnp.tanh(gi[:, 2 * H:] + bin_ + r * (gh[:, 2 * H:] + bhn))
            return (1.0 - z) * n + z * h

        h_a = h0_ref[0]          # layer-0 hidden (b, H)
        h_b = h0_ref[1]          # layer-1 hidden (b, H)
        l0_prev = None
        # iteration s: layer-0 step s  ||  layer-1 step s-1 (independent chains)
        for s in range(t + 1):
            h_a_new = None
            if s < t:
                gi0 = gi0_all[s * b:(s + 1) * b, :]
                h_a_new = gru_step(gi0, h_a, Whh0, brz0, bin0, bhn0)
            if s >= 1:
                gi1 = jnp.dot(l0_prev, Wih1, preferred_element_type=jnp.float32)
                h_b = gru_step(gi1, h_b, Whh1, brz1, bin1, bhn1)
                hs_ref[(s - 1) * b:s * b, :] = h_b
            if s < t:
                h_a = h_a_new
                l0_prev = h_a_new

        # ---- 3) dependency heads: one concatenated (t*b, H) @ (H, 7H) matmul
        # columns: long0|long1|mid0|mid1|small0|small1|loc
        y = jnp.dot(hs_ref[...], whead_ref[...],
                    preferred_element_type=jnp.float32)    # (t*b, 7H)

        def tap(col, s_idx):
            return y[s_idx * b:(s_idx + 1) * b, col * H:(col + 1) * H]

        def head2(c0, c1, idx):
            res = None
            for j in range(len(idx) - 1):
                v = tap(c0, idx[j]) + tap(c1, idx[j + 1])
                res = v if res is None else jnp.maximum(res, v)
            return res

        loc = None
        for si in idx_local:
            v = tap(6, si)
            loc = v if loc is None else jnp.maximum(loc, v)

        out_ref[...] = (head2(0, 1, idx_long) + head2(2, 3, idx_mid)
                        + head2(4, 5, idx_small) + loc + bhead_ref[...])

    return kernel


# ---------------------------------------------------------------------------
# Wrapper: parameter packing (glue) + pallas_call
# ---------------------------------------------------------------------------
def gru_combine_multi_depend(x, params, h0, out_channel):
    b, c, t, hh, ww = x.shape
    H = out_channel
    assert t >= 2, "strided index formulas (::t-1 etc.) require t >= 2"

    # glue: NCTHW -> (t*b, c, h*w)   (time-major, batch-minor rows)
    x_k = jnp.transpose(x, (2, 0, 1, 3, 4)).reshape(t * b, c, hh * ww)

    # down_channel 1x1 conv weights
    wdc_T = params['wdc'][:, :, 0].T                        # (c, H)
    bdc = params['bdc'].reshape(1, H)

    # GRU weights: packed (H, 3H) per layer, gate order r|z|n; biases pre-combined
    # (b_r = b_ir + b_hr, b_z = b_iz + b_hz) and pre-broadcast to (b, .)
    def pack_layer(l):
        wih, whh = params[f'wih{l}'], params[f'whh{l}']
        bih, bhh = params[f'bih{l}'], params[f'bhh{l}']
        Wih = wih.T                                          # (H, 3H)
        Whh = whh.T                                          # (H, 3H)
        brz = jnp.broadcast_to((bih[:2 * H] + bhh[:2 * H]).reshape(1, 2 * H), (b, 2 * H))
        bin_ = jnp.broadcast_to(bih[2 * H:].reshape(1, H), (b, H))
        bhn = jnp.broadcast_to(bhh[2 * H:].reshape(1, H), (b, H))
        return Wih, Whh, brz, bin_, bhn

    p0, p1 = pack_layer(0), pack_layer(1)
    wih_all = jnp.stack([p0[0], p1[0]])                      # (2, H, 3H)
    whh_all = jnp.stack([p0[1], p1[1]])                      # (2, H, 3H)
    brz_all = jnp.stack([p0[2], p1[2]])                      # (2, b, 2H)
    bin_all = jnp.stack([p0[3], p1[3]])                      # (2, b, H)
    bhn_all = jnp.stack([p0[4], p1[4]])                      # (2, b, H)

    # concatenated dependency-head weights: long0|long1|mid0|mid1|small0|small1|loc
    whead = jnp.concatenate([
        params['wlong'][:, :, 0].T, params['wlong'][:, :, 1].T,
        params['wmid'][:, :, 0].T, params['wmid'][:, :, 1].T,
        params['wsmall'][:, :, 0].T, params['wsmall'][:, :, 1].T,
        params['wloc'][:, :, 0].T], axis=1)                  # (H, 7H)
    # biases commute with the per-head max, so fold all four into one post-sum add
    bhead = (params['blong'] + params['bmid']
             + params['bsmall'] + params['bloc']).reshape(1, H)

    # static strided-slice index sets (exactly as in the PyTorch forward)
    idx_long = list(range(0, t, t - 1))
    idx_mid = list(range(0, t, math.ceil((t - 1) / 2)))
    idx_small = list(range(0, t, math.ceil((t - 1) / 4)))
    idx_local = list(range(0, t, math.ceil((t - 1) / 7)))

    kernel = make_kernel(t, b, H, idx_long, idx_mid, idx_small, idx_local)

    vmem = pl.BlockSpec(memory_space=pltpu.MemorySpace.VMEM)
    return pl.pallas_call(
        kernel,
        out_shape=jax.ShapeDtypeStruct((b, H), jnp.float32),
        in_specs=[vmem] * 11,
        out_specs=vmem,
        scratch_shapes=[pltpu.VMEM((t * b, H), jnp.float32)],
    )(x_k, wdc_T, bdc, wih_all, whh_all, brz_all, bin_all, bhn_all, h0, whead, bhead)


# ---------------------------------------------------------------------------
# Pure-JAX reference (for verification only)
# ---------------------------------------------------------------------------
def reference(x, p, h0, out_channel):
    b, c, t, hh, ww = x.shape
    H = out_channel
    pooled = jnp.max(x.reshape(b, c, t, hh * ww), axis=-1)   # (b, c, t)
    pooled = jax.nn.relu(pooled)
    feat = jnp.einsum('bct,oc->bot', pooled, p['wdc'][:, :, 0]) + p['bdc'][None, :, None]
    feat = jax.nn.relu(feat)                                  # (b, H, t)
    xs = jnp.transpose(feat, (2, 0, 1))                       # (t, b, H)

    def gru_layer(xs_in, wih, whh, bih, bhh, h):
        outs = []
        for s in range(t):
            gi = xs_in[s] @ wih.T + bih
            gh = h @ whh.T + bhh
            r = jax.nn.sigmoid(gi[:, :H] + gh[:, :H])
            z = jax.nn.sigmoid(gi[:, H:2 * H] + gh[:, H:2 * H])
            n = jnp.tanh(gi[:, 2 * H:] + r * gh[:, 2 * H:])
            h = (1 - z) * n + z * h
            outs.append(h)
        return jnp.stack(outs)

    o0 = gru_layer(xs, p['wih0'], p['whh0'], p['bih0'], p['bhh0'], h0[0])
    o1 = gru_layer(o0, p['wih1'], p['whh1'], p['bih1'], p['bhh1'], h0[1])
    out = jnp.transpose(o1, (1, 2, 0))                        # (b, H, t)

    def dep(w, bias, step, ksize):
        sl = out[:, :, ::step]                                # (b, H, L)
        L = sl.shape[2]
        ys = []
        for j in range(L - ksize + 1):
            y = bias[None, :]
            for k in range(ksize):
                y = y + jnp.einsum('bc,oc->bo', sl[:, :, j + k], w[:, :, k])
            ys.append(y)
        return jnp.max(jnp.stack(ys), axis=0)

    r1 = dep(p['wlong'], p['blong'], t - 1, 2)
    r2 = dep(p['wmid'], p['bmid'], math.ceil((t - 1) / 2), 2)
    r3 = dep(p['wsmall'], p['bsmall'], math.ceil((t - 1) / 4), 2)
    r4 = dep(p['wloc'], p['bloc'], math.ceil((t - 1) / 7), 1)
    return r1 + r2 + r3 + r4


# ---------------------------------------------------------------------------
# Deterministic parameter init (shapes follow the nn.Module __init__)
# ---------------------------------------------------------------------------
def init_params(key, in_channel, out_channel, b):
    H = out_channel
    ks = jax.random.split(key, 19)
    u = lambda k, shape: jax.random.uniform(k, shape, jnp.float32,
                                            minval=-0.2, maxval=0.2)
    p = dict(
        wdc=u(ks[0], (H, in_channel, 1)), bdc=u(ks[1], (H,)),
        wih0=u(ks[2], (3 * H, H)), whh0=u(ks[3], (3 * H, H)),
        bih0=u(ks[4], (3 * H,)), bhh0=u(ks[5], (3 * H,)),
        wih1=u(ks[6], (3 * H, H)), whh1=u(ks[7], (3 * H, H)),
        bih1=u(ks[8], (3 * H,)), bhh1=u(ks[9], (3 * H,)),
        wlong=u(ks[10], (H, H, 2)), blong=u(ks[11], (H,)),
        wmid=u(ks[12], (H, H, 2)), bmid=u(ks[13], (H,)),
        wsmall=u(ks[14], (H, H, 2)), bsmall=u(ks[15], (H,)),
        wloc=u(ks[16], (H, H, 1)), bloc=u(ks[17], (H,)),
    )
    h0 = jax.random.normal(ks[18], (2, b, H), jnp.float32)
    return p, h0


if __name__ == "__main__":
    B, C_IN, T, HH, WW = 2, 4, 8, 16, 16
    C_OUT = 32

    key = jax.random.PRNGKey(0)
    kx, kp = jax.random.split(key)
    x = jax.random.normal(kx, (B, C_IN, T, HH, WW), jnp.float32)
    params, h0 = init_params(kp, C_IN, C_OUT, B)

    out = gru_combine_multi_depend(x, params, h0, C_OUT)
    out = jax.block_until_ready(out)

    ref = reference(x, params, h0, C_OUT)
    assert out.shape == (B, C_OUT)
    assert jnp.allclose(out, ref, rtol=1e-4, atol=1e-4), (out, ref)
    print("KERNEL_OK")
</pallas_src>

<mosaic_0001>
module attributes {stable_mosaic.version = 11 : i64} {
  func.func @kernel(%arg0: memref<16x4x256xf32, #tpu.memory_space<vmem>>, %arg1: memref<4x32xf32, #tpu.memory_space<vmem>>, %arg2: memref<1x32xf32, #tpu.memory_space<vmem>>, %arg3: memref<2x32x96xf32, #tpu.memory_space<vmem>>, %arg4: memref<2x32x96xf32, #tpu.memory_space<vmem>>, %arg5: memref<2x2x64xf32, #tpu.memory_space<vmem>>, %arg6: memref<2x2x32xf32, #tpu.memory_space<vmem>>, %arg7: memref<2x2x32xf32, #tpu.memory_space<vmem>>, %arg8: memref<2x2x32xf32, #tpu.memory_space<vmem>>, %arg9: memref<32x224xf32, #tpu.memory_space<vmem>>, %arg10: memref<1x32xf32, #tpu.memory_space<vmem>>, %arg11: memref<2x32xf32, #tpu.memory_space<vmem>>, %arg12: memref<16x32xf32, #tpu.memory_space<vmem>>) attributes {dimension_semantics = [], scalar_prefetch = 0 : i64, scratch_operands = 1 : i64, tpu.core_type = #tpu.core_type<tc>} {
    %c0 = arith.constant 0 : index
    %c0_0 = arith.constant 0 : index
    %c0_1 = arith.constant 0 : index
    %0 = vector.load %arg0[%c0, %c0_0, %c0_1] : memref<16x4x256xf32, #tpu.memory_space<vmem>>, vector<16x4x256xf32>
    %cst = arith.constant dense<0xFF800000> : vector<16x4xf32>
    %1 = vector.multi_reduction <maximumf>, %0, %cst [2] : vector<16x4x256xf32> to vector<16x4xf32>
    %cst_2 = arith.constant 0.000000e+00 : f32
    %2 = vector.broadcast %cst_2 : f32 to vector<16x4xf32>
    %3 = arith.maximumf %1, %2 : vector<16x4xf32>
    %c0_3 = arith.constant 0 : index
    %c0_4 = arith.constant 0 : index
    %4 = vector.load %arg1[%c0_3, %c0_4] : memref<4x32xf32, #tpu.memory_space<vmem>>, vector<4x32xf32>
    %cst_5 = arith.constant dense<0.000000e+00> : vector<16x32xf32>
    %5 = tpu.matmul %3, %4, %cst_5 {dimension_numbers = #tpu.dot_dimension_numbers<[1], [0], [0], [1], [0, 0, 1, 1], [], []>} : vector<16x4xf32>, vector<4x32xf32>, vector<16x32xf32> -> vector<16x32xf32>
    %c0_6 = arith.constant 0 : index
    %c0_7 = arith.constant 0 : index
    %6 = vector.load %arg2[%c0_6, %c0_7] : memref<1x32xf32, #tpu.memory_space<vmem>>, vector<1x32xf32>
    %7 = vector.broadcast %6 : vector<1x32xf32> to vector<16x32xf32>
    %8 = arith.addf %5, %7 : vector<16x32xf32>
    %cst_8 = arith.constant 0.000000e+00 : f32
    %9 = vector.broadcast %cst_8 : f32 to vector<16x32xf32>
    %10 = arith.maximumf %8, %9 : vector<16x32xf32>
    %c0_9 = arith.constant 0 : index
    %c0_10 = arith.constant 0 : index
    %c0_11 = arith.constant 0 : index
    %11 = vector.load %arg3[%c0_9, %c0_10, %c0_11] : memref<2x32x96xf32, #tpu.memory_space<vmem>>, vector<1x32x96xf32>
    %12 = vector.shape_cast %11 : vector<1x32x96xf32> to vector<32x96xf32>
    %cst_12 = arith.constant dense<0.000000e+00> : vector<16x96xf32>
    %13 = tpu.matmul %10, %12, %cst_12 {dimension_numbers = #tpu.dot_dimension_numbers<[1], [0], [0], [1], [0, 0, 1, 1], [], []>} : vector<16x32xf32>, vector<32x96xf32>, vector<16x96xf32> -> vector<16x96xf32>
    %c1 = arith.constant 1 : index
    %c0_13 = arith.constant 0 : index
    %c0_14 = arith.constant 0 : index
    %14 = vector.load %arg3[%c1, %c0_13, %c0_14] : memref<2x32x96xf32, #tpu.memory_space<vmem>>, vector<1x32x96xf32>
    %15 = vector.shape_cast %14 : vector<1x32x96xf32> to vector<32x96xf32>
    %c0_15 = arith.constant 0 : index
    %c0_16 = arith.constant 0 : index
    %c0_17 = arith.constant 0 : index
    %16 = vector.load %arg4[%c0_15, %c0_16, %c0_17] : memref<2x32x96xf32, #tpu.memory_space<vmem>>, vector<1x32x96xf32>
    %17 = vector.shape_cast %16 : vector<1x32x96xf32> to vector<32x96xf32>
    %c1_18 = arith.constant 1 : index
    %c0_19 = arith.constant 0 : index
    %c0_20 = arith.constant 0 : index
    %18 = vector.load %arg4[%c1_18, %c0_19, %c0_20] : memref<2x32x96xf32, #tpu.memory_space<vmem>>, vector<1x32x96xf32>
    %19 = vector.shape_cast %18 : vector<1x32x96xf32> to vector<32x96xf32>
    %c0_21 = arith.constant 0 : index
    %c0_22 = arith.constant 0 : index
    %c0_23 = arith.constant 0 : index
    %20 = vector.load %arg5[%c0_21, %c0_22, %c0_23] : memref<2x2x64xf32, #tpu.memory_space<vmem>>, vector<1x2x64xf32>
    %21 = vector.shape_cast %20 : vector<1x2x64xf32> to vector<2x64xf32>
    %c1_24 = arith.constant 1 : index
    %c0_25 = arith.constant 0 : index
    %c0_26 = arith.constant 0 : index
    %22 = vector.load %arg5[%c1_24, %c0_25, %c0_26] : memref<2x2x64xf32, #tpu.memory_space<vmem>>, vector<1x2x64xf32>
    %23 = vector.shape_cast %22 : vector<1x2x64xf32> to vector<2x64xf32>
    %c0_27 = arith.constant 0 : index
    %c0_28 = arith.constant 0 : index
    %c0_29 = arith.constant 0 : index
    %24 = vector.load %arg6[%c0_27, %c0_28, %c0_29] : memref<2x2x32xf32, #tpu.memory_space<vmem>>, vector<1x2x32xf32>
    %25 = vector.shape_cast %24 : vector<1x2x32xf32> to vector<2x32xf32>
    %c1_30 = arith.constant 1 : index
    %c0_31 = arith.constant 0 : index
    %c0_32 = arith.constant 0 : index
    %26 = vector.load %arg6[%c1_30, %c0_31, %c0_32] : memref<2x2x32xf32, #tpu.memory_space<vmem>>, vector<1x2x32xf32>
    %27 = vector.shape_cast %26 : vector<1x2x32xf32> to vector<2x32xf32>
    %c0_33 = arith.constant 0 : index
    %c0_34 = arith.constant 0 : index
    %c0_35 = arith.constant 0 : index
    %28 = vector.load %arg7[%c0_33, %c0_34, %c0_35] : memref<2x2x32xf32, #tpu.memory_space<vmem>>, vector<1x2x32xf32>
    %29 = vector.shape_cast %28 : vector<1x2x32xf32> to vector<2x32xf32>
    %c1_36 = arith.constant 1 : index
    %c0_37 = arith.constant 0 : index
    %c0_38 = arith.constant 0 : index
    %30 = vector.load %arg7[%c1_36, %c0_37, %c0_38] : memref<2x2x32xf32, #tpu.memory_space<vmem>>, vector<1x2x32xf32>
    %31 = vector.shape_cast %30 : vector<1x2x32xf32> to vector<2x32xf32>
    %c0_39 = arith.constant 0 : index
    %c0_40 = arith.constant 0 : index
    %c0_41 = arith.constant 0 : index
    %32 = vector.load %arg8[%c0_39, %c0_40, %c0_41] : memref<2x2x32xf32, #tpu.memory_space<vmem>>, vector<1x2x32xf32>
    %33 = vector.shape_cast %32 : vector<1x2x32xf32> to vector<2x32xf32>
    %c1_42 = arith.constant 1 : index
    %c0_43 = arith.constant 0 : index
    %c0_44 = arith.constant 0 : index
    %34 = vector.load %arg8[%c1_42, %c0_43, %c0_44] : memref<2x2x32xf32, #tpu.memory_space<vmem>>, vector<1x2x32xf32>
    %35 = vector.shape_cast %34 : vector<1x2x32xf32> to vector<2x32xf32>
    %36 = vector.extract_strided_slice %13 {offsets = [0, 0], sizes = [2, 96], strides = [1, 1]} : vector<16x96xf32> to vector<2x96xf32>
    %cst_45 = arith.constant dense<0.000000e+00> : vector<2x96xf32>
    %37 = tpu.matmul %33, %17, %cst_45 {dimension_numbers = #tpu.dot_dimension_numbers<[1], [0], [0], [1], [0, 0, 1, 1], [], []>} : vector<2x32xf32>, vector<32x96xf32>, vector<2x96xf32> -> vector<2x96xf32>
    %38 = vector.extract_strided_slice %36 {offsets = [0, 0], sizes = [2, 64], strides = [1, 1]} : vector<2x96xf32> to vector<2x64xf32>
    %39 = vector.extract_strided_slice %37 {offsets = [0, 0], sizes = [2, 64], strides = [1, 1]} : vector<2x96xf32> to vector<2x64xf32>
    %40 = arith.addf %38, %39 : vector<2x64xf32>
    %41 = arith.addf %40, %21 : vector<2x64xf32>
    %42 = arith.negf %41 : vector<2x64xf32>
    %43 = math.exp %42 : vector<2x64xf32>
    %cst_46 = arith.constant 1.000000e+00 : f32
    %44 = vector.broadcast %cst_46 : f32 to vector<2x64xf32>
    %45 = arith.addf %44, %43 : vector<2x64xf32>
    %46 = arith.divf %44, %45 : vector<2x64xf32>
    %47 = vector.extract_strided_slice %46 {offsets = [0, 0], sizes = [2, 32], strides = [1, 1]} : vector<2x64xf32> to vector<2x32xf32>
    %48 = vector.extract_strided_slice %46 {offsets = [0, 32], sizes = [2, 32], strides = [1, 1]} : vector<2x64xf32> to vector<2x32xf32>
    %49 = vector.extract_strided_slice %36 {offsets = [0, 64], sizes = [2, 32], strides = [1, 1]} : vector<2x96xf32> to vector<2x32xf32>
    %50 = arith.addf %49, %25 : vector<2x32xf32>
    %51 = vector.extract_strided_slice %37 {offsets = [0, 64], sizes = [2, 32], strides = [1, 1]} : vector<2x96xf32> to vector<2x32xf32>
    %52 = arith.addf %51, %29 : vector<2x32xf32>
    %53 = arith.mulf %47, %52 : vector<2x32xf32>
    %54 = arith.addf %50, %53 : vector<2x32xf32>
    %55 = math.tanh %54 : vector<2x32xf32>
    %cst_47 = arith.constant 1.000000e+00 : f32
    %56 = vector.broadcast %cst_47 : f32 to vector<2x32xf32>
    %57 = arith.subf %56, %48 : vector<2x32xf32>
    %58 = arith.mulf %57, %55 : vector<2x32xf32>
    %59 = arith.mulf %48, %33 : vector<2x32xf32>
    %60 = arith.addf %58, %59 : vector<2x32xf32>
    %61 = vector.extract_strided_slice %13 {offsets = [2, 0], sizes = [2, 96], strides = [1, 1]} : vector<16x96xf32> to vector<2x96xf32>
    %cst_48 = arith.constant dense<0.000000e+00> : vector<2x96xf32>
    %62 = tpu.matmul %60, %17, %cst_48 {dimension_numbers = #tpu.dot_dimension_numbers<[1], [0], [0], [1], [0, 0, 1, 1], [], []>} : vector<2x32xf32>, vector<32x96xf32>, vector<2x96xf32> -> vector<2x96xf32>
    %63 = vector.extract_strided_slice %61 {offsets = [0, 0], sizes = [2, 64], strides = [1, 1]} : vector<2x96xf32> to vector<2x64xf32>
    %64 = vector.extract_strided_slice %62 {offsets = [0, 0], sizes = [2, 64], strides = [1, 1]} : vector<2x96xf32> to vector<2x64xf32>
    %65 = arith.addf %63, %64 : vector<2x64xf32>
    %66 = arith.addf %65, %21 : vector<2x64xf32>
    %67 = arith.negf %66 : vector<2x64xf32>
    %68 = math.exp %67 : vector<2x64xf32>
    %cst_49 = arith.constant 1.000000e+00 : f32
    %69 = vector.broadcast %cst_49 : f32 to vector<2x64xf32>
    %70 = arith.addf %69, %68 : vector<2x64xf32>
    %71 = arith.divf %69, %70 : vector<2x64xf32>
    %72 = vector.extract_strided_slice %71 {offsets = [0, 0], sizes = [2, 32], strides = [1, 1]} : vector<2x64xf32> to vector<2x32xf32>
    %73 = vector.extract_strided_slice %71 {offsets = [0, 32], sizes = [2, 32], strides = [1, 1]} : vector<2x64xf32> to vector<2x32xf32>
    %74 = vector.extract_strided_slice %61 {offsets = [0, 64], sizes = [2, 32], strides = [1, 1]} : vector<2x96xf32> to vector<2x32xf32>
    %75 = arith.addf %74, %25 : vector<2x32xf32>
    %76 = vector.extract_strided_slice %62 {offsets = [0, 64], sizes = [2, 32], strides = [1, 1]} : vector<2x96xf32> to vector<2x32xf32>
    %77 = arith.addf %76, %29 : vector<2x32xf32>
    %78 = arith.mulf %72, %77 : vector<2x32xf32>
    %79 = arith.addf %75, %78 : vector<2x32xf32>
    %80 = math.tanh %79 : vector<2x32xf32>
    %cst_50 = arith.constant 1.000000e+00 : f32
    %81 = vector.broadcast %cst_50 : f32 to vector<2x32xf32>
    %82 = arith.subf %81, %73 : vector<2x32xf32>
    %83 = arith.mulf %82, %80 : vector<2x32xf32>
    %84 = arith.mulf %73, %60 : vector<2x32xf32>
    %85 = arith.addf %83, %84 : vector<2x32xf32>
    %cst_51 = arith.constant dense<0.000000e+00> : vector<2x96xf32>
    %86 = tpu.matmul %60, %15, %cst_51 {dimension_numbers = #tpu.dot_dimension_numbers<[1], [0], [0], [1], [0, 0, 1, 1], [], []>} : vector<2x32xf32>, vector<32x96xf32>, vector<2x96xf32> -> vector<2x96xf32>
    %cst_52 = arith.constant dense<0.000000e+00> : vector<2x96xf32>
    %87 = tpu.matmul %35, %19, %cst_52 {dimension_numbers = #tpu.dot_dimension_numbers<[1], [0], [0], [1], [0, 0, 1, 1], [], []>} : vector<2x32xf32>, vector<32x96xf32>, vector<2x96xf32> -> vector<2x96xf32>
    %88 = vector.extract_strided_slice %86 {offsets = [0, 0], sizes = [2, 64], strides = [1, 1]} : vector<2x96xf32> to vector<2x64xf32>
    %89 = vector.extract_strided_slice %87 {offsets = [0, 0], sizes = [2, 64], strides = [1, 1]} : vector<2x96xf32> to vector<2x64xf32>
    %90 = arith.addf %88, %89 : vector<2x64xf32>
    %91 = arith.addf %90, %23 : vector<2x64xf32>
    %92 = arith.negf %91 : vector<2x64xf32>
    %93 = math.exp %92 : vector<2x64xf32>
    %cst_53 = arith.constant 1.000000e+00 : f32
    %94 = vector.broadcast %cst_53 : f32 to vector<2x64xf32>
    %95 = arith.addf %94, %93 : vector<2x64xf32>
    %96 = arith.divf %94, %95 : vector<2x64xf32>
    %97 = vector.extract_strided_slice %96 {offsets = [0, 0], sizes = [2, 32], strides = [1, 1]} : vector<2x64xf32> to vector<2x32xf32>
    %98 = vector.extract_strided_slice %96 {offsets = [0, 32], sizes = [2, 32], strides = [1, 1]} : vector<2x64xf32> to vector<2x32xf32>
    %99 = vector.extract_strided_slice %86 {offsets = [0, 64], sizes = [2, 32], strides = [1, 1]} : vector<2x96xf32> to vector<2x32xf32>
    %100 = arith.addf %99, %27 : vector<2x32xf32>
    %101 = vector.extract_strided_slice %87 {offsets = [0, 64], sizes = [2, 32], strides = [1, 1]} : vector<2x96xf32> to vector<2x32xf32>
    %102 = arith.addf %101, %31 : vector<2x32xf32>
    %103 = arith.mulf %97, %102 : vector<2x32xf32>
    %104 = arith.addf %100, %103 : vector<2x32xf32>
    %105 = math.tanh %104 : vector<2x32xf32>
    %cst_54 = arith.constant 1.000000e+00 : f32
    %106 = vector.broadcast %cst_54 : f32 to vector<2x32xf32>
    %107 = arith.subf %106, %98 : vector<2x32xf32>
    %108 = arith.mulf %107, %105 : vector<2x32xf32>
    %109 = arith.mulf %98, %35 : vector<2x32xf32>
    %110 = arith.addf %108, %109 : vector<2x32xf32>
    %c0_55 = arith.constant 0 : index
    %c0_56 = arith.constant 0 : index
    %111 = vector.load %arg12[%c0_55, %c0_56] : memref<16x32xf32, #tpu.memory_space<vmem>>, vector<2x32xf32>
    tpu.vector_store %arg12[%c0_55, %c0_56], %110 {strides = array<i32>} : memref<16x32xf32, #tpu.memory_space<vmem>>, vector<2x32xf32>,
    %112 = vector.extract_strided_slice %13 {offsets = [4, 0], sizes = [2, 96], strides = [1, 1]} : vector<16x96xf32> to vector<2x96xf32>
    %cst_57 = arith.constant dense<0.000000e+00> : vector<2x96xf32>
    %113 = tpu.matmul %85, %17, %cst_57 {dimension_numbers = #tpu.dot_dimension_numbers<[1], [0], [0], [1], [0, 0, 1, 1], [], []>} : vector<2x32xf32>, vector<32x96xf32>, vector<2x96xf32> -> vector<2x96xf32>
    %114 = vector.extract_strided_slice %112 {offsets = [0, 0], sizes = [2, 64], strides = [1, 1]} : vector<2x96xf32> to vector<2x64xf32>
    %115 = vector.extract_strided_slice %113 {offsets = [0, 0], sizes = [2, 64], strides = [1, 1]} : vector<2x96xf32> to vector<2x64xf32>
    %116 = arith.addf %114, %115 : vector<2x64xf32>
    %117 = arith.addf %116, %21 : vector<2x64xf32>
    %118 = arith.negf %117 : vector<2x64xf32>
    %119 = math.exp %118 : vector<2x64xf32>
    %cst_58 = arith.constant 1.000000e+00 : f32
    %120 = vector.broadcast %cst_58 : f32 to vector<2x64xf32>
    %121 = arith.addf %120, %119 : vector<2x64xf32>
    %122 = arith.divf %120, %121 : vector<2x64xf32>
    %123 = vector.extract_strided_slice %122 {offsets = [0, 0], sizes = [2, 32], strides = [1, 1]} : vector<2x64xf32> to vector<2x32xf32>
    %124 = vector.extract_strided_slice %122 {offsets = [0, 32], sizes = [2, 32], strides = [1, 1]} : vector<2x64xf32> to vector<2x32xf32>
    %125 = vector.extract_strided_slice %112 {offsets = [0, 64], sizes = [2, 32], strides = [1, 1]} : vector<2x96xf32> to vector<2x32xf32>
    %126 = arith.addf %125, %25 : vector<2x32xf32>
    %127 = vector.extract_strided_slice %113 {offsets = [0, 64], sizes = [2, 32], strides = [1, 1]} : vector<2x96xf32> to vector<2x32xf32>
    %128 = arith.addf %127, %29 : vector<2x32xf32>
    %129 = arith.mulf %123, %128 : vector<2x32xf32>
    %130 = arith.addf %126, %129 : vector<2x32xf32>
    %131 = math.tanh %130 : vector<2x32xf32>
    %cst_59 = arith.constant 1.000000e+00 : f32
    %132 = vector.broadcast %cst_59 : f32 to vector<2x32xf32>
    %133 = arith.subf %132, %124 : vector<2x32xf32>
    %134 = arith.mulf %133, %131 : vector<2x32xf32>
    %135 = arith.mulf %124, %85 : vector<2x32xf32>
    %136 = arith.addf %134, %135 : vector<2x32xf32>
    %cst_60 = arith.constant dense<0.000000e+00> : vector<2x96xf32>
    %137 = tpu.matmul %85, %15, %cst_60 {dimension_numbers = #tpu.dot_dimension_numbers<[1], [0], [0], [1], [0, 0, 1, 1], [], []>} : vector<2x32xf32>, vector<32x96xf32>, vector<2x96xf32> -> vector<2x96xf32>
    %cst_61 = arith.constant dense<0.000000e+00> : vector<2x96xf32>
    %138 = tpu.matmul %110, %19, %cst_61 {dimension_numbers = #tpu.dot_dimension_numbers<[1], [0], [0], [1], [0, 0, 1, 1], [], []>} : vector<2x32xf32>, vector<32x96xf32>, vector<2x96xf32> -> vector<2x96xf32>
    %139 = vector.extract_strided_slice %137 {offsets = [0, 0], sizes = [2, 64], strides = [1, 1]} : vector<2x96xf32> to vector<2x64xf32>
    %140 = vector.extract_strided_slice %138 {offsets = [0, 0], sizes = [2, 64], strides = [1, 1]} : vector<2x96xf32> to vector<2x64xf32>
    %141 = arith.addf %139, %140 : vector<2x64xf32>
    %142 = arith.addf %141, %23 : vector<2x64xf32>
    %143 = arith.negf %142 : vector<2x64xf32>
    %144 = math.exp %143 : vector<2x64xf32>
    %cst_62 = arith.constant 1.000000e+00 : f32
    %145 = vector.broadcast %cst_62 : f32 to vector<2x64xf32>
    %146 = arith.addf %145, %144 : vector<2x64xf32>
    %147 = arith.divf %145, %146 : vector<2x64xf32>
    %148 = vector.extract_strided_slice %147 {offsets = [0, 0], sizes = [2, 32], strides = [1, 1]} : vector<2x64xf32> to vector<2x32xf32>
    %149 = vector.extract_strided_slice %147 {offsets = [0, 32], sizes = [2, 32], strides = [1, 1]} : vector<2x64xf32> to vector<2x32xf32>
    %150 = vector.extract_strided_slice %137 {offsets = [0, 64], sizes = [2, 32], strides = [1, 1]} : vector<2x96xf32> to vector<2x32xf32>
    %151 = arith.addf %150, %27 : vector<2x32xf32>
    %152 = vector.extract_strided_slice %138 {offsets = [0, 64], sizes = [2, 32], strides = [1, 1]} : vector<2x96xf32> to vector<2x32xf32>
    %153 = arith.addf %152, %31 : vector<2x32xf32>
    %154 = arith.mulf %148, %153 : vector<2x32xf32>
    %155 = arith.addf %151, %154 : vector<2x32xf32>
    %156 = math.tanh %155 : vector<2x32xf32>
    %cst_63 = arith.constant 1.000000e+00 : f32
    %157 = vector.broadcast %cst_63 : f32 to vector<2x32xf32>
    %158 = arith.subf %157, %149 : vector<2x32xf32>
    %159 = arith.mulf %158, %156 : vector<2x32xf32>
    %160 = arith.mulf %149, %110 : vector<2x32xf32>
    %161 = arith.addf %159, %160 : vector<2x32xf32>
    %c2 = arith.constant 2 : index
    %c0_64 = arith.constant 0 : index
    %162 = vector.load %arg12[%c2, %c0_64] : memref<16x32xf32, #tpu.memory_space<vmem>>, vector<2x32xf32>
    tpu.vector_store %arg12[%c2, %c0_64], %161 {strides = array<i32>} : memref<16x32xf32, #tpu.memory_space<vmem>>, vector<2x32xf32>,
    %163 = vector.extract_strided_slice %13 {offsets = [6, 0], sizes = [2, 96], strides = [1, 1]} : vector<16x96xf32> to vector<2x96xf32>
    %cst_65 = arith.constant dense<0.000000e+00> : vector<2x96xf32>
    %164 = tpu.matmul %136, %17, %cst_65 {dimension_numbers = #tpu.dot_dimension_numbers<[1], [0], [0], [1], [0, 0, 1, 1], [], []>} : vector<2x32xf32>, vector<32x96xf32>, vector<2x96xf32> -> vector<2x96xf32>
    %165 = vector.extract_strided_slice %163 {offsets = [0, 0], sizes = [2, 64], strides = [1, 1]} : vector<2x96xf32> to vector<2x64xf32>
    %166 = vector.extract_strided_slice %164 {offsets = [0, 0], sizes = [2, 64], strides = [1, 1]} : vector<2x96xf32> to vector<2x64xf32>
    %167 = arith.addf %165, %166 : vector<2x64xf32>
    %168 = arith.addf %167, %21 : vector<2x64xf32>
    %169 = arith.negf %168 : vector<2x64xf32>
    %170 = math.exp %169 : vector<2x64xf32>
    %cst_66 = arith.constant 1.000000e+00 : f32
    %171 = vector.broadcast %cst_66 : f32 to vector<2x64xf32>
    %172 = arith.addf %171, %170 : vector<2x64xf32>
    %173 = arith.divf %171, %172 : vector<2x64xf32>
    %174 = vector.extract_strided_slice %173 {offsets = [0, 0], sizes = [2, 32], strides = [1, 1]} : vector<2x64xf32> to vector<2x32xf32>
    %175 = vector.extract_strided_slice %173 {offsets = [0, 32], sizes = [2, 32], strides = [1, 1]} : vector<2x64xf32> to vector<2x32xf32>
    %176 = vector.extract_strided_slice %163 {offsets = [0, 64], sizes = [2, 32], strides = [1, 1]} : vector<2x96xf32> to vector<2x32xf32>
    %177 = arith.addf %176, %25 : vector<2x32xf32>
    %178 = vector.extract_strided_slice %164 {offsets = [0, 64], sizes = [2, 32], strides = [1, 1]} : vector<2x96xf32> to vector<2x32xf32>
    %179 = arith.addf %178, %29 : vector<2x32xf32>
    %180 = arith.mulf %174, %179 : vector<2x32xf32>
    %181 = arith.addf %177, %180 : vector<2x32xf32>
    %182 = math.tanh %181 : vector<2x32xf32>
    %cst_67 = arith.constant 1.000000e+00 : f32
    %183 = vector.broadcast %cst_67 : f32 to vector<2x32xf32>
    %184 = arith.subf %183, %175 : vector<2x32xf32>
    %185 = arith.mulf %184, %182 : vector<2x32xf32>
    %186 = arith.mulf %175, %136 : vector<2x32xf32>
    %187 = arith.addf %185, %186 : vector<2x32xf32>
    %cst_68 = arith.constant dense<0.000000e+00> : vector<2x96xf32>
    %188 = tpu.matmul %136, %15, %cst_68 {dimension_numbers = #tpu.dot_dimension_numbers<[1], [0], [0], [1], [0, 0, 1, 1], [], []>} : vector<2x32xf32>, vector<32x96xf32>, vector<2x96xf32> -> vector<2x96xf32>
    %cst_69 = arith.constant dense<0.000000e+00> : vector<2x96xf32>
    %189 = tpu.matmul %161, %19, %cst_69 {dimension_numbers = #tpu.dot_dimension_numbers<[1], [0], [0], [1], [0, 0, 1, 1], [], []>} : vector<2x32xf32>, vector<32x96xf32>, vector<2x96xf32> -> vector<2x96xf32>
    %190 = vector.extract_strided_slice %188 {offsets = [0, 0], sizes = [2, 64], strides = [1, 1]} : vector<2x96xf32> to vector<2x64xf32>
    %191 = vector.extract_strided_slice %189 {offsets = [0, 0], sizes = [2, 64], strides = [1, 1]} : vector<2x96xf32> to vector<2x64xf32>
    %192 = arith.addf %190, %191 : vector<2x64xf32>
    %193 = arith.addf %192, %23 : vector<2x64xf32>
    %194 = arith.negf %193 : vector<2x64xf32>
    %195 = math.exp %194 : vector<2x64xf32>
    %cst_70 = arith.constant 1.000000e+00 : f32
    %196 = vector.broadcast %cst_70 : f32 to vector<2x64xf32>
    %197 = arith.addf %196, %195 : vector<2x64xf32>
    %198 = arith.divf %196, %197 : vector<2x64xf32>
    %199 = vector.extract_strided_slice %198 {offsets = [0, 0], sizes = [2, 32], strides = [1, 1]} : vector<2x64xf32> to vector<2x32xf32>
    %200 = vector.extract_strided_slice %198 {offsets = [0, 32], sizes = [2, 32], strides = [1, 1]} : vector<2x64xf32> to vector<2x32xf32>
    %201 = vector.extract_strided_slice %188 {offsets = [0, 64], sizes = [2, 32], strides = [1, 1]} : vector<2x96xf32> to vector<2x32xf32>
    %202 = arith.addf %201, %27 : vector<2x32xf32>
    %203 = vector.extract_strided_slice %189 {offsets = [0, 64], sizes = [2, 32], strides = [1, 1]} : vector<2x96xf32> to vector<2x32xf32>
    %204 = arith.addf %203, %31 : vector<2x32xf32>
    %205 = arith.mulf %199, %204 : vector<2x32xf32>
    %206 = arith.addf %202, %205 : vector<2x32xf32>
    %207 = math.tanh %206 : vector<2x32xf32>
    %cst_71 = arith.constant 1.000000e+00 : f32
    %208 = vector.broadcast %cst_71 : f32 to vector<2x32xf32>
    %209 = arith.subf %208, %200 : vector<2x32xf32>
    %210 = arith.mulf %209, %207 : vector<2x32xf32>
    %211 = arith.mulf %200, %161 : vector<2x32xf32>
    %212 = arith.addf %210, %211 : vector<2x32xf32>
    %c4 = arith.constant 4 : index
    %c0_72 = arith.constant 0 : index
    %213 = vector.load %arg12[%c4, %c0_72] : memref<16x32xf32, #tpu.memory_space<vmem>>, vector<2x32xf32>
    tpu.vector_store %arg12[%c4, %c0_72], %212 {strides = array<i32>} : memref<16x32xf32, #tpu.memory_space<vmem>>, vector<2x32xf32>,
    %214 = vector.extract_strided_slice %13 {offsets = [8, 0], sizes = [2, 96], strides = [1, 1]} : vector<16x96xf32> to vector<2x96xf32>
    %cst_73 = arith.constant dense<0.000000e+00> : vector<2x96xf32>
    %215 = tpu.matmul %187, %17, %cst_73 {dimension_numbers = #tpu.dot_dimension_numbers<[1], [0], [0], [1], [0, 0, 1, 1], [], []>} : vector<2x32xf32>, vector<32x96xf32>, vector<2x96xf32> -> vector<2x96xf32>
    %216 = vector.extract_strided_slice %214 {offsets = [0, 0], sizes = [2, 64], strides = [1, 1]} : vector<2x96xf32> to vector<2x64xf32>
    %217 = vector.extract_strided_slice %215 {offsets = [0, 0], sizes = [2, 64], strides = [1, 1]} : vector<2x96xf32> to vector<2x64xf32>
    %218 = arith.addf %216, %217 : vector<2x64xf32>
    %219 = arith.addf %218, %21 : vector<2x64xf32>
    %220 = arith.negf %219 : vector<2x64xf32>
    %221 = math.exp %220 : vector<2x64xf32>
    %cst_74 = arith.constant 1.000000e+00 : f32
    %222 = vector.broadcast %cst_74 : f32 to vector<2x64xf32>
    %223 = arith.addf %222, %221 : vector<2x64xf32>
    %224 = arith.divf %222, %223 : vector<2x64xf32>
    %225 = vector.extract_strided_slice %224 {offsets = [0, 0], sizes = [2, 32], strides = [1, 1]} : vector<2x64xf32> to vector<2x32xf32>
    %226 = vector.extract_strided_slice %224 {offsets = [0, 32], sizes = [2, 32], strides = [1, 1]} : vector<2x64xf32> to vector<2x32xf32>
    %227 = vector.extract_strided_slice %214 {offsets = [0, 64], sizes = [2, 32], strides = [1, 1]} : vector<2x96xf32> to vector<2x32xf32>
    %228 = arith.addf %227, %25 : vector<2x32xf32>
    %229 = vector.extract_strided_slice %215 {offsets = [0, 64], sizes = [2, 32], strides = [1, 1]} : vector<2x96xf32> to vector<2x32xf32>
    %230 = arith.addf %229, %29 : vector<2x32xf32>
    %231 = arith.mulf %225, %230 : vector<2x32xf32>
    %232 = arith.addf %228, %231 : vector<2x32xf32>
    %233 = math.tanh %232 : vector<2x32xf32>
    %cst_75 = arith.constant 1.000000e+00 : f32
    %234 = vector.broadcast %cst_75 : f32 to vector<2x32xf32>
    %235 = arith.subf %234, %226 : vector<2x32xf32>
    %236 = arith.mulf %235, %233 : vector<2x32xf32>
    %237 = arith.mulf %226, %187 : vector<2x32xf32>
    %238 = arith.addf %236, %237 : vector<2x32xf32>
    %cst_76 = arith.constant dense<0.000000e+00> : vector<2x96xf32>
    %239 = tpu.matmul %187, %15, %cst_76 {dimension_numbers = #tpu.dot_dimension_numbers<[1], [0], [0], [1], [0, 0, 1, 1], [], []>} : vector<2x32xf32>, vector<32x96xf32>, vector<2x96xf32> -> vector<2x96xf32>
    %cst_77 = arith.constant dense<0.000000e+00> : vector<2x96xf32>
    %240 = tpu.matmul %212, %19, %cst_77 {dimension_numbers = #tpu.dot_dimension_numbers<[1], [0], [0], [1], [0, 0, 1, 1], [], []>} : vector<2x32xf32>, vector<32x96xf32>, vector<2x96xf32> -> vector<2x96xf32>
    %241 = vector.extract_strided_slice %239 {offsets = [0, 0], sizes = [2, 64], strides = [1, 1]} : vector<2x96xf32> to vector<2x64xf32>
    %242 = vector.extract_strided_slice %240 {offsets = [0, 0], sizes = [2, 64], strides = [1, 1]} : vector<2x96xf32> to vector<2x64xf32>
    %243 = arith.addf %241, %242 : vector<2x64xf32>
    %244 = arith.addf %243, %23 : vector<2x64xf32>
    %245 = arith.negf %244 : vector<2x64xf32>
    %246 = math.exp %245 : vector<2x64xf32>
    %cst_78 = arith.constant 1.000000e+00 : f32
    %247 = vector.broadcast %cst_78 : f32 to vector<2x64xf32>
    %248 = arith.addf %247, %246 : vector<2x64xf32>
    %249 = arith.divf %247, %248 : vector<2x64xf32>
    %250 = vector.extract_strided_slice %249 {offsets = [0, 0], sizes = [2, 32], strides = [1, 1]} : vector<2x64xf32> to vector<2x32xf32>
    %251 = vector.extract_strided_slice %249 {offsets = [0, 32], sizes = [2, 32], strides = [1, 1]} : vector<2x64xf32> to vector<2x32xf32>
    %252 = vector.extract_strided_slice %239 {offsets = [0, 64], sizes = [2, 32], strides = [1, 1]} : vector<2x96xf32> to vector<2x32xf32>
    %253 = arith.addf %252, %27 : vector<2x32xf32>
    %254 = vector.extract_strided_slice %240 {offsets = [0, 64], sizes = [2, 32], strides = [1, 1]} : vector<2x96xf32> to vector<2x32xf32>
    %255 = arith.addf %254, %31 : vector<2x32xf32>
    %256 = arith.mulf %250, %255 : vector<2x32xf32>
    %257 = arith.addf %253, %256 : vector<2x32xf32>
    %258 = math.tanh %257 : vector<2x32xf32>
    %cst_79 = arith.constant 1.000000e+00 : f32
    %259 = vector.broadcast %cst_79 : f32 to vector<2x32xf32>
    %260 = arith.subf %259, %251 : vector<2x32xf32>
    %261 = arith.mulf %260, %258 : vector<2x32xf32>
    %262 = arith.mulf %251, %212 : vector<2x32xf32>
    %263 = arith.addf %261, %262 : vector<2x32xf32>
    %c6 = arith.constant 6 : index
    %c0_80 = arith.constant 0 : index
    %264 = vector.load %arg12[%c6, %c0_80] : memref<16x32xf32, #tpu.memory_space<vmem>>, vector<2x32xf32>
    tpu.vector_store %arg12[%c6, %c0_80], %263 {strides = array<i32>} : memref<16x32xf32, #tpu.memory_space<vmem>>, vector<2x32xf32>,
    %265 = vector.extract_strided_slice %13 {offsets = [10, 0], sizes = [2, 96], strides = [1, 1]} : vector<16x96xf32> to vector<2x96xf32>
    %cst_81 = arith.constant dense<0.000000e+00> : vector<2x96xf32>
    %266 = tpu.matmul %238, %17, %cst_81 {dimension_numbers = #tpu.dot_dimension_numbers<[1], [0], [0], [1], [0, 0, 1, 1], [], []>} : vector<2x32xf32>, vector<32x96xf32>, vector<2x96xf32> -> vector<2x96xf32>
    %267 = vector.extract_strided_slice %265 {offsets = [0, 0], sizes = [2, 64], strides = [1, 1]} : vector<2x96xf32> to vector<2x64xf32>
    %268 = vector.extract_strided_slice %266 {offsets = [0, 0], sizes = [2, 64], strides = [1, 1]} : vector<2x96xf32> to vector<2x64xf32>
    %269 = arith.addf %267, %268 : vector<2x64xf32>
    %270 = arith.addf %269, %21 : vector<2x64xf32>
    %271 = arith.negf %270 : vector<2x64xf32>
    %272 = math.exp %271 : vector<2x64xf32>
    %cst_82 = arith.constant 1.000000e+00 : f32
    %273 = vector.broadcast %cst_82 : f32 to vector<2x64xf32>
    %274 = arith.addf %273, %272 : vector<2x64xf32>
    %275 = arith.divf %273, %274 : vector<2x64xf32>
    %276 = vector.extract_strided_slice %275 {offsets = [0, 0], sizes = [2, 32], strides = [1, 1]} : vector<2x64xf32> to vector<2x32xf32>
    %277 = vector.extract_strided_slice %275 {offsets = [0, 32], sizes = [2, 32], strides = [1, 1]} : vector<2x64xf32> to vector<2x32xf32>
    %278 = vector.extract_strided_slice %265 {offsets = [0, 64], sizes = [2, 32], strides = [1, 1]} : vector<2x96xf32> to vector<2x32xf32>
    %279 = arith.addf %278, %25 : vector<2x32xf32>
    %280 = vector.extract_strided_slice %266 {offsets = [0, 64], sizes = [2, 32], strides = [1, 1]} : vector<2x96xf32> to vector<2x32xf32>
    %281 = arith.addf %280, %29 : vector<2x32xf32>
    %282 = arith.mulf %276, %281 : vector<2x32xf32>
    %283 = arith.addf %279, %282 : vector<2x32xf32>
    %284 = math.tanh %283 : vector<2x32xf32>
    %cst_83 = arith.constant 1.000000e+00 : f32
    %285 = vector.broadcast %cst_83 : f32 to vector<2x32xf32>
    %286 = arith.subf %285, %277 : vector<2x32xf32>
    %287 = arith.mulf %286, %284 : vector<2x32xf32>
    %288 = arith.mulf %277, %238 : vector<2x32xf32>
    %289 = arith.addf %287, %288 : vector<2x32xf32>
    %cst_84 = arith.constant dense<0.000000e+00> : vector<2x96xf32>
    %290 = tpu.matmul %238, %15, %cst_84 {dimension_numbers = #tpu.dot_dimension_numbers<[1], [0], [0], [1], [0, 0, 1, 1], [], []>} : vector<2x32xf32>, vector<32x96xf32>, vector<2x96xf32> -> vector<2x96xf32>
    %cst_85 = arith.constant dense<0.000000e+00> : vector<2x96xf32>
    %291 = tpu.matmul %263, %19, %cst_85 {dimension_numbers = #tpu.dot_dimension_numbers<[1], [0], [0], [1], [0, 0, 1, 1], [], []>} : vector<2x32xf32>, vector<32x96xf32>, vector<2x96xf32> -> vector<2x96xf32>
    %292 = vector.extract_strided_slice %290 {offsets = [0, 0], sizes = [2, 64], strides = [1, 1]} : vector<2x96xf32> to vector<2x64xf32>
    %293 = vector.extract_strided_slice %291 {offsets = [0, 0], sizes = [2, 64], strides = [1, 1]} : vector<2x96xf32> to vector<2x64xf32>
    %294 = arith.addf %292, %293 : vector<2x64xf32>
    %295 = arith.addf %294, %23 : vector<2x64xf32>
    %296 = arith.negf %295 : vector<2x64xf32>
    %297 = math.exp %296 : vector<2x64xf32>
    %cst_86 = arith.constant 1.000000e+00 : f32
    %298 = vector.broadcast %cst_86 : f32 to vector<2x64xf32>
    %299 = arith.addf %298, %297 : vector<2x64xf32>
    %300 = arith.divf %298, %299 : vector<2x64xf32>
    %301 = vector.extract_strided_slice %300 {offsets = [0, 0], sizes = [2, 32], strides = [1, 1]} : vector<2x64xf32> to vector<2x32xf32>
    %302 = vector.extract_strided_slice %300 {offsets = [0, 32], sizes = [2, 32], strides = [1, 1]} : vector<2x64xf32> to vector<2x32xf32>
    %303 = vector.extract_strided_slice %290 {offsets = [0, 64], sizes = [2, 32], strides = [1, 1]} : vector<2x96xf32> to vector<2x32xf32>
    %304 = arith.addf %303, %27 : vector<2x32xf32>
    %305 = vector.extract_strided_slice %291 {offsets = [0, 64], sizes = [2, 32], strides = [1, 1]} : vector<2x96xf32> to vector<2x32xf32>
    %306 = arith.addf %305, %31 : vector<2x32xf32>
    %307 = arith.mulf %301, %306 : vector<2x32xf32>
    %308 = arith.addf %304, %307 : vector<2x32xf32>
    %309 = math.tanh %308 : vector<2x32xf32>
    %cst_87 = arith.constant 1.000000e+00 : f32
    %310 = vector.broadcast %cst_87 : f32 to vector<2x32xf32>
    %311 = arith.subf %310, %302 : vector<2x32xf32>
    %312 = arith.mulf %311, %309 : vector<2x32xf32>
    %313 = arith.mulf %302, %263 : vector<2x32xf32>
    %314 = arith.addf %312, %313 : vector<2x32xf32>
    %c8 = arith.constant 8 : index
    %c0_88 = arith.constant 0 : index
    %315 = vector.load %arg12[%c8, %c0_88] : memref<16x32xf32, #tpu.memory_space<vmem>>, vector<2x32xf32>
    tpu.vector_store %arg12[%c8, %c0_88], %314 {strides = array<i32>} : memref<16x32xf32, #tpu.memory_space<vmem>>, vector<2x32xf32>,
    %316 = vector.extract_strided_slice %13 {offsets = [12, 0], sizes = [2, 96], strides = [1, 1]} : vector<16x96xf32> to vector<2x96xf32>
    %cst_89 = arith.constant dense<0.000000e+00> : vector<2x96xf32>
    %317 = tpu.matmul %289, %17, %cst_89 {dimension_numbers = #tpu.dot_dimension_numbers<[1], [0], [0], [1], [0, 0, 1, 1], [], []>} : vector<2x32xf32>, vector<32x96xf32>, vector<2x96xf32> -> vector<2x96xf32>
    %318 = vector.extract_strided_slice %316 {offsets = [0, 0], sizes = [2, 64], strides = [1, 1]} : vector<2x96xf32> to vector<2x64xf32>
    %319 = vector.extract_strided_slice %317 {offsets = [0, 0], sizes = [2, 64], strides = [1, 1]} : vector<2x96xf32> to vector<2x64xf32>
    %320 = arith.addf %318, %319 : vector<2x64xf32>
    %321 = arith.addf %320, %21 : vector<2x64xf32>
    %322 = arith.negf %321 : vector<2x64xf32>
    %323 = math.exp %322 : vector<2x64xf32>
    %cst_90 = arith.constant 1.000000e+00 : f32
    %324 = vector.broadcast %cst_90 : f32 to vector<2x64xf32>
    %325 = arith.addf %324, %323 : vector<2x64xf32>
    %326 = arith.divf %324, %325 : vector<2x64xf32>
    %327 = vector.extract_strided_slice %326 {offsets = [0, 0], sizes = [2, 32], strides = [1, 1]} : vector<2x64xf32> to vector<2x32xf32>
    %328 = vector.extract_strided_slice %326 {offsets = [0, 32], sizes = [2, 32], strides = [1, 1]} : vector<2x64xf32> to vector<2x32xf32>
    %329 = vector.extract_strided_slice %316 {offsets = [0, 64], sizes = [2, 32], strides = [1, 1]} : vector<2x96xf32> to vector<2x32xf32>
    %330 = arith.addf %329, %25 : vector<2x32xf32>
    %331 = vector.extract_strided_slice %317 {offsets = [0, 64], sizes = [2, 32], strides = [1, 1]} : vector<2x96xf32> to vector<2x32xf32>
    %332 = arith.addf %331, %29 : vector<2x32xf32>
    %333 = arith.mulf %327, %332 : vector<2x32xf32>
    %334 = arith.addf %330, %333 : vector<2x32xf32>
    %335 = math.tanh %334 : vector<2x32xf32>
    %cst_91 = arith.constant 1.000000e+00 : f32
    %336 = vector.broadcast %cst_91 : f32 to vector<2x32xf32>
    %337 = arith.subf %336, %328 : vector<2x32xf32>
    %338 = arith.mulf %337, %335 : vector<2x32xf32>
    %339 = arith.mulf %328, %289 : vector<2x32xf32>
    %340 = arith.addf %338, %339 : vector<2x32xf32>
    %cst_92 = arith.constant dense<0.000000e+00> : vector<2x96xf32>
    %341 = tpu.matmul %289, %15, %cst_92 {dimension_numbers = #tpu.dot_dimension_numbers<[1], [0], [0], [1], [0, 0, 1, 1], [], []>} : vector<2x32xf32>, vector<32x96xf32>, vector<2x96xf32> -> vector<2x96xf32>
    %cst_93 = arith.constant dense<0.000000e+00> : vector<2x96xf32>
    %342 = tpu.matmul %314, %19, %cst_93 {dimension_numbers = #tpu.dot_dimension_numbers<[1], [0], [0], [1], [0, 0, 1, 1], [], []>} : vector<2x32xf32>, vector<32x96xf32>, vector<2x96xf32> -> vector<2x96xf32>
    %343 = vector.extract_strided_slice %341 {offsets = [0, 0], sizes = [2, 64], strides = [1, 1]} : vector<2x96xf32> to vector<2x64xf32>
    %344 = vector.extract_strided_slice %342 {offsets = [0, 0], sizes = [2, 64], strides = [1, 1]} : vector<2x96xf32> to vector<2x64xf32>
    %345 = arith.addf %343, %344 : vector<2x64xf32>
    %346 = arith.addf %345, %23 : vector<2x64xf32>
    %347 = arith.negf %346 : vector<2x64xf32>
    %348 = math.exp %347 : vector<2x64xf32>
    %cst_94 = arith.constant 1.000000e+00 : f32
    %349 = vector.broadcast %cst_94 : f32 to vector<2x64xf32>
    %350 = arith.addf %349, %348 : vector<2x64xf32>
    %351 = arith.divf %349, %350 : vector<2x64xf32>
    %352 = vector.extract_strided_slice %351 {offsets = [0, 0], sizes = [2, 32], strides = [1, 1]} : vector<2x64xf32> to vector<2x32xf32>
    %353 = vector.extract_strided_slice %351 {offsets = [0, 32], sizes = [2, 32], strides = [1, 1]} : vector<2x64xf32> to vector<2x32xf32>
    %354 = vector.extract_strided_slice %341 {offsets = [0, 64], sizes = [2, 32], strides = [1, 1]} : vector<2x96xf32> to vector<2x32xf32>
    %355 = arith.addf %354, %27 : vector<2x32xf32>
    %356 = vector.extract_strided_slice %342 {offsets = [0, 64], sizes = [2, 32], strides = [1, 1]} : vector<2x96xf32> to vector<2x32xf32>
    %357 = arith.addf %356, %31 : vector<2x32xf32>
    %358 = arith.mulf %352, %357 : vector<2x32xf32>
    %359 = arith.addf %355, %358 : vector<2x32xf32>
    %360 = math.tanh %359 : vector<2x32xf32>
    %cst_95 = arith.constant 1.000000e+00 : f32
    %361 = vector.broadcast %cst_95 : f32 to vector<2x32xf32>
    %362 = arith.subf %361, %353 : vector<2x32xf32>
    %363 = arith.mulf %362, %360 : vector<2x32xf32>
    %364 = arith.mulf %353, %314 : vector<2x32xf32>
    %365 = arith.addf %363, %364 : vector<2x32xf32>
    %c10 = arith.constant 10 : index
    %c0_96 = arith.constant 0 : index
    %366 = vector.load %arg12[%c10, %c0_96] : memref<16x32xf32, #tpu.memory_space<vmem>>, vector<2x32xf32>
    tpu.vector_store %arg12[%c10, %c0_96], %365 {strides = array<i32>} : memref<16x32xf32, #tpu.memory_space<vmem>>, vector<2x32xf32>,
    %367 = vector.extract_strided_slice %13 {offsets = [14, 0], sizes = [2, 96], strides = [1, 1]} : vector<16x96xf32> to vector<2x96xf32>
    %cst_97 = arith.constant dense<0.000000e+00> : vector<2x96xf32>
    %368 = tpu.matmul %340, %17, %cst_97 {dimension_numbers = #tpu.dot_dimension_numbers<[1], [0], [0], [1], [0, 0, 1, 1], [], []>} : vector<2x32xf32>, vector<32x96xf32>, vector<2x96xf32> -> vector<2x96xf32>
    %369 = vector.extract_strided_slice %367 {offsets = [0, 0], sizes = [2, 64], strides = [1, 1]} : vector<2x96xf32> to vector<2x64xf32>
    %370 = vector.extract_strided_slice %368 {offsets = [0, 0], sizes = [2, 64], strides = [1, 1]} : vector<2x96xf32> to vector<2x64xf32>
    %371 = arith.addf %369, %370 : vector<2x64xf32>
    %372 = arith.addf %371, %21 : vector<2x64xf32>
    %373 = arith.negf %372 : vector<2x64xf32>
    %374 = math.exp %373 : vector<2x64xf32>
    %cst_98 = arith.constant 1.000000e+00 : f32
    %375 = vector.broadcast %cst_98 : f32 to vector<2x64xf32>
    %376 = arith.addf %375, %374 : vector<2x64xf32>
    %377 = arith.divf %375, %376 : vector<2x64xf32>
    %378 = vector.extract_strided_slice %377 {offsets = [0, 0], sizes = [2, 32], strides = [1, 1]} : vector<2x64xf32> to vector<2x32xf32>
    %379 = vector.extract_strided_slice %377 {offsets = [0, 32], sizes = [2, 32], strides = [1, 1]} : vector<2x64xf32> to vector<2x32xf32>
    %380 = vector.extract_strided_slice %367 {offsets = [0, 64], sizes = [2, 32], strides = [1, 1]} : vector<2x96xf32> to vector<2x32xf32>
    %381 = arith.addf %380, %25 : vector<2x32xf32>
    %382 = vector.extract_strided_slice %368 {offsets = [0, 64], sizes = [2, 32], strides = [1, 1]} : vector<2x96xf32> to vector<2x32xf32>
    %383 = arith.addf %382, %29 : vector<2x32xf32>
    %384 = arith.mulf %378, %383 : vector<2x32xf32>
    %385 = arith.addf %381, %384 : vector<2x32xf32>
    %386 = math.tanh %385 : vector<2x32xf32>
    %cst_99 = arith.constant 1.000000e+00 : f32
    %387 = vector.broadcast %cst_99 : f32 to vector<2x32xf32>
    %388 = arith.subf %387, %379 : vector<2x32xf32>
    %389 = arith.mulf %388, %386 : vector<2x32xf32>
    %390 = arith.mulf %379, %340 : vector<2x32xf32>
    %391 = arith.addf %389, %390 : vector<2x32xf32>
    %cst_100 = arith.constant dense<0.000000e+00> : vector<2x96xf32>
    %392 = tpu.matmul %340, %15, %cst_100 {dimension_numbers = #tpu.dot_dimension_numbers<[1], [0], [0], [1], [0, 0, 1, 1], [], []>} : vector<2x32xf32>, vector<32x96xf32>, vector<2x96xf32> -> vector<2x96xf32>
    %cst_101 = arith.constant dense<0.000000e+00> : vector<2x96xf32>
    %393 = tpu.matmul %365, %19, %cst_101 {dimension_numbers = #tpu.dot_dimension_numbers<[1], [0], [0], [1], [0, 0, 1, 1], [], []>} : vector<2x32xf32>, vector<32x96xf32>, vector<2x96xf32> -> vector<2x96xf32>
    %394 = vector.extract_strided_slice %392 {offsets = [0, 0], sizes = [2, 64], strides = [1, 1]} : vector<2x96xf32> to vector<2x64xf32>
    %395 = vector.extract_strided_slice %393 {offsets = [0, 0], sizes = [2, 64], strides = [1, 1]} : vector<2x96xf32> to vector<2x64xf32>
    %396 = arith.addf %394, %395 : vector<2x64xf32>
    %397 = arith.addf %396, %23 : vector<2x64xf32>
    %398 = arith.negf %397 : vector<2x64xf32>
    %399 = math.exp %398 : vector<2x64xf32>
    %cst_102 = arith.constant 1.000000e+00 : f32
    %400 = vector.broadcast %cst_102 : f32 to vector<2x64xf32>
    %401 = arith.addf %400, %399 : vector<2x64xf32>
    %402 = arith.divf %400, %401 : vector<2x64xf32>
    %403 = vector.extract_strided_slice %402 {offsets = [0, 0], sizes = [2, 32], strides = [1, 1]} : vector<2x64xf32> to vector<2x32xf32>
    %404 = vector.extract_strided_slice %402 {offsets = [0, 32], sizes = [2, 32], strides = [1, 1]} : vector<2x64xf32> to vector<2x32xf32>
    %405 = vector.extract_strided_slice %392 {offsets = [0, 64], sizes = [2, 32], strides = [1, 1]} : vector<2x96xf32> to vector<2x32xf32>
    %406 = arith.addf %405, %27 : vector<2x32xf32>
    %407 = vector.extract_strided_slice %393 {offsets = [0, 64], sizes = [2, 32], strides = [1, 1]} : vector<2x96xf32> to vector<2x32xf32>
    %408 = arith.addf %407, %31 : vector<2x32xf32>
    %409 = arith.mulf %403, %408 : vector<2x32xf32>
    %410 = arith.addf %406, %409 : vector<2x32xf32>
    %411 = math.tanh %410 : vector<2x32xf32>
    %cst_103 = arith.constant 1.000000e+00 : f32
    %412 = vector.broadcast %cst_103 : f32 to vector<2x32xf32>
    %413 = arith.subf %412, %404 : vector<2x32xf32>
    %414 = arith.mulf %413, %411 : vector<2x32xf32>
    %415 = arith.mulf %404, %365 : vector<2x32xf32>
    %416 = arith.addf %414, %415 : vector<2x32xf32>
    %c12 = arith.constant 12 : index
    %c0_104 = arith.constant 0 : index
    %417 = vector.load %arg12[%c12, %c0_104] : memref<16x32xf32, #tpu.memory_space<vmem>>, vector<2x32xf32>
    tpu.vector_store %arg12[%c12, %c0_104], %416 {strides = array<i32>} : memref<16x32xf32, #tpu.memory_space<vmem>>, vector<2x32xf32>,
    %cst_105 = arith.constant dense<0.000000e+00> : vector<2x96xf32>
    %418 = tpu.matmul %391, %15, %cst_105 {dimension_numbers = #tpu.dot_dimension_numbers<[1], [0], [0], [1], [0, 0, 1, 1], [], []>} : vector<2x32xf32>, vector<32x96xf32>, vector<2x96xf32> -> vector<2x96xf32>
    %cst_106 = arith.constant dense<0.000000e+00> : vector<2x96xf32>
    %419 = tpu.matmul %416, %19, %cst_106 {dimension_numbers = #tpu.dot_dimension_numbers<[1], [0], [0], [1], [0, 0, 1, 1], [], []>} : vector<2x32xf32>, vector<32x96xf32>, vector<2x96xf32> -> vector<2x96xf32>
    %420 = vector.extract_strided_slice %418 {offsets = [0, 0], sizes = [2, 64], strides = [1, 1]} : vector<2x96xf32> to vector<2x64xf32>
    %421 = vector.extract_strided_slice %419 {offsets = [0, 0], sizes = [2, 64], strides = [1, 1]} : vector<2x96xf32> to vector<2x64xf32>
    %422 = arith.addf %420, %421 : vector<2x64xf32>
    %423 = arith.addf %422, %23 : vector<2x64xf32>
    %424 = arith.negf %423 : vector<2x64xf32>
    %425 = math.exp %424 : vector<2x64xf32>
    %cst_107 = arith.constant 1.000000e+00 : f32
    %426 = vector.broadcast %cst_107 : f32 to vector<2x64xf32>
    %427 = arith.addf %426, %425 : vector<2x64xf32>
    %428 = arith.divf %426, %427 : vector<2x64xf32>
    %429 = vector.extract_strided_slice %428 {offsets = [0, 0], sizes = [2, 32], strides = [1, 1]} : vector<2x64xf32> to vector<2x32xf32>
    %430 = vector.extract_strided_slice %428 {offsets = [0, 32], sizes = [2, 32], strides = [1, 1]} : vector<2x64xf32> to vector<2x32xf32>
    %431 = vector.extract_strided_slice %418 {offsets = [0, 64], sizes = [2, 32], strides = [1, 1]} : vector<2x96xf32> to vector<2x32xf32>
    %432 = arith.addf %431, %27 : vector<2x32xf32>
    %433 = vector.extract_strided_slice %419 {offsets = [0, 64], sizes = [2, 32], strides = [1, 1]} : vector<2x96xf32> to vector<2x32xf32>
    %434 = arith.addf %433, %31 : vector<2x32xf32>
    %435 = arith.mulf %429, %434 : vector<2x32xf32>
    %436 = arith.addf %432, %435 : vector<2x32xf32>
    %437 = math.tanh %436 : vector<2x32xf32>
    %cst_108 = arith.constant 1.000000e+00 : f32
    %438 = vector.broadcast %cst_108 : f32 to vector<2x32xf32>
    %439 = arith.subf %438, %430 : vector<2x32xf32>
    %440 = arith.mulf %439, %437 : vector<2x32xf32>
    %441 = arith.mulf %430, %416 : vector<2x32xf32>
    %442 = arith.addf %440, %441 : vector<2x32xf32>
    %c14 = arith.constant 14 : index
    %c0_109 = arith.constant 0 : index
    %443 = vector.load %arg12[%c14, %c0_109] : memref<16x32xf32, #tpu.memory_space<vmem>>, vector<2x32xf32>
    tpu.vector_store %arg12[%c14, %c0_109], %442 {strides = array<i32>} : memref<16x32xf32, #tpu.memory_space<vmem>>, vector<2x32xf32>,
    %c0_110 = arith.constant 0 : index
    %c0_111 = arith.constant 0 : index
    %444 = vector.load %arg12[%c0_110, %c0_111] : memref<16x32xf32, #tpu.memory_space<vmem>>, vector<16x32xf32>
    %c0_112 = arith.constant 0 : index
    %c0_113 = arith.constant 0 : index
    %445 = vector.load %arg9[%c0_112, %c0_113] : memref<32x224xf32, #tpu.memory_space<vmem>>, vector<32x224xf32>
    %cst_114 = arith.constant dense<0.000000e+00> : vector<16x224xf32>
    %446 = tpu.matmul %444, %445, %cst_114 {dimension_numbers = #tpu.dot_dimension_numbers<[1], [0], [0], [1], [0, 0, 1, 1], [], []>} : vector<16x32xf32>, vector<32x224xf32>, vector<16x224xf32> -> vector<16x224xf32>
    %447 = vector.extract_strided_slice %446 {offsets = [0, 192], sizes = [2, 32], strides = [1, 1]} : vector<16x224xf32> to vector<2x32xf32>
    %448 = vector.extract_strided_slice %446 {offsets = [2, 192], sizes = [2, 32], strides = [1, 1]} : vector<16x224xf32> to vector<2x32xf32>
    %449 = arith.maximumf %447, %448 : vector<2x32xf32>
    %450 = vector.extract_strided_slice %446 {offsets = [4, 192], sizes = [2, 32], strides = [1, 1]} : vector<16x224xf32> to vector<2x32xf32>
    %451 = arith.maximumf %449, %450 : vector<2x32xf32>
    %452 = vector.extract_strided_slice %446 {offsets = [6, 192], sizes = [2, 32], strides = [1, 1]} : vector<16x224xf32> to vector<2x32xf32>
    %453 = arith.maximumf %451, %452 : vector<2x32xf32>
    %454 = vector.extract_strided_slice %446 {offsets = [8, 192], sizes = [2, 32], strides = [1, 1]} : vector<16x224xf32> to vector<2x32xf32>
    %455 = arith.maximumf %453, %454 : vector<2x32xf32>
    %456 = vector.extract_strided_slice %446 {offsets = [10, 192], sizes = [2, 32], strides = [1, 1]} : vector<16x224xf32> to vector<2x32xf32>
    %457 = arith.maximumf %455, %456 : vector<2x32xf32>
    %458 = vector.extract_strided_slice %446 {offsets = [12, 192], sizes = [2, 32], strides = [1, 1]} : vector<16x224xf32> to vector<2x32xf32>
    %459 = arith.maximumf %457, %458 : vector<2x32xf32>
    %460 = vector.extract_strided_slice %446 {offsets = [14, 192], sizes = [2, 32], strides = [1, 1]} : vector<16x224xf32> to vector<2x32xf32>
    %461 = arith.maximumf %459, %460 : vector<2x32xf32>
    %462 = vector.extract_strided_slice %446 {offsets = [0, 0], sizes = [2, 32], strides = [1, 1]} : vector<16x224xf32> to vector<2x32xf32>
    %463 = vector.extract_strided_slice %446 {offsets = [14, 32], sizes = [2, 32], strides = [1, 1]} : vector<16x224xf32> to vector<2x32xf32>
    %464 = arith.addf %462, %463 : vector<2x32xf32>
    %465 = vector.extract_strided_slice %446 {offsets = [0, 64], sizes = [2, 32], strides = [1, 1]} : vector<16x224xf32> to vector<2x32xf32>
    %466 = vector.extract_strided_slice %446 {offsets = [8, 96], sizes = [2, 32], strides = [1, 1]} : vector<16x224xf32> to vector<2x32xf32>
    %467 = arith.addf %465, %466 : vector<2x32xf32>
    %468 = arith.addf %464, %467 : vector<2x32xf32>
    %469 = vector.extract_strided_slice %446 {offsets = [0, 128], sizes = [2, 32], strides = [1, 1]} : vector<16x224xf32> to vector<2x32xf32>
    %470 = vector.extract_strided_slice %446 {offsets = [4, 160], sizes = [2, 32], strides = [1, 1]} : vector<16x224xf32> to vector<2x32xf32>
    %471 = arith.addf %469, %470 : vector<2x32xf32>
    %472 = vector.extract_strided_slice %446 {offsets = [4, 128], sizes = [2, 32], strides = [1, 1]} : vector<16x224xf32> to vector<2x32xf32>
    %473 = vector.extract_strided_slice %446 {offsets = [8, 160], sizes = [2, 32], strides = [1, 1]} : vector<16x224xf32> to vector<2x32xf32>
    %474 = arith.addf %472, %473 : vector<2x32xf32>
    %475 = arith.maximumf %471, %474 : vector<2x32xf32>
    %476 = vector.extract_strided_slice %446 {offsets = [8, 128], sizes = [2, 32], strides = [1, 1]} : vector<16x224xf32> to vector<2x32xf32>
    %477 = vector.extract_strided_slice %446 {offsets = [12, 160], sizes = [2, 32], strides = [1, 1]} : vector<16x224xf32> to vector<2x32xf32>
    %478 = arith.addf %476, %477 : vector<2x32xf32>
    %479 = arith.maximumf %475, %478 : vector<2x32xf32>
    %480 = arith.addf %468, %479 : vector<2x32xf32>
    %481 = arith.addf %480, %461 : vector<2x32xf32>
    %c0_115 = arith.constant 0 : index
    %c0_116 = arith.constant 0 : index
    %482 = vector.load %arg10[%c0_115, %c0_116] : memref<1x32xf32, #tpu.memory_space<vmem>>, vector<1x32xf32>
    %483 = vector.broadcast %482 : vector<1x32xf32> to vector<2x32xf32>
    %484 = arith.addf %481, %483 : vector<2x32xf32>
    %c0_117 = arith.constant 0 : index
    %c0_118 = arith.constant 0 : index
    %485 = vector.load %arg11[%c0_117, %c0_118] : memref<2x32xf32, #tpu.memory_space<vmem>>, vector<2x32xf32>
    tpu.vector_store %arg11[%c0_117, %c0_118], %484 {strides = array<i32>} : memref<2x32xf32, #tpu.memory_space<vmem>>, vector<2x32xf32>,
    return
  }
}

</mosaic_0001>

<llo_original>
// kernel: tpu_custom_call.1
$region0: #{tpu_custom_call.1}
  #allocation0 [shape = 'u32[]', space=smem, size = 0x4, offset = 0x4, fixed_abs, tag = 'smem constant byte address 0x4 - core index']
  #allocation1 [shape = 'u32[144,128]{1,0:T(1,128)}', space=vmem, size = 0x12000, scoped, tag = 'internal scratch']
  #allocation2 [shape = 'f32[16,32]{1,0:T(8,128)}', space=vmem, size = 0x2000, scoped, tag = 'scratch operand']
  %s0 = inlined_call_operand.hbm [shape: f32[16,4,256], index: 0, kind: input, shape index: {}]
  %s1 = inlined_call_operand.hbm [shape: f32[4,32], index: 1, kind: input, shape index: {}]
  %s2 = inlined_call_operand.vmem [shape: f32[1,32], index: 2, kind: input, shape index: {}]
  %s3 = inlined_call_operand.hbm [shape: f32[2,32,96], index: 3, kind: input, shape index: {}]
  %s4 = inlined_call_operand.hbm [shape: f32[2,32,96], index: 4, kind: input, shape index: {}]
  %s5 = inlined_call_operand.vmem [shape: f32[2,2,64], index: 5, kind: input, shape index: {}]
  %s6 = inlined_call_operand.vmem [shape: f32[2,2,32], index: 6, kind: input, shape index: {}]
  %s7 = inlined_call_operand.vmem [shape: f32[2,2,32], index: 7, kind: input, shape index: {}]
  %s8 = inlined_call_operand.vmem [shape: f32[2,2,32], index: 8, kind: input, shape index: {}]
  %s9 = inlined_call_operand.hbm [shape: f32[32,224], index: 9, kind: input, shape index: {}]
  %s10 = inlined_call_operand.vmem [shape: f32[1,32], index: 10, kind: input, shape index: {}]
  %s11 = inlined_call_operand.hbm [shape: f32[2,32], index: 11, kind: output, shape index: {}]
  %s12 = sld [smem:[#allocation0]]
  $region74: #{tpu_custom_call.1} parent=0
    _
  %s14 = ssub.s32 1, %s12
  %s15 = scalar_select 0, %s14, %s12
  $region1: #{tpu_custom_call.1} parent=0
    #allocation3 [shape = 'u8[65536]{0}', space=vmem, size = 0x10000, scoped, tag = 'input window, operand 0, single buffered']
    #allocation4 [shape = 's32[1]{0}', space=sflag, size = 0x4, scoped, tag = 'scoped memory for tpu_custom_call.1']
    #allocation5 [shape = 's32[1]{0}', space=sflag, size = 0x4, scoped, tag = 'scoped memory for tpu_custom_call.1']
    #allocation6 [shape = 'u8[2048]{0}', space=vmem, size = 0x800, scoped, tag = 'input window, operand 1, single buffered']
    #allocation7 [shape = 's32[1]{0}', space=sflag, size = 0x4, scoped, tag = 'scoped memory for tpu_custom_call.1']
    #allocation8 [shape = 'u8[32768]{0}', space=vmem, size = 0x8000, scoped, tag = 'input window, operand 3, single buffered']
    #allocation9 [shape = 'u8[32768]{0}', space=vmem, size = 0x8000, scoped, tag = 'input window, operand 4, single buffered']
    #allocation10 [shape = 's32[1]{0}', space=sflag, size = 0x4, scoped, tag = 'scoped memory for tpu_custom_call.1']
    #allocation11 [shape = 'u8[32768]{0}', space=vmem, size = 0x8000, scoped, tag = 'input window, operand 9, single buffered']
    #allocation12 [shape = 'u8[1024]{0}', space=vmem, size = 0x400, scoped, tag = 'output window, operand 0, single buffered']
    %16 = vsyncpa [#allocation4], 0
    %17 = vsyncpa [#allocation7], 0
    %18 = vsyncpa [#allocation10], 0
    %19 = vsyncpa [#allocation5], 0
    // Predicated region
    $region2: #{tpu_custom_call.1} parent=1 // pred_check
      _
    $region3: #{tpu_custom_call.1} parent=1 // pred_check_branch
      %21 = sbr.rel (0) target = $region5
    $region4: #{tpu_custom_call.1} parent=1 // pred_region
      %s23 = ssub.s32 2048, 2048
      %24 = vsyncadd [#allocation4], %s23
      %s25 = sshll.u32 [#allocation3], 4
      %s26 = int_to_ptr.vmem [resolvable:$true] %s25
      %31 = dma.hbm_to_vmem [thread:$0]  %s0, 2048, %s26, [#allocation4], 128, 128, 8
    $region5: #{tpu_custom_call.1} parent=1 // pred_fallthru
      _
    // Predicated region
    $region6: #{tpu_custom_call.1} parent=1 // pred_check
      _
    $region7: #{tpu_custom_call.1} parent=1 // pred_check_branch
      %33 = sbr.rel (0) target = $region9
    $region8: #{tpu_custom_call.1} parent=1 // pred_region
      %s35 = ssub.s32 64, 64
      %36 = vsyncadd [#allocation7], %s35
      %s38 = sshll.u32 [#allocation6], 4
      %s39 = int_to_ptr.vmem [resolvable:$true] %s38
      %41 = dma.hbm_to_vmem [thread:$0]  %s1, 64, %s39, [#allocation7]
    $region9: #{tpu_custom_call.1} parent=1 // pred_fallthru
      _
    // Predicated region
    $region10: #{tpu_custom_call.1} parent=1 // pred_check
      _
    $region11: #{tpu_custom_call.1} parent=1 // pred_check_branch
      %43 = sbr.rel (0) target = $region13
    $region12: #{tpu_custom_call.1} parent=1 // pred_region
      _
    $region13: #{tpu_custom_call.1} parent=1 // pred_fallthru
      _
    // Predicated region
    $region14: #{tpu_custom_call.1} parent=1 // pred_check
      _
    $region15: #{tpu_custom_call.1} parent=1 // pred_check_branch
      %45 = sbr.rel (0) target = $region17
    $region16: #{tpu_custom_call.1} parent=1 // pred_region
      %s47 = ssub.s32 1024, 1024
      %48 = vsyncadd [#allocation7], %s47
      %s49 = sshll.u32 [#allocation8], 4
      %s50 = int_to_ptr.vmem [resolvable:$true] %s49
      %55 = dma.hbm_to_vmem [thread:$0]  %s3, 1024, %s50, [#allocation7], 128, 128, 8
    $region17: #{tpu_custom_call.1} parent=1 // pred_fallthru
      _
    // Predicated region
    $region18: #{tpu_custom_call.1} parent=1 // pred_check
      _
    $region19: #{tpu_custom_call.1} parent=1 // pred_check_branch
      %57 = sbr.rel (0) target = $region21
    $region20: #{tpu_custom_call.1} parent=1 // pred_region
      %s59 = ssub.s32 1024, 1024
      %60 = vsyncadd [#allocation10], %s59
      %s61 = sshll.u32 [#allocation9], 4
      %s62 = int_to_ptr.vmem [resolvable:$true] %s61
      %67 = dma.hbm_to_vmem [thread:$0]  %s4, 1024, %s62, [#allocation10], 128, 128, 8
    $region21: #{tpu_custom_call.1} parent=1 // pred_fallthru
      _
    // Predicated region
    $region22: #{tpu_custom_call.1} parent=1 // pred_check
      _
    $region23: #{tpu_custom_call.1} parent=1 // pred_check_branch
      %69 = sbr.rel (0) target = $region25
    $region24: #{tpu_custom_call.1} parent=1 // pred_region
      _
    $region25: #{tpu_custom_call.1} parent=1 // pred_fallthru
      _
    // Predicated region
    $region26: #{tpu_custom_call.1} parent=1 // pred_check
      _
    $region27: #{tpu_custom_call.1} parent=1 // pred_check_branch
      %71 = sbr.rel (0) target = $region29
    $region28: #{tpu_custom_call.1} parent=1 // pred_region
      _
    $region29: #{tpu_custom_call.1} parent=1 // pred_fallthru
      _
    // Predicated region
    $region30: #{tpu_custom_call.1} parent=1 // pred_check
      _
    $region31: #{tpu_custom_call.1} parent=1 // pred_check_branch
      %73 = sbr.rel (0) target = $region33
    $region32: #{tpu_custom_call.1} parent=1 // pred_region
      _
    $region33: #{tpu_custom_call.1} parent=1 // pred_fallthru
      _
    // Predicated region
    $region34: #{tpu_custom_call.1} parent=1 // pred_check
      _
    $region35: #{tpu_custom_call.1} parent=1 // pred_check_branch
      %75 = sbr.rel (0) target = $region37
    $region36: #{tpu_custom_call.1} parent=1 // pred_region
      _
    $region37: #{tpu_custom_call.1} parent=1 // pred_fallthru
      _
    // Predicated region
    $region38: #{tpu_custom_call.1} parent=1 // pred_check
      _
    $region39: #{tpu_custom_call.1} parent=1 // pred_check_branch
      %77 = sbr.rel (0) target = $region41
    $region40: #{tpu_custom_call.1} parent=1 // pred_region
      %s79 = ssub.s32 1024, 1024
      %80 = vsyncadd [#allocation10], %s79
      %s81 = sshll.u32 [#allocation11], 4
      %s82 = int_to_ptr.vmem [resolvable:$true] %s81
      %87 = dma.hbm_to_vmem [thread:$0]  %s9, 1024, %s82, [#allocation10], 256, 256, 16
    $region41: #{tpu_custom_call.1} parent=1 // pred_fallthru
      _
    // Predicated region
    $region42: #{tpu_custom_call.1} parent=1 // pred_check
      _
    $region43: #{tpu_custom_call.1} parent=1 // pred_check_branch
      %89 = sbr.rel (0) target = $region45
    $region44: #{tpu_custom_call.1} parent=1 // pred_region
      _
    $region45: #{tpu_custom_call.1} parent=1 // pred_fallthru
      _
    // Predicated region
    $region46: #{tpu_custom_call.1} parent=1 // pred_check
      _
    $region47: #{tpu_custom_call.1} parent=1 // pred_check_branch
      %91 = sbr.rel (0) target = $region49
    $region48: #{tpu_custom_call.1} parent=1 // pred_region
      %92 = dma.done [#allocation4], 2048
    $region49: #{tpu_custom_call.1} parent=1 // pred_fallthru
      _
    // Predicated region
    $region50: #{tpu_custom_call.1} parent=1 // pred_check
      _
    $region51: #{tpu_custom_call.1} parent=1 // pred_check_branch
      %94 = sbr.rel (0) target = $region53
    $region52: #{tpu_custom_call.1} parent=1 // pred_region
      %95 = dma.done [#allocation7], 64
    $region53: #{tpu_custom_call.1} parent=1 // pred_fallthru
      _
    // Predicated region
    $region54: #{tpu_custom_call.1} parent=1 // pred_check
      _
    $region55: #{tpu_custom_call.1} parent=1 // pred_check_branch
      %97 = sbr.rel (0) target = $region57
    $region56: #{tpu_custom_call.1} parent=1 // pred_region
      %98 = dma.done [#allocation7], 1024
    $region57: #{tpu_custom_call.1} parent=1 // pred_fallthru
      _
    // Predicated region
    $region58: #{tpu_custom_call.1} parent=1 // pred_check
      _
    $region59: #{tpu_custom_call.1} parent=1 // pred_check_branch
      %100 = sbr.rel (0) target = $region61
    $region60: #{tpu_custom_call.1} parent=1 // pred_region
      %101 = dma.done [#allocation10], 1024
    $region61: #{tpu_custom_call.1} parent=1 // pred_fallthru
      _
    // Predicated region
    $region62: #{tpu_custom_call.1} parent=1 // pred_check
      _
    $region63: #{tpu_custom_call.1} parent=1 // pred_check_branch
      %103 = sbr.rel (0) target = $region65
    $region64: #{tpu_custom_call.1} parent=1 // pred_region
      %104 = dma.done [#allocation10], 1024
    $region65: #{tpu_custom_call.1} parent=1 // pred_fallthru
      _
    %v105 = vld [vmem:[#allocation3] sm:$0xff]
    %v106 = vld [vmem:[#allocation3 + $0x8] sm:$0xff]
    %v107 = vld [vmem:[#allocation3 + $0x10] sm:$0xff]
    %v108 = vld [vmem:[#allocation3 + $0x18] sm:$0xff]
    %v109 = vld [vmem:[#allocation3 + $0x20] sm:$0xff]
    %v110 = vld [vmem:[#allocation3 + $0x28] sm:$0xff]
    %v111 = vld [vmem:[#allocation3 + $0x30] sm:$0xff]
    %v112 = vld [vmem:[#allocation3 + $0x38] sm:$0xff]
    %v113 = vld [vmem:[#allocation3 + $0x40] sm:$0xff]
    %v114 = vld [vmem:[#allocation3 + $0x48] sm:$0xff]
    %v115 = vld [vmem:[#allocation3 + $0x50] sm:$0xff]
    %v116 = vld [vmem:[#allocation3 + $0x58] sm:$0xff]
    %v117 = vld [vmem:[#allocation3 + $0x60] sm:$0xff]
    %v118 = vld [vmem:[#allocation3 + $0x68] sm:$0xff]
    %v119 = vld [vmem:[#allocation3 + $0x70] sm:$0xff]
    %v120 = vld [vmem:[#allocation3 + $0x78] sm:$0xff]
    %v137 = vcombine.high %v105, %v105
    %v138 = vcombine.high %v106, %v106
    %v139 = vcombine.high %v107, %v107
    %v140 = vcombine.high %v108, %v108
    %v141 = vcombine.high %v109, %v109
    %v142 = vcombine.high %v110, %v110
    %v143 = vcombine.high %v111, %v111
    %v144 = vcombine.high %v112, %v112
    %v145 = vcombine.high %v113, %v113
    %v146 = vcombine.high %v114, %v114
    %v147 = vcombine.high %v115, %v115
    %v148 = vcombine.high %v116, %v116
    %v149 = vcombine.high %v117, %v117
    %v150 = vcombine.high %v118, %v118
    %v151 = vcombine.high %v119, %v119
    %v152 = vcombine.high %v120, %v120
    %vm169 = vcmask 1043456
    %v170 = vsel %vm169, %v105, -inf
    %v171 = vsel %vm169, %v137, -inf
    %v172 = vmax.f32 %v170, %v171
    %173 = vmax.xlane.f32.xlu0 %v172
    %v174 = vpop.xlane.xlu0 %173
    %v175 = vsel %vm169, %v106, -inf
    %v176 = vsel %vm169, %v138, -inf
    %v177 = vmax.f32 %v175, %v176
    %178 = vmax.xlane.f32.xlu0 %v177
    %v179 = vpop.xlane.xlu0 %178
    %v180 = vsel %vm169, %v107, -inf
    %v181 = vsel %vm169, %v139, -inf
    %v182 = vmax.f32 %v180, %v181
    %183 = vmax.xlane.f32.xlu0 %v182
    %v184 = vpop.xlane.xlu0 %183
    %v185 = vsel %vm169, %v108, -inf
    %v186 = vsel %vm169, %v140, -inf
    %v187 = vmax.f32 %v185, %v186
    %188 = vmax.xlane.f32.xlu0 %v187
    %v189 = vpop.xlane.xlu0 %188
    %v190 = vsel %vm169, %v109, -inf
    %v191 = vsel %vm169, %v141, -inf
    %v192 = vmax.f32 %v190, %v191
    %193 = vmax.xlane.f32.xlu0 %v192
    %v194 = vpop.xlane.xlu0 %193
    %v195 = vsel %vm169, %v110, -inf
    %v196 = vsel %vm169, %v142, -inf
    %v197 = vmax.f32 %v195, %v196
    %198 = vmax.xlane.f32.xlu0 %v197
    %v199 = vpop.xlane.xlu0 %198
    %v200 = vsel %vm169, %v111, -inf
    %v201 = vsel %vm169, %v143, -inf
    %v202 = vmax.f32 %v200, %v201
    %203 = vmax.xlane.f32.xlu0 %v202
    %v204 = vpop.xlane.xlu0 %203
    %v205 = vsel %vm169, %v112, -inf
    %v206 = vsel %vm169, %v144, -inf
    %v207 = vmax.f32 %v205, %v206
    %208 = vmax.xlane.f32.xlu0 %v207
    %v209 = vpop.xlane.xlu0 %208
    %v210 = vsel %vm169, %v113, -inf
    %v211 = vsel %vm169, %v145, -inf
    %v212 = vmax.f32 %v210, %v211
    %213 = vmax.xlane.f32.xlu0 %v212
    %v214 = vpop.xlane.xlu0 %213
    %v215 = vsel %vm169, %v114, -inf
    %v216 = vsel %vm169, %v146, -inf
    %v217 = vmax.f32 %v215, %v216
    %218 = vmax.xlane.f32.xlu0 %v217
    %v219 = vpop.xlane.xlu0 %218
    %v220 = vsel %vm169, %v115, -inf
    %v221 = vsel %vm169, %v147, -inf
    %v222 = vmax.f32 %v220, %v221
    %223 = vmax.xlane.f32.xlu0 %v222
    %v224 = vpop.xlane.xlu0 %223
    %v225 = vsel %vm169, %v116, -inf
    %v226 = vsel %vm169, %v148, -inf
    %v227 = vmax.f32 %v225, %v226
    %228 = vmax.xlane.f32.xlu0 %v227
    %v229 = vpop.xlane.xlu0 %228
    %v230 = vsel %vm169, %v117, -inf
    %v231 = vsel %vm169, %v149, -inf
    %v232 = vmax.f32 %v230, %v231
    %233 = vmax.xlane.f32.xlu0 %v232
    %v234 = vpop.xlane.xlu0 %233
    %v235 = vsel %vm169, %v118, -inf
    %v236 = vsel %vm169, %v150, -inf
    %v237 = vmax.f32 %v235, %v236
    %238 = vmax.xlane.f32.xlu0 %v237
    %v239 = vpop.xlane.xlu0 %238
    %v240 = vsel %vm169, %v119, -inf
    %v241 = vsel %vm169, %v151, -inf
    %v242 = vmax.f32 %v240, %v241
    %243 = vmax.xlane.f32.xlu0 %v242
    %v244 = vpop.xlane.xlu0 %243
    %v245 = vsel %vm169, %v120, -inf
    %v246 = vsel %vm169, %v152, -inf
    %v247 = vmax.f32 %v245, %v246
    %248 = vmax.xlane.f32.xlu0 %v247
    %v249 = vpop.xlane.xlu0 %248
    %v250 = vmax.f32 %v174, 0.0
    %v251 = vmax.f32 %v179, 0.0
    %v252 = vmax.f32 %v184, 0.0
    %v253 = vmax.f32 %v189, 0.0
    %v254 = vmax.f32 %v194, 0.0
    %v255 = vmax.f32 %v199, 0.0
    %v256 = vmax.f32 %v204, 0.0
    %v257 = vmax.f32 %v209, 0.0
    %v258 = vmax.f32 %v214, 0.0
    %v259 = vmax.f32 %v219, 0.0
    %v260 = vmax.f32 %v224, 0.0
    %v261 = vmax.f32 %v229, 0.0
    %v262 = vmax.f32 %v234, 0.0
    %v263 = vmax.f32 %v239, 0.0
    %v264 = vmax.f32 %v244, 0.0
    %v265 = vmax.f32 %v249, 0.0
    %v266 = vld [vmem:[#allocation6] sm:$0xf]
    %v267 = vld [vmem:[%s2] sm:$0x1]
    %v269 = vlaneseq
    %v270 = vshrl.u32 %v269, 7
    %v271 = vsub.s32 0, %v270
    %v272 = vrot.slane %v267, %v271
    %v290 = vlaneseq
    %v291 = vand.u32 %v290, 127
    %v292 = vlaneseq
    %v293 = vshrl.u32 %v292, 7
    %v294 = vsub.s32 %v291, %v293
    %v295 = vrot.slane %v250, %v294
    %v296 = vlaneseq
    %v297 = vshrl.u32 %v296, 7
    %v298 = vsub.s32 %v291, %v297
    %v299 = vrot.slane %v251, %v298
    %v300 = vlaneseq
    %v301 = vshrl.u32 %v300, 7
    %v302 = vsub.s32 %v291, %v301
    %v303 = vrot.slane %v252, %v302
    %v304 = vlaneseq
    %v305 = vshrl.u32 %v304, 7
    %v306 = vsub.s32 %v291, %v305
    %v307 = vrot.slane %v253, %v306
    %v308 = vlaneseq
    %v309 = vshrl.u32 %v308, 7
    %v310 = vsub.s32 %v291, %v309
    %v311 = vrot.slane %v254, %v310
    %v312 = vlaneseq
    %v313 = vshrl.u32 %v312, 7
    %v314 = vsub.s32 %v291, %v313
    %v315 = vrot.slane %v255, %v314
    %v316 = vlaneseq
    %v317 = vshrl.u32 %v316, 7
    %v318 = vsub.s32 %v291, %v317
    %v319 = vrot.slane %v256, %v318
    %v320 = vlaneseq
    %v321 = vshrl.u32 %v320, 7
    %v322 = vsub.s32 %v291, %v321
    %v323 = vrot.slane %v257, %v322
    %v324 = vlaneseq
    %v325 = vshrl.u32 %v324, 7
    %v326 = vsub.s32 %v291, %v325
    %v327 = vrot.slane %v258, %v326
    %v328 = vlaneseq
    %v329 = vshrl.u32 %v328, 7
    %v330 = vsub.s32 %v291, %v329
    %v331 = vrot.slane %v259, %v330
    %v332 = vlaneseq
    %v333 = vshrl.u32 %v332, 7
    %v334 = vsub.s32 %v291, %v333
    %v335 = vrot.slane %v260, %v334
    %v336 = vlaneseq
    %v337 = vshrl.u32 %v336, 7
    %v338 = vsub.s32 %v291, %v337
    %v339 = vrot.slane %v261, %v338
    %v340 = vlaneseq
    %v341 = vshrl.u32 %v340, 7
    %v342 = vsub.s32 %v291, %v341
    %v343 = vrot.slane %v262, %v342
    %v344 = vlaneseq
    %v345 = vshrl.u32 %v344, 7
    %v346 = vsub.s32 %v291, %v345
    %v347 = vrot.slane %v263, %v346
    %v348 = vlaneseq
    %v349 = vshrl.u32 %v348, 7
    %v350 = vsub.s32 %v291, %v349
    %v351 = vrot.slane %v264, %v350
    %v352 = vlaneseq
    %v353 = vshrl.u32 %v352, 7
    %v354 = vsub.s32 %v291, %v353
    %v355 = vrot.slane %v265, %v354
    %vm356 = vcmask 1041409
    %v357 = vsel %vm356, %v299, %v295
    %vm358 = vcmask 1042434
    %v359 = vsel %vm358, %v303, %v357
    %vm360 = vcmask 1043459
    %v361 = vsel %vm360, %v307, %v359
    %vm362 = vcmask 1044484
    %v363 = vsel %vm362, %v311, %v361
    %vm364 = vcmask 1045509
    %v365 = vsel %vm364, %v315, %v363
    %vm366 = vcmask 1046534
    %v367 = vsel %vm366, %v319, %v365
    %vm368 = vcmask 1047559
    %v369 = vsel %vm368, %v323, %v367
    %v370 = vsel %vm356, %v331, %v327
    %v371 = vsel %vm358, %v335, %v370
    %v372 = vsel %vm360, %v339, %v371
    %v373 = vsel %vm362, %v343, %v372
    %v374 = vsel %vm364, %v347, %v373
    %v375 = vsel %vm366, %v351, %v374
    %v376 = vsel %vm368, %v355, %v375
    %vm377 = vcmask 31744
    %v378 = vsel %vm377, %v369, 0
    %v380 = vsel %vm377, %v376, 0
    %v383 = vsel %vm169, %v266, 0
    %385 = vmatprep.subr.mxu0 0.0
    %386 = vmatpush1.msra.mxu0 %v383
    %387 = vmatprep.subr.mxu0 0.0
    %388 = vmatpush1.msra.mxu0 0.0
    %389 = vmatprep.subr.mxu0 0.0
    %390 = vmatpush1.msra.mxu0 0.0
    %391 = vmatprep.subr.mxu0 0.0
    %392 = vmatpush1.msra.mxu0 0.0
    %393 = vmatprep.subr.mxu0 0.0
    %394 = vmatpush1.msra.mxu0 0.0
    %395 = vmatprep.subr.mxu0 0.0
    %396 = vmatpush1.msra.mxu0 0.0
    %397 = vmatprep.subr.mxu0 0.0
    %398 = vmatpush1.msra.mxu0 0.0
    %399 = vmatprep.subr.mxu0 0.0
    %400 = vmatpush1.msra.mxu0 0.0
    %401 = vmatprep.subr.mxu0 0.0
    %402 = vmatpush1.msra.mxu0 0.0
    %403 = vmatprep.subr.mxu0 0.0
    %404 = vmatpush1.msra.mxu0 0.0
    %405 = vmatprep.subr.mxu0 0.0
    %406 = vmatpush1.msra.mxu0 0.0
    %407 = vmatprep.subr.mxu0 0.0
    %408 = vmatpush1.msra.mxu0 0.0
    %409 = vmatprep.subr.mxu0 0.0
    %410 = vmatpush1.msra.mxu0 0.0
    %411 = vmatprep.subr.mxu0 0.0
    %412 = vmatpush1.msra.mxu0 0.0
    %413 = vmatprep.subr.mxu0 0.0
    %414 = vmatpush1.msra.mxu0 0.0
    %415 = vmatprep.subr.mxu0 0.0
    %416 = vmatpush1.msra.mxu0 0.0
    %417 = vmatprep.subr.mxu0 0.0
    %418 = vmatpush1.msra.mxu0 0.0
    %419 = vmatprep.subr.mxu0 0.0
    %420 = vmatpush1.msra.mxu0 0.0
    %421 = vmatprep.subr.mxu0 0.0
    %422 = vmatpush1.msra.mxu0 0.0
    %423 = vmatprep.subr.mxu0 0.0
    %424 = vmatpush1.msra.mxu0 0.0
    %425 = vmatprep.subr.mxu0 0.0
    %426 = vmatpush1.msra.mxu0 0.0
    %427 = vmatprep.subr.mxu0 0.0
    %428 = vmatpush1.msra.mxu0 0.0
    %429 = vmatprep.subr.mxu0 0.0
    %430 = vmatpush1.msra.mxu0 0.0
    %431 = vmatprep.subr.mxu0 0.0
    %432 = vmatpush1.msra.mxu0 0.0
    %433 = vmatprep.subr.mxu0 0.0
    %434 = vmatpush1.msra.mxu0 0.0
    %435 = vmatprep.subr.mxu0 0.0
    %436 = vmatpush1.msra.mxu0 0.0
    %437 = vmatprep.subr.mxu0 0.0
    %438 = vmatpush1.msra.mxu0 0.0
    %439 = vmatprep.subr.mxu0 0.0
    %440 = vmatpush1.msra.mxu0 0.0
    %441 = vmatprep.subr.mxu0 0.0
    %442 = vmatpush1.msra.mxu0 0.0
    %443 = vmatprep.subr.mxu0 0.0
    %444 = vmatpush1.msra.mxu0 0.0
    %445 = vmatprep.subr.mxu0 0.0
    %446 = vmatpush1.msra.mxu0 0.0
    %447 = vmatprep.subr.mxu0 0.0
    %448 = vmatpush1.msra.mxu0 0.0
    %449 = vmatprep.mubr.f32.mxu0 0.0
    %450 = vmatmul.mubr.f32.gmra.mrb[0].mxu0 %v378
    %v451 = vpop.f32.mrb[0].mxu0
    %v452 = vadd.f32 %v272, %v451
    %v453 = vpop.f32.mrb[0].mxu0
    %454 = vmatprep.mubr.f32.mxu0 0.0
    %455 = vmatmul.mubr.f32.gmra.mrb[0].mxu0 %v380
    %v456 = vpop.f32.mrb[0].mxu0
    %v457 = vadd.f32 %v272, %v456
    %v458 = vpop.f32.mrb[0].mxu0
    %459 = vdwg.mxu0
    %v460 = vmax.f32 %v452, 0.0
    %v461 = vmax.f32 %v457, 0.0
    %v462 = vld [vmem:[#allocation8] sm:$0xff]
    %v463 = vld [vmem:[#allocation8 + $0x8] sm:$0xff]
    %v464 = vld [vmem:[#allocation8 + $0x10] sm:$0xff]
    %v465 = vld [vmem:[#allocation8 + $0x18] sm:$0xff]
    %vm466 = vcmask 261120
    %v468 = vsel %vm466, %v460, 0
    %v471 = vsel %vm466, %v461, 0
    %473 = vmatprep.subr.mxu0 0.0
    %474 = vmatpush1.msra.mxu0 %v462
    %475 = vmatprep.subr.mxu0 0.0
    %476 = vmatpush1.msra.mxu0 %v463
    %477 = vmatprep.subr.mxu0 0.0
    %478 = vmatpush1.msra.mxu0 %v464
    %479 = vmatprep.subr.mxu0 0.0
    %480 = vmatpush1.msra.mxu0 %v465
    %481 = vmatprep.subr.mxu0 0.0
    %482 = vmatpush1.msra.mxu0 0.0
    %483 = vmatprep.subr.mxu0 0.0
    %484 = vmatpush1.msra.mxu0 0.0
    %485 = vmatprep.subr.mxu0 0.0
    %486 = vmatpush1.msra.mxu0 0.0
    %487 = vmatprep.subr.mxu0 0.0
    %488 = vmatpush1.msra.mxu0 0.0
    %489 = vmatprep.subr.mxu0 0.0
    %490 = vmatpush1.msra.mxu0 0.0
    %491 = vmatprep.subr.mxu0 0.0
    %492 = vmatpush1.msra.mxu0 0.0
    %493 = vmatprep.subr.mxu0 0.0
    %494 = vmatpush1.msra.mxu0 0.0
    %495 = vmatprep.subr.mxu0 0.0
    %496 = vmatpush1.msra.mxu0 0.0
    %497 = vmatprep.subr.mxu0 0.0
    %498 = vmatpush1.msra.mxu0 0.0
    %499 = vmatprep.subr.mxu0 0.0
    %500 = vmatpush1.msra.mxu0 0.0
    %501 = vmatprep.subr.mxu0 0.0
    %502 = vmatpush1.msra.mxu0 0.0
    %503 = vmatprep.subr.mxu0 0.0
    %504 = vmatpush1.msra.mxu0 0.0
    %505 = vmatprep.subr.mxu0 0.0
    %506 = vmatpush1.msra.mxu0 0.0
    %507 = vmatprep.subr.mxu0 0.0
    %508 = vmatpush1.msra.mxu0 0.0
    %509 = vmatprep.subr.mxu0 0.0
    %510 = vmatpush1.msra.mxu0 0.0
    %511 = vmatprep.subr.mxu0 0.0
    %512 = vmatpush1.msra.mxu0 0.0
    %513 = vmatprep.subr.mxu0 0.0
    %514 = vmatpush1.msra.mxu0 0.0
    %515 = vmatprep.subr.mxu0 0.0
    %516 = vmatpush1.msra.mxu0 0.0
    %517 = vmatprep.subr.mxu0 0.0
    %518 = vmatpush1.msra.mxu0 0.0
    %519 = vmatprep.subr.mxu0 0.0
    %520 = vmatpush1.msra.mxu0 0.0
    %521 = vmatprep.subr.mxu0 0.0
    %522 = vmatpush1.msra.mxu0 0.0
    %523 = vmatprep.subr.mxu0 0.0
    %524 = vmatpush1.msra.mxu0 0.0
    %525 = vmatprep.subr.mxu0 0.0
    %526 = vmatpush1.msra.mxu0 0.0
    %527 = vmatprep.subr.mxu0 0.0
    %528 = vmatpush1.msra.mxu0 0.0
    %529 = vmatprep.subr.mxu0 0.0
    %530 = vmatpush1.msra.mxu0 0.0
    %531 = vmatprep.subr.mxu0 0.0
    %532 = vmatpush1.msra.mxu0 0.0
    %533 = vmatprep.subr.mxu0 0.0
    %534 = vmatpush1.msra.mxu0 0.0
    %535 = vmatprep.subr.mxu0 0.0
    %536 = vmatpush1.msra.mxu0 0.0
    %537 = vmatprep.mubr.f32.mxu0 0.0
    %538 = vmatmul.mubr.f32.gmra.mrb[0].mxu0 %v468
    %v539 = vpop.f32.mrb[0].mxu0
    %v540 = vadd.f32 0.0, %v539
    %v541 = vpop.f32.mrb[0].mxu0
    %542 = vmatprep.mubr.f32.mxu0 0.0
    %543 = vmatmul.mubr.f32.gmra.mrb[0].mxu0 %v471
    %v544 = vpop.f32.mrb[0].mxu0
    %v545 = vadd.f32 0.0, %v544
    %v546 = vpop.f32.mrb[0].mxu0
    %547 = vdwg.mxu0
    %s548 = scalar_lea.vmem [#allocation8], 32
    %v549 = vld [vmem:[%s548] sm:$0xff]
    %v550 = vld [vmem:[%s548 + $0x8] sm:$0xff]
    %v551 = vld [vmem:[%s548 + $0x10] sm:$0xff]
    %v552 = vld [vmem:[%s548 + $0x18] sm:$0xff]
    %v553 = vld [vmem:[#allocation9] sm:$0xff]
    %v554 = vld [vmem:[#allocation9 + $0x8] sm:$0xff]
    %v555 = vld [vmem:[#allocation9 + $0x10] sm:$0xff]
    %v556 = vld [vmem:[#allocation9 + $0x18] sm:$0xff]
    %s557 = scalar_lea.vmem [#allocation9], 32
    %v558 = vld [vmem:[%s557] sm:$0xff]
    %v559 = vld [vmem:[%s557 + $0x8] sm:$0xff]
    %v560 = vld [vmem:[%s557 + $0x10] sm:$0xff]
    %v561 = vld [vmem:[%s557 + $0x18] sm:$0xff]
    %v562 = vld [vmem:[%s5] sm:$0x3]
    %s563 = scalar_lea.vmem %s5, 2
    %v564 = vld [vmem:[%s563] sm:$0x3]
    %v565 = vld [vmem:[%s6] sm:$0x3]
    %s566 = scalar_lea.vmem %s6, 2
    %v567 = vld [vmem:[%s566] sm:$0x3]
    %v568 = vld [vmem:[%s7] sm:$0x3]
    %s569 = scalar_lea.vmem %s7, 2
    %v570 = vld [vmem:[%s569] sm:$0x3]
    %v571 = vld [vmem:[%s8] sm:$0x3]
    %s572 = scalar_lea.vmem %s8, 2
    %v573 = vld [vmem:[%s572] sm:$0x3]
    %v575 = vsel %vm466, %v571, 0
    %577 = vmatprep.subr.mxu0 0.0
    %578 = vmatpush1.msra.mxu0 %v553
    %579 = vmatprep.subr.mxu0 0.0
    %580 = vmatpush1.msra.mxu0 %v554
    %581 = vmatprep.subr.mxu0 0.0
    %582 = vmatpush1.msra.mxu0 %v555
    %583 = vmatprep.subr.mxu0 0.0
    %584 = vmatpush1.msra.mxu0 %v556
    %585 = vmatprep.subr.mxu0 0.0
    %586 = vmatpush1.msra.mxu0 0.0
    %587 = vmatprep.subr.mxu0 0.0
    %588 = vmatpush1.msra.mxu0 0.0
    %589 = vmatprep.subr.mxu0 0.0
    %590 = vmatpush1.msra.mxu0 0.0
    %591 = vmatprep.subr.mxu0 0.0
    %592 = vmatpush1.msra.mxu0 0.0
    %593 = vmatprep.subr.mxu0 0.0
    %594 = vmatpush1.msra.mxu0 0.0
    %595 = vmatprep.subr.mxu0 0.0
    %596 = vmatpush1.msra.mxu0 0.0
    %597 = vmatprep.subr.mxu0 0.0
    %598 = vmatpush1.msra.mxu0 0.0
    %599 = vmatprep.subr.mxu0 0.0
    %600 = vmatpush1.msra.mxu0 0.0
    %601 = vmatprep.subr.mxu0 0.0
    %602 = vmatpush1.msra.mxu0 0.0
    %603 = vmatprep.subr.mxu0 0.0
    %604 = vmatpush1.msra.mxu0 0.0
    %605 = vmatprep.subr.mxu0 0.0
    %606 = vmatpush1.msra.mxu0 0.0
    %607 = vmatprep.subr.mxu0 0.0
    %608 = vmatpush1.msra.mxu0 0.0
    %609 = vmatprep.subr.mxu0 0.0
    %610 = vmatpush1.msra.mxu0 0.0
    %611 = vmatprep.subr.mxu0 0.0
    %612 = vmatpush1.msra.mxu0 0.0
    %613 = vmatprep.subr.mxu0 0.0
    %614 = vmatpush1.msra.mxu0 0.0
    %615 = vmatprep.subr.mxu0 0.0
    %616 = vmatpush1.msra.mxu0 0.0
    %617 = vmatprep.subr.mxu0 0.0
    %618 = vmatpush1.msra.mxu0 0.0
    %619 = vmatprep.subr.mxu0 0.0
    %620 = vmatpush1.msra.mxu0 0.0
    %621 = vmatprep.subr.mxu0 0.0
    %622 = vmatpush1.msra.mxu0 0.0
    %623 = vmatprep.subr.mxu0 0.0
    %624 = vmatpush1.msra.mxu0 0.0
    %625 = vmatprep.subr.mxu0 0.0
    %626 = vmatpush1.msra.mxu0 0.0
    %627 = vmatprep.subr.mxu0 0.0
    %628 = vmatpush1.msra.mxu0 0.0
    %629 = vmatprep.subr.mxu0 0.0
    %630 = vmatpush1.msra.mxu0 0.0
    %631 = vmatprep.subr.mxu0 0.0
    %632 = vmatpush1.msra.mxu0 0.0
    %633 = vmatprep.subr.mxu0 0.0
    %634 = vmatpush1.msra.mxu0 0.0
    %635 = vmatprep.subr.mxu0 0.0
    %636 = vmatpush1.msra.mxu0 0.0
    %637 = vmatprep.subr.mxu0 0.0
    %638 = vmatpush1.msra.mxu0 0.0
    %639 = vmatprep.subr.mxu0 0.0
    %640 = vmatpush1.msra.mxu0 0.0
    %641 = vmatprep.mubr.f32.mxu0 0.0
    %642 = vmatmul.mubr.f32.gmra.mrb[0].mxu0 %v575
    %v643 = vpop.f32.mrb[0].mxu0
    %v644 = vadd.f32 0.0, %v643
    %v645 = vpop.f32.mrb[0].mxu0
    %646 = vdwg.mxu0
    %v647 = vadd.f32 %v540, %v644
    %v648 = vadd.f32 %v647, %v562
    %v649 = vxor.u32 %v648, 2147483648
    %v650 = vmul.f32 %v649, 1.442695
    %v651 = vpow.pop %v650
    %v652 = vadd.f32 %v651, 1.0
    %v653 = vrcp.pop %v652
    %v654 = vmul.f32 1.0, %v653
    %656 = vrot.lane.b32.xlu0 %v565, 64
    %v657 = vpop.permute.xlu0 %656
    %v659 = vadd.f32 %v540, %v657
    %661 = vrot.lane.b32.xlu0 %v568, 64
    %v662 = vpop.permute.xlu0 %661
    %v664 = vadd.f32 %v644, %v662
    %666 = vrot.lane.b32.xlu0 %v664, 64
    %v667 = vpop.permute.xlu0 %666
    %v669 = vmul.f32 %v654, %v667
    %671 = vrot.lane.b32.xlu0 %v669, 64
    %v672 = vpop.permute.xlu0 %671
    %v674 = vadd.f32 %v659, %v672
    %v675 = vtanh.pop %v674
    %v676 = vsub.f32 1.0, %v654
    %678 = vrot.lane.b32.xlu0 %v675, 96
    %v679 = vpop.permute.xlu0 %678
    %v681 = vmul.f32 %v676, %v679
    %682 = vrot.lane.b32.xlu0 %v571, 32
    %v683 = vpop.permute.xlu0 %682
    %v685 = vmul.f32 %v654, %v683
    %v686 = vadd.f32 %v681, %v685
    %688 = vrot.lane.b32.xlu0 %v686, 96
    %v689 = vpop.permute.xlu0 %688
    %v690 = vsel %vm466, %v689, 0
    %692 = vmatprep.subr.mxu0 0.0
    %693 = vmatpush1.msra.mxu0 %v553
    %694 = vmatprep.subr.mxu0 0.0
    %695 = vmatpush1.msra.mxu0 %v554
    %696 = vmatprep.subr.mxu0 0.0
    %697 = vmatpush1.msra.mxu0 %v555
    %698 = vmatprep.subr.mxu0 0.0
    %699 = vmatpush1.msra.mxu0 %v556
    %700 = vmatprep.subr.mxu0 0.0
    %701 = vmatpush1.msra.mxu0 0.0
    %702 = vmatprep.subr.mxu0 0.0
    %703 = vmatpush1.msra.mxu0 0.0
    %704 = vmatprep.subr.mxu0 0.0
    %705 = vmatpush1.msra.mxu0 0.0
    %706 = vmatprep.subr.mxu0 0.0
    %707 = vmatpush1.msra.mxu0 0.0
    %708 = vmatprep.subr.mxu0 0.0
    %709 = vmatpush1.msra.mxu0 0.0
    %710 = vmatprep.subr.mxu0 0.0
    %711 = vmatpush1.msra.mxu0 0.0
    %712 = vmatprep.subr.mxu0 0.0
    %713 = vmatpush1.msra.mxu0 0.0
    %714 = vmatprep.subr.mxu0 0.0
    %715 = vmatpush1.msra.mxu0 0.0
    %716 = vmatprep.subr.mxu0 0.0
    %717 = vmatpush1.msra.mxu0 0.0
    %718 = vmatprep.subr.mxu0 0.0
    %719 = vmatpush1.msra.mxu0 0.0
    %720 = vmatprep.subr.mxu0 0.0
    %721 = vmatpush1.msra.mxu0 0.0
    %722 = vmatprep.subr.mxu0 0.0
    %723 = vmatpush1.msra.mxu0 0.0
    %724 = vmatprep.subr.mxu0 0.0
    %725 = vmatpush1.msra.mxu0 0.0
    %726 = vmatprep.subr.mxu0 0.0
    %727 = vmatpush1.msra.mxu0 0.0
    %728 = vmatprep.subr.mxu0 0.0
    %729 = vmatpush1.msra.mxu0 0.0
    %730 = vmatprep.subr.mxu0 0.0
    %731 = vmatpush1.msra.mxu0 0.0
    %732 = vmatprep.subr.mxu0 0.0
    %733 = vmatpush1.msra.mxu0 0.0
    %734 = vmatprep.subr.mxu0 0.0
    %735 = vmatpush1.msra.mxu0 0.0
    %736 = vmatprep.subr.mxu0 0.0
    %737 = vmatpush1.msra.mxu0 0.0
    %738 = vmatprep.subr.mxu0 0.0
    %739 = vmatpush1.msra.mxu0 0.0
    %740 = vmatprep.subr.mxu0 0.0
    %741 = vmatpush1.msra.mxu0 0.0
    %742 = vmatprep.subr.mxu0 0.0
    %743 = vmatpush1.msra.mxu0 0.0
    %744 = vmatprep.subr.mxu0 0.0
    %745 = vmatpush1.msra.mxu0 0.0
    %746 = vmatprep.subr.mxu0 0.0
    %747 = vmatpush1.msra.mxu0 0.0
    %748 = vmatprep.subr.mxu0 0.0
    %749 = vmatpush1.msra.mxu0 0.0
    %750 = vmatprep.subr.mxu0 0.0
    %751 = vmatpush1.msra.mxu0 0.0
    %752 = vmatprep.subr.mxu0 0.0
    %753 = vmatpush1.msra.mxu0 0.0
    %754 = vmatprep.subr.mxu0 0.0
    %755 = vmatpush1.msra.mxu0 0.0
    %756 = vmatprep.mubr.f32.mxu0 0.0
    %757 = vmatmul.mubr.f32.gmra.mrb[0].mxu0 %v690
    %v758 = vpop.f32.mrb[0].mxu0
    %v759 = vadd.f32 0.0, %v758
    %v760 = vpop.f32.mrb[0].mxu0
    %761 = vdwg.mxu0
    %v763 = vrot.slane %v759, 6
    %v765 = vadd.f32 %v540, %v763
    %v767 = vrot.slane %v562, 6
    %v769 = vadd.f32 %v765, %v767
    %v770 = vxor.u32 %v769, 2147483648
    %v771 = vmul.f32 %v770, 1.442695
    %v772 = vpow.pop %v771
    %v773 = vadd.f32 %v772, 1.0
    %v774 = vrcp.pop %v773
    %v775 = vmul.f32 1.0, %v774
    %v776 = vrot.slane %v565, 6
    %777 = vrot.lane.b32.xlu0 %v776, 64
    %v778 = vpop.permute.xlu0 %777
    %v780 = vadd.f32 %v540, %v778
    %v781 = vadd.f32 %v759, %v662
    %v783 = vrot.slane %v781, 6
    %784 = vrot.lane.b32.xlu0 %v783, 64
    %v785 = vpop.permute.xlu0 %784
    %v787 = vmul.f32 %v775, %v785
    %789 = vrot.lane.b32.xlu0 %v787, 64
    %v790 = vpop.permute.xlu0 %789
    %v792 = vadd.f32 %v780, %v790
    %v793 = vtanh.pop %v792
    %v794 = vsub.f32 1.0, %v775
    %796 = vrot.lane.b32.xlu0 %v793, 96
    %v797 = vpop.permute.xlu0 %796
    %v799 = vmul.f32 %v794, %v797
    %v800 = vrot.slane %v686, 6
    %v802 = vmul.f32 %v775, %v800
    %v803 = vadd.f32 %v799, %v802
    %804 = vmatprep.subr.mxu0 0.0
    %805 = vmatpush1.msra.mxu0 %v549
    %806 = vmatprep.subr.mxu0 0.0
    %807 = vmatpush1.msra.mxu0 %v550
    %808 = vmatprep.subr.mxu0 0.0
    %809 = vmatpush1.msra.mxu0 %v551
    %810 = vmatprep.subr.mxu0 0.0
    %811 = vmatpush1.msra.mxu0 %v552
    %812 = vmatprep.subr.mxu0 0.0
    %813 = vmatpush1.msra.mxu0 0.0
    %814 = vmatprep.subr.mxu0 0.0
    %815 = vmatpush1.msra.mxu0 0.0
    %816 = vmatprep.subr.mxu0 0.0
    %817 = vmatpush1.msra.mxu0 0.0
    %818 = vmatprep.subr.mxu0 0.0
    %819 = vmatpush1.msra.mxu0 0.0
    %820 = vmatprep.subr.mxu0 0.0
    %821 = vmatpush1.msra.mxu0 0.0
    %822 = vmatprep.subr.mxu0 0.0
    %823 = vmatpush1.msra.mxu0 0.0
    %824 = vmatprep.subr.mxu0 0.0
    %825 = vmatpush1.msra.mxu0 0.0
    %826 = vmatprep.subr.mxu0 0.0
    %827 = vmatpush1.msra.mxu0 0.0
    %828 = vmatprep.subr.mxu0 0.0
    %829 = vmatpush1.msra.mxu0 0.0
    %830 = vmatprep.subr.mxu0 0.0
    %831 = vmatpush1.msra.mxu0 0.0
    %832 = vmatprep.subr.mxu0 0.0
    %833 = vmatpush1.msra.mxu0 0.0
    %834 = vmatprep.subr.mxu0 0.0
    %835 = vmatpush1.msra.mxu0 0.0
    %836 = vmatprep.subr.mxu0 0.0
    %837 = vmatpush1.msra.mxu0 0.0
    %838 = vmatprep.subr.mxu0 0.0
    %839 = vmatpush1.msra.mxu0 0.0
    %840 = vmatprep.subr.mxu0 0.0
    %841 = vmatpush1.msra.mxu0 0.0
    %842 = vmatprep.subr.mxu0 0.0
    %843 = vmatpush1.msra.mxu0 0.0
    %844 = vmatprep.subr.mxu0 0.0
    %845 = vmatpush1.msra.mxu0 0.0
    %846 = vmatprep.subr.mxu0 0.0
    %847 = vmatpush1.msra.mxu0 0.0
    %848 = vmatprep.subr.mxu0 0.0
    %849 = vmatpush1.msra.mxu0 0.0
    %850 = vmatprep.subr.mxu0 0.0
    %851 = vmatpush1.msra.mxu0 0.0
    %852 = vmatprep.subr.mxu0 0.0
    %853 = vmatpush1.msra.mxu0 0.0
    %854 = vmatprep.subr.mxu0 0.0
    %855 = vmatpush1.msra.mxu0 0.0
    %856 = vmatprep.subr.mxu0 0.0
    %857 = vmatpush1.msra.mxu0 0.0
    %858 = vmatprep.subr.mxu0 0.0
    %859 = vmatpush1.msra.mxu0 0.0
    %860 = vmatprep.subr.mxu0 0.0
    %861 = vmatpush1.msra.mxu0 0.0
    %862 = vmatprep.subr.mxu0 0.0
    %863 = vmatpush1.msra.mxu0 0.0
    %864 = vmatprep.subr.mxu0 0.0
    %865 = vmatpush1.msra.mxu0 0.0
    %866 = vmatprep.subr.mxu0 0.0
    %867 = vmatpush1.msra.mxu0 0.0
    %868 = vmatprep.mubr.f32.mxu0 0.0
    %869 = vmatmul.mubr.f32.gmra.mrb[0].mxu0 %v690
    %v870 = vpop.f32.mrb[0].mxu0
    %v871 = vadd.f32 0.0, %v870
    %v872 = vpop.f32.mrb[0].mxu0
    %873 = vdwg.mxu0
    %v875 = vsel %vm466, %v573, 0
    %877 = vmatprep.subr.mxu0 0.0
    %878 = vmatpush1.msra.mxu0 %v558
    %879 = vmatprep.subr.mxu0 0.0
    %880 = vmatpush1.msra.mxu0 %v559
    %881 = vmatprep.subr.mxu0 0.0
    %882 = vmatpush1.msra.mxu0 %v560
    %883 = vmatprep.subr.mxu0 0.0
    %884 = vmatpush1.msra.mxu0 %v561
    %885 = vmatprep.subr.mxu0 0.0
    %886 = vmatpush1.msra.mxu0 0.0
    %887 = vmatprep.subr.mxu0 0.0
    %888 = vmatpush1.msra.mxu0 0.0
    %889 = vmatprep.subr.mxu0 0.0
    %890 = vmatpush1.msra.mxu0 0.0
    %891 = vmatprep.subr.mxu0 0.0
    %892 = vmatpush1.msra.mxu0 0.0
    %893 = vmatprep.subr.mxu0 0.0
    %894 = vmatpush1.msra.mxu0 0.0
    %895 = vmatprep.subr.mxu0 0.0
    %896 = vmatpush1.msra.mxu0 0.0
    %897 = vmatprep.subr.mxu0 0.0
    %898 = vmatpush1.msra.mxu0 0.0
    %899 = vmatprep.subr.mxu0 0.0
    %900 = vmatpush1.msra.mxu0 0.0
    %901 = vmatprep.subr.mxu0 0.0
    %902 = vmatpush1.msra.mxu0 0.0
    %903 = vmatprep.subr.mxu0 0.0
    %904 = vmatpush1.msra.mxu0 0.0
    %905 = vmatprep.subr.mxu0 0.0
    %906 = vmatpush1.msra.mxu0 0.0
    %907 = vmatprep.subr.mxu0 0.0
    %908 = vmatpush1.msra.mxu0 0.0
    %909 = vmatprep.subr.mxu0 0.0
    %910 = vmatpush1.msra.mxu0 0.0
    %911 = vmatprep.subr.mxu0 0.0
    %912 = vmatpush1.msra.mxu0 0.0
    %913 = vmatprep.subr.mxu0 0.0
    %914 = vmatpush1.msra.mxu0 0.0
    %915 = vmatprep.subr.mxu0 0.0
    %916 = vmatpush1.msra.mxu0 0.0
    %917 = vmatprep.subr.mxu0 0.0
    %918 = vmatpush1.msra.mxu0 0.0
    %919 = vmatprep.subr.mxu0 0.0
    %920 = vmatpush1.msra.mxu0 0.0
    %921 = vmatprep.subr.mxu0 0.0
    %922 = vmatpush1.msra.mxu0 0.0
    %923 = vmatprep.subr.mxu0 0.0
    %924 = vmatpush1.msra.mxu0 0.0
    %925 = vmatprep.subr.mxu0 0.0
    %926 = vmatpush1.msra.mxu0 0.0
    %927 = vmatprep.subr.mxu0 0.0
    %928 = vmatpush1.msra.mxu0 0.0
    %929 = vmatprep.subr.mxu0 0.0
    %930 = vmatpush1.msra.mxu0 0.0
    %931 = vmatprep.subr.mxu0 0.0
    %932 = vmatpush1.msra.mxu0 0.0
    %933 = vmatprep.subr.mxu0 0.0
    %934 = vmatpush1.msra.mxu0 0.0
    %935 = vmatprep.subr.mxu0 0.0
    %936 = vmatpush1.msra.mxu0 0.0
    %937 = vmatprep.subr.mxu0 0.0
    %938 = vmatpush1.msra.mxu0 0.0
    %939 = vmatprep.subr.mxu0 0.0
    %940 = vmatpush1.msra.mxu0 0.0
    %941 = vmatprep.mubr.f32.mxu0 0.0
    %942 = vmatmul.mubr.f32.gmra.mrb[0].mxu0 %v875
    %v943 = vpop.f32.mrb[0].mxu0
    %v944 = vadd.f32 0.0, %v943
    %v945 = vpop.f32.mrb[0].mxu0
    %946 = vdwg.mxu0
    %v947 = vadd.f32 %v871, %v944
    %v948 = vadd.f32 %v947, %v564
    %v949 = vxor.u32 %v948, 2147483648
    %v950 = vmul.f32 %v949, 1.442695
    %v951 = vpow.pop %v950
    %v952 = vadd.f32 %v951, 1.0
    %v953 = vrcp.pop %v952
    %v954 = vmul.f32 1.0, %v953
    %956 = vrot.lane.b32.xlu0 %v567, 64
    %v957 = vpop.permute.xlu0 %956
    %v959 = vadd.f32 %v871, %v957
    %961 = vrot.lane.b32.xlu0 %v570, 64
    %v962 = vpop.permute.xlu0 %961
    %v964 = vadd.f32 %v944, %v962
    %966 = vrot.lane.b32.xlu0 %v964, 64
    %v967 = vpop.permute.xlu0 %966
    %v969 = vmul.f32 %v954, %v967
    %971 = vrot.lane.b32.xlu0 %v969, 64
    %v972 = vpop.permute.xlu0 %971
    %v974 = vadd.f32 %v959, %v972
    %v975 = vtanh.pop %v974
    %v976 = vsub.f32 1.0, %v954
    %978 = vrot.lane.b32.xlu0 %v975, 96
    %v979 = vpop.permute.xlu0 %978
    %v981 = vmul.f32 %v976, %v979
    %982 = vrot.lane.b32.xlu0 %v573, 32
    %v983 = vpop.permute.xlu0 %982
    %v985 = vmul.f32 %v954, %v983
    %v986 = vadd.f32 %v981, %v985
    %988 = vrot.lane.b32.xlu0 %v986, 96
    %v989 = vpop.permute.xlu0 %988
    %vm991 = vcmask 254976
    %992 = vst.msk [vmem:[#allocation2] sm:$0x3] %vm991, %v989
    %v994 = vrot.slane %v803, 2
    %995 = vrot.lane.b32.xlu0 %v994, 96
    %v996 = vpop.permute.xlu0 %995
    %v997 = vsel %vm466, %v996, 0
    %999 = vmatprep.subr.mxu0 0.0
    %1000 = vmatpush1.msra.mxu0 %v553
    %1001 = vmatprep.subr.mxu0 0.0
    %1002 = vmatpush1.msra.mxu0 %v554
    %1003 = vmatprep.subr.mxu0 0.0
    %1004 = vmatpush1.msra.mxu0 %v555
    %1005 = vmatprep.subr.mxu0 0.0
    %1006 = vmatpush1.msra.mxu0 %v556
    %1007 = vmatprep.subr.mxu0 0.0
    %1008 = vmatpush1.msra.mxu0 0.0
    %1009 = vmatprep.subr.mxu0 0.0
    %1010 = vmatpush1.msra.mxu0 0.0
    %1011 = vmatprep.subr.mxu0 0.0
    %1012 = vmatpush1.msra.mxu0 0.0
    %1013 = vmatprep.subr.mxu0 0.0
    %1014 = vmatpush1.msra.mxu0 0.0
    %1015 = vmatprep.subr.mxu0 0.0
    %1016 = vmatpush1.msra.mxu0 0.0
    %1017 = vmatprep.subr.mxu0 0.0
    %1018 = vmatpush1.msra.mxu0 0.0
    %1019 = vmatprep.subr.mxu0 0.0
    %1020 = vmatpush1.msra.mxu0 0.0
    %1021 = vmatprep.subr.mxu0 0.0
    %1022 = vmatpush1.msra.mxu0 0.0
    %1023 = vmatprep.subr.mxu0 0.0
    %1024 = vmatpush1.msra.mxu0 0.0
    %1025 = vmatprep.subr.mxu0 0.0
    %1026 = vmatpush1.msra.mxu0 0.0
    %1027 = vmatprep.subr.mxu0 0.0
    %1028 = vmatpush1.msra.mxu0 0.0
    %1029 = vmatprep.subr.mxu0 0.0
    %1030 = vmatpush1.msra.mxu0 0.0
    %1031 = vmatprep.subr.mxu0 0.0
    %1032 = vmatpush1.msra.mxu0 0.0
    %1033 = vmatprep.subr.mxu0 0.0
    %1034 = vmatpush1.msra.mxu0 0.0
    %1035 = vmatprep.subr.mxu0 0.0
    %1036 = vmatpush1.msra.mxu0 0.0
    %1037 = vmatprep.subr.mxu0 0.0
    %1038 = vmatpush1.msra.mxu0 0.0
    %1039 = vmatprep.subr.mxu0 0.0
    %1040 = vmatpush1.msra.mxu0 0.0
    %1041 = vmatprep.subr.mxu0 0.0
    %1042 = vmatpush1.msra.mxu0 0.0
    %1043 = vmatprep.subr.mxu0 0.0
    %1044 = vmatpush1.msra.mxu0 0.0
    %1045 = vmatprep.subr.mxu0 0.0
    %1046 = vmatpush1.msra.mxu0 0.0
    %1047 = vmatprep.subr.mxu0 0.0
    %1048 = vmatpush1.msra.mxu0 0.0
    %1049 = vmatprep.subr.mxu0 0.0
    %1050 = vmatpush1.msra.mxu0 0.0
    %1051 = vmatprep.subr.mxu0 0.0
    %1052 = vmatpush1.msra.mxu0 0.0
    %1053 = vmatprep.subr.mxu0 0.0
    %1054 = vmatpush1.msra.mxu0 0.0
    %1055 = vmatprep.subr.mxu0 0.0
    %1056 = vmatpush1.msra.mxu0 0.0
    %1057 = vmatprep.subr.mxu0 0.0
    %1058 = vmatpush1.msra.mxu0 0.0
    %1059 = vmatprep.subr.mxu0 0.0
    %1060 = vmatpush1.msra.mxu0 0.0
    %1061 = vmatprep.subr.mxu0 0.0
    %1062 = vmatpush1.msra.mxu0 0.0
    %1063 = vmatprep.mubr.f32.mxu0 0.0
    %1064 = vmatmul.mubr.f32.gmra.mrb[0].mxu0 %v997
    %v1065 = vpop.f32.mrb[0].mxu0
    %v1066 = vadd.f32 0.0, %v1065
    %v1067 = vpop.f32.mrb[0].mxu0
    %1068 = vdwg.mxu0
    %v1070 = vrot.slane %v1066, 4
    %v1072 = vadd.f32 %v540, %v1070
    %v1073 = vrot.slane %v562, 4
    %v1075 = vadd.f32 %v1072, %v1073
    %v1076 = vxor.u32 %v1075, 2147483648
    %v1077 = vmul.f32 %v1076, 1.442695
    %v1078 = vpow.pop %v1077
    %v1079 = vadd.f32 %v1078, 1.0
    %v1080 = vrcp.pop %v1079
    %v1081 = vmul.f32 1.0, %v1080
    %v1082 = vrot.slane %v565, 4
    %1083 = vrot.lane.b32.xlu0 %v1082, 64
    %v1084 = vpop.permute.xlu0 %1083
    %v1086 = vadd.f32 %v540, %v1084
    %v1087 = vadd.f32 %v1066, %v662
    %v1089 = vrot.slane %v1087, 4
    %1090 = vrot.lane.b32.xlu0 %v1089, 64
    %v1091 = vpop.permute.xlu0 %1090
    %v1093 = vmul.f32 %v1081, %v1091
    %1095 = vrot.lane.b32.xlu0 %v1093, 64
    %v1096 = vpop.permute.xlu0 %1095
    %v1098 = vadd.f32 %v1086, %v1096
    %v1099 = vtanh.pop %v1098
    %v1100 = vsub.f32 1.0, %v1081
    %1102 = vrot.lane.b32.xlu0 %v1099, 96
    %v1103 = vpop.permute.xlu0 %1102
    %v1105 = vmul.f32 %v1100, %v1103
    %v1106 = vrot.slane %v803, 6
    %v1108 = vmul.f32 %v1081, %v1106
    %v1109 = vadd.f32 %v1105, %v1108
    %1110 = vmatprep.subr.mxu0 0.0
    %1111 = vmatpush1.msra.mxu0 %v549
    %1112 = vmatprep.subr.mxu0 0.0
    %1113 = vmatpush1.msra.mxu0 %v550
    %1114 = vmatprep.subr.mxu0 0.0
    %1115 = vmatpush1.msra.mxu0 %v551
    %1116 = vmatprep.subr.mxu0 0.0
    %1117 = vmatpush1.msra.mxu0 %v552
    %1118 = vmatprep.subr.mxu0 0.0
    %1119 = vmatpush1.msra.mxu0 0.0
    %1120 = vmatprep.subr.mxu0 0.0
    %1121 = vmatpush1.msra.mxu0 0.0
    %1122 = vmatprep.subr.mxu0 0.0
    %1123 = vmatpush1.msra.mxu0 0.0
    %1124 = vmatprep.subr.mxu0 0.0
    %1125 = vmatpush1.msra.mxu0 0.0
    %1126 = vmatprep.subr.mxu0 0.0
    %1127 = vmatpush1.msra.mxu0 0.0
    %1128 = vmatprep.subr.mxu0 0.0
    %1129 = vmatpush1.msra.mxu0 0.0
    %1130 = vmatprep.subr.mxu0 0.0
    %1131 = vmatpush1.msra.mxu0 0.0
    %1132 = vmatprep.subr.mxu0 0.0
    %1133 = vmatpush1.msra.mxu0 0.0
    %1134 = vmatprep.subr.mxu0 0.0
    %1135 = vmatpush1.msra.mxu0 0.0
    %1136 = vmatprep.subr.mxu0 0.0
    %1137 = vmatpush1.msra.mxu0 0.0
    %1138 = vmatprep.subr.mxu0 0.0
    %1139 = vmatpush1.msra.mxu0 0.0
    %1140 = vmatprep.subr.mxu0 0.0
    %1141 = vmatpush1.msra.mxu0 0.0
    %1142 = vmatprep.subr.mxu0 0.0
    %1143 = vmatpush1.msra.mxu0 0.0
    %1144 = vmatprep.subr.mxu0 0.0
    %1145 = vmatpush1.msra.mxu0 0.0
    %1146 = vmatprep.subr.mxu0 0.0
    %1147 = vmatpush1.msra.mxu0 0.0
    %1148 = vmatprep.subr.mxu0 0.0
    %1149 = vmatpush1.msra.mxu0 0.0
    %1150 = vmatprep.subr.mxu0 0.0
    %1151 = vmatpush1.msra.mxu0 0.0
    %1152 = vmatprep.subr.mxu0 0.0
    %1153 = vmatpush1.msra.mxu0 0.0
    %1154 = vmatprep.subr.mxu0 0.0
    %1155 = vmatpush1.msra.mxu0 0.0
    %1156 = vmatprep.subr.mxu0 0.0
    %1157 = vmatpush1.msra.mxu0 0.0
    %1158 = vmatprep.subr.mxu0 0.0
    %1159 = vmatpush1.msra.mxu0 0.0
    %1160 = vmatprep.subr.mxu0 0.0
    %1161 = vmatpush1.msra.mxu0 0.0
    %1162 = vmatprep.subr.mxu0 0.0
    %1163 = vmatpush1.msra.mxu0 0.0
    %1164 = vmatprep.subr.mxu0 0.0
    %1165 = vmatpush1.msra.mxu0 0.0
    %1166 = vmatprep.subr.mxu0 0.0
    %1167 = vmatpush1.msra.mxu0 0.0
    %1168 = vmatprep.subr.mxu0 0.0
    %1169 = vmatpush1.msra.mxu0 0.0
    %1170 = vmatprep.subr.mxu0 0.0
    %1171 = vmatpush1.msra.mxu0 0.0
    %1172 = vmatprep.subr.mxu0 0.0
    %1173 = vmatpush1.msra.mxu0 0.0
    %1174 = vmatprep.mubr.f32.mxu0 0.0
    %1175 = vmatmul.mubr.f32.gmra.mrb[0].mxu0 %v997
    %v1176 = vpop.f32.mrb[0].mxu0
    %v1177 = vadd.f32 0.0, %v1176
    %v1178 = vpop.f32.mrb[0].mxu0
    %1179 = vdwg.mxu0
    %v1180 = vsel %vm466, %v989, 0
    %1182 = vmatprep.subr.mxu0 0.0
    %1183 = vmatpush1.msra.mxu0 %v558
    %1184 = vmatprep.subr.mxu0 0.0
    %1185 = vmatpush1.msra.mxu0 %v559
    %1186 = vmatprep.subr.mxu0 0.0
    %1187 = vmatpush1.msra.mxu0 %v560
    %1188 = vmatprep.subr.mxu0 0.0
    %1189 = vmatpush1.msra.mxu0 %v561
    %1190 = vmatprep.subr.mxu0 0.0
    %1191 = vmatpush1.msra.mxu0 0.0
    %1192 = vmatprep.subr.mxu0 0.0
    %1193 = vmatpush1.msra.mxu0 0.0
    %1194 = vmatprep.subr.mxu0 0.0
    %1195 = vmatpush1.msra.mxu0 0.0
    %1196 = vmatprep.subr.mxu0 0.0
    %1197 = vmatpush1.msra.mxu0 0.0
    %1198 = vmatprep.subr.mxu0 0.0
    %1199 = vmatpush1.msra.mxu0 0.0
    %1200 = vmatprep.subr.mxu0 0.0
    %1201 = vmatpush1.msra.mxu0 0.0
    %1202 = vmatprep.subr.mxu0 0.0
    %1203 = vmatpush1.msra.mxu0 0.0
    %1204 = vmatprep.subr.mxu0 0.0
    %1205 = vmatpush1.msra.mxu0 0.0
    %1206 = vmatprep.subr.mxu0 0.0
    %1207 = vmatpush1.msra.mxu0 0.0
    %1208 = vmatprep.subr.mxu0 0.0
    %1209 = vmatpush1.msra.mxu0 0.0
    %1210 = vmatprep.subr.mxu0 0.0
    %1211 = vmatpush1.msra.mxu0 0.0
    %1212 = vmatprep.subr.mxu0 0.0
    %1213 = vmatpush1.msra.mxu0 0.0
    %1214 = vmatprep.subr.mxu0 0.0
    %1215 = vmatpush1.msra.mxu0 0.0
    %1216 = vmatprep.subr.mxu0 0.0
    %1217 = vmatpush1.msra.mxu0 0.0
    %1218 = vmatprep.subr.mxu0 0.0
    %1219 = vmatpush1.msra.mxu0 0.0
    %1220 = vmatprep.subr.mxu0 0.0
    %1221 = vmatpush1.msra.mxu0 0.0
    %1222 = vmatprep.subr.mxu0 0.0
    %1223 = vmatpush1.msra.mxu0 0.0
    %1224 = vmatprep.subr.mxu0 0.0
    %1225 = vmatpush1.msra.mxu0 0.0
    %1226 = vmatprep.subr.mxu0 0.0
    %1227 = vmatpush1.msra.mxu0 0.0
    %1228 = vmatprep.subr.mxu0 0.0
    %1229 = vmatpush1.msra.mxu0 0.0
    %1230 = vmatprep.subr.mxu0 0.0
    %1231 = vmatpush1.msra.mxu0 0.0
    %1232 = vmatprep.subr.mxu0 0.0
    %1233 = vmatpush1.msra.mxu0 0.0
    %1234 = vmatprep.subr.mxu0 0.0
    %1235 = vmatpush1.msra.mxu0 0.0
    %1236 = vmatprep.subr.mxu0 0.0
    %1237 = vmatpush1.msra.mxu0 0.0
    %1238 = vmatprep.subr.mxu0 0.0
    %1239 = vmatpush1.msra.mxu0 0.0
    %1240 = vmatprep.subr.mxu0 0.0
    %1241 = vmatpush1.msra.mxu0 0.0
    %1242 = vmatprep.subr.mxu0 0.0
    %1243 = vmatpush1.msra.mxu0 0.0
    %1244 = vmatprep.subr.mxu0 0.0
    %1245 = vmatpush1.msra.mxu0 0.0
    %1246 = vmatprep.mubr.f32.mxu0 0.0
    %1247 = vmatmul.mubr.f32.gmra.mrb[0].mxu0 %v1180
    %v1248 = vpop.f32.mrb[0].mxu0
    %v1249 = vadd.f32 0.0, %v1248
    %v1250 = vpop.f32.mrb[0].mxu0
    %1251 = vdwg.mxu0
    %v1252 = vadd.f32 %v1177, %v1249
    %v1253 = vadd.f32 %v1252, %v564
    %v1254 = vxor.u32 %v1253, 2147483648
    %v1255 = vmul.f32 %v1254, 1.442695
    %v1256 = vpow.pop %v1255
    %v1257 = vadd.f32 %v1256, 1.0
    %v1258 = vrcp.pop %v1257
    %v1259 = vmul.f32 1.0, %v1258
    %v1260 = vadd.f32 %v1177, %v957
    %v1261 = vadd.f32 %v1249, %v962
    %1263 = vrot.lane.b32.xlu0 %v1261, 64
    %v1264 = vpop.permute.xlu0 %1263
    %v1266 = vmul.f32 %v1259, %v1264
    %1268 = vrot.lane.b32.xlu0 %v1266, 64
    %v1269 = vpop.permute.xlu0 %1268
    %v1271 = vadd.f32 %v1260, %v1269
    %v1272 = vtanh.pop %v1271
    %v1273 = vsub.f32 1.0, %v1259
    %1275 = vrot.lane.b32.xlu0 %v1272, 96
    %v1276 = vpop.permute.xlu0 %1275
    %v1278 = vmul.f32 %v1273, %v1276
    %v1279 = vmul.f32 %v1259, %v986
    %v1280 = vadd.f32 %v1278, %v1279
    %1282 = vrot.lane.b32.xlu0 %v1280, 96
    %v1283 = vpop.permute.xlu0 %1282
    %1285 = vst.msk [vmem:[#allocation2 + $0x2] sm:$0x3] %vm991, %v1283
    %v1287 = vrot.slane %v1109, 4
    %1288 = vrot.lane.b32.xlu0 %v1287, 96
    %v1289 = vpop.permute.xlu0 %1288
    %v1290 = vsel %vm466, %v1289, 0
    %1292 = vmatprep.subr.mxu0 0.0
    %1293 = vmatpush1.msra.mxu0 %v553
    %1294 = vmatprep.subr.mxu0 0.0
    %1295 = vmatpush1.msra.mxu0 %v554
    %1296 = vmatprep.subr.mxu0 0.0
    %1297 = vmatpush1.msra.mxu0 %v555
    %1298 = vmatprep.subr.mxu0 0.0
    %1299 = vmatpush1.msra.mxu0 %v556
    %1300 = vmatprep.subr.mxu0 0.0
    %1301 = vmatpush1.msra.mxu0 0.0
    %1302 = vmatprep.subr.mxu0 0.0
    %1303 = vmatpush1.msra.mxu0 0.0
    %1304 = vmatprep.subr.mxu0 0.0
    %1305 = vmatpush1.msra.mxu0 0.0
    %1306 = vmatprep.subr.mxu0 0.0
    %1307 = vmatpush1.msra.mxu0 0.0
    %1308 = vmatprep.subr.mxu0 0.0
    %1309 = vmatpush1.msra.mxu0 0.0
    %1310 = vmatprep.subr.mxu0 0.0
    %1311 = vmatpush1.msra.mxu0 0.0
    %1312 = vmatprep.subr.mxu0 0.0
    %1313 = vmatpush1.msra.mxu0 0.0
    %1314 = vmatprep.subr.mxu0 0.0
    %1315 = vmatpush1.msra.mxu0 0.0
    %1316 = vmatprep.subr.mxu0 0.0
    %1317 = vmatpush1.msra.mxu0 0.0
    %1318 = vmatprep.subr.mxu0 0.0
    %1319 = vmatpush1.msra.mxu0 0.0
    %1320 = vmatprep.subr.mxu0 0.0
    %1321 = vmatpush1.msra.mxu0 0.0
    %1322 = vmatprep.subr.mxu0 0.0
    %1323 = vmatpush1.msra.mxu0 0.0
    %1324 = vmatprep.subr.mxu0 0.0
    %1325 = vmatpush1.msra.mxu0 0.0
    %1326 = vmatprep.subr.mxu0 0.0
    %1327 = vmatpush1.msra.mxu0 0.0
    %1328 = vmatprep.subr.mxu0 0.0
    %1329 = vmatpush1.msra.mxu0 0.0
    %1330 = vmatprep.subr.mxu0 0.0
    %1331 = vmatpush1.msra.mxu0 0.0
    %1332 = vmatprep.subr.mxu0 0.0
    %1333 = vmatpush1.msra.mxu0 0.0
    %1334 = vmatprep.subr.mxu0 0.0
    %1335 = vmatpush1.msra.mxu0 0.0
    %1336 = vmatprep.subr.mxu0 0.0
    %1337 = vmatpush1.msra.mxu0 0.0
    %1338 = vmatprep.subr.mxu0 0.0
    %1339 = vmatpush1.msra.mxu0 0.0
    %1340 = vmatprep.subr.mxu0 0.0
    %1341 = vmatpush1.msra.mxu0 0.0
    %1342 = vmatprep.subr.mxu0 0.0
    %1343 = vmatpush1.msra.mxu0 0.0
    %1344 = vmatprep.subr.mxu0 0.0
    %1345 = vmatpush1.msra.mxu0 0.0
    %1346 = vmatprep.subr.mxu0 0.0
    %1347 = vmatpush1.msra.mxu0 0.0
    %1348 = vmatprep.subr.mxu0 0.0
    %1349 = vmatpush1.msra.mxu0 0.0
    %1350 = vmatprep.subr.mxu0 0.0
    %1351 = vmatpush1.msra.mxu0 0.0
    %1352 = vmatprep.subr.mxu0 0.0
    %1353 = vmatpush1.msra.mxu0 0.0
    %1354 = vmatprep.subr.mxu0 0.0
    %1355 = vmatpush1.msra.mxu0 0.0
    %1356 = vmatprep.mubr.f32.mxu0 0.0
    %1357 = vmatmul.mubr.f32.gmra.mrb[0].mxu0 %v1290
    %v1358 = vpop.f32.mrb[0].mxu0
    %v1359 = vadd.f32 0.0, %v1358
    %v1360 = vpop.f32.mrb[0].mxu0
    %1361 = vdwg.mxu0
    %v1363 = vrot.slane %v1359, 2
    %v1365 = vadd.f32 %v540, %v1363
    %v1366 = vrot.slane %v562, 2
    %v1368 = vadd.f32 %v1365, %v1366
    %v1369 = vxor.u32 %v1368, 2147483648
    %v1370 = vmul.f32 %v1369, 1.442695
    %v1371 = vpow.pop %v1370
    %v1372 = vadd.f32 %v1371, 1.0
    %v1373 = vrcp.pop %v1372
    %v1374 = vmul.f32 1.0, %v1373
    %v1375 = vrot.slane %v565, 2
    %1376 = vrot.lane.b32.xlu0 %v1375, 64
    %v1377 = vpop.permute.xlu0 %1376
    %v1379 = vadd.f32 %v540, %v1377
    %v1380 = vadd.f32 %v1359, %v662
    %v1382 = vrot.slane %v1380, 2
    %1383 = vrot.lane.b32.xlu0 %v1382, 64
    %v1384 = vpop.permute.xlu0 %1383
    %v1386 = vmul.f32 %v1374, %v1384
    %1388 = vrot.lane.b32.xlu0 %v1386, 64
    %v1389 = vpop.permute.xlu0 %1388
    %v1391 = vadd.f32 %v1379, %v1389
    %v1392 = vtanh.pop %v1391
    %v1393 = vsub.f32 1.0, %v1374
    %1395 = vrot.lane.b32.xlu0 %v1392, 96
    %v1396 = vpop.permute.xlu0 %1395
    %v1398 = vmul.f32 %v1393, %v1396
    %v1399 = vrot.slane %v1109, 6
    %v1401 = vmul.f32 %v1374, %v1399
    %v1402 = vadd.f32 %v1398, %v1401
    %1403 = vmatprep.subr.mxu0 0.0
    %1404 = vmatpush1.msra.mxu0 %v549
    %1405 = vmatprep.subr.mxu0 0.0
    %1406 = vmatpush1.msra.mxu0 %v550
    %1407 = vmatprep.subr.mxu0 0.0
    %1408 = vmatpush1.msra.mxu0 %v551
    %1409 = vmatprep.subr.mxu0 0.0
    %1410 = vmatpush1.msra.mxu0 %v552
    %1411 = vmatprep.subr.mxu0 0.0
    %1412 = vmatpush1.msra.mxu0 0.0
    %1413 = vmatprep.subr.mxu0 0.0
    %1414 = vmatpush1.msra.mxu0 0.0
    %1415 = vmatprep.subr.mxu0 0.0
    %1416 = vmatpush1.msra.mxu0 0.0
    %1417 = vmatprep.subr.mxu0 0.0
    %1418 = vmatpush1.msra.mxu0 0.0
    %1419 = vmatprep.subr.mxu0 0.0
    %1420 = vmatpush1.msra.mxu0 0.0
    %1421 = vmatprep.subr.mxu0 0.0
    %1422 = vmatpush1.msra.mxu0 0.0
    %1423 = vmatprep.subr.mxu0 0.0
    %1424 = vmatpush1.msra.mxu0 0.0
    %1425 = vmatprep.subr.mxu0 0.0
    %1426 = vmatpush1.msra.mxu0 0.0
    %1427 = vmatprep.subr.mxu0 0.0
    %1428 = vmatpush1.msra.mxu0 0.0
    %1429 = vmatprep.subr.mxu0 0.0
    %1430 = vmatpush1.msra.mxu0 0.0
    %1431 = vmatprep.subr.mxu0 0.0
    %1432 = vmatpush1.msra.mxu0 0.0
    %1433 = vmatprep.subr.mxu0 0.0
    %1434 = vmatpush1.msra.mxu0 0.0
    %1435 = vmatprep.subr.mxu0 0.0
    %1436 = vmatpush1.msra.mxu0 0.0
    %1437 = vmatprep.subr.mxu0 0.0
    %1438 = vmatpush1.msra.mxu0 0.0
    %1439 = vmatprep.subr.mxu0 0.0
    %1440 = vmatpush1.msra.mxu0 0.0
    %1441 = vmatprep.subr.mxu0 0.0
    %1442 = vmatpush1.msra.mxu0 0.0
    %1443 = vmatprep.subr.mxu0 0.0
    %1444 = vmatpush1.msra.mxu0 0.0
    %1445 = vmatprep.subr.mxu0 0.0
    %1446 = vmatpush1.msra.mxu0 0.0
    %1447 = vmatprep.subr.mxu0 0.0
    %1448 = vmatpush1.msra.mxu0 0.0
    %1449 = vmatprep.subr.mxu0 0.0
    %1450 = vmatpush1.msra.mxu0 0.0
    %1451 = vmatprep.subr.mxu0 0.0
    %1452 = vmatpush1.msra.mxu0 0.0
    %1453 = vmatprep.subr.mxu0 0.0
    %1454 = vmatpush1.msra.mxu0 0.0
    %1455 = vmatprep.subr.mxu0 0.0
    %1456 = vmatpush1.msra.mxu0 0.0
    %1457 = vmatprep.subr.mxu0 0.0
    %1458 = vmatpush1.msra.mxu0 0.0
    %1459 = vmatprep.subr.mxu0 0.0
    %1460 = vmatpush1.msra.mxu0 0.0
    %1461 = vmatprep.subr.mxu0 0.0
    %1462 = vmatpush1.msra.mxu0 0.0
    %1463 = vmatprep.subr.mxu0 0.0
    %1464 = vmatpush1.msra.mxu0 0.0
    %1465 = vmatprep.subr.mxu0 0.0
    %1466 = vmatpush1.msra.mxu0 0.0
    %1467 = vmatprep.mubr.f32.mxu0 0.0
    %1468 = vmatmul.mubr.f32.gmra.mrb[0].mxu0 %v1290
    %v1469 = vpop.f32.mrb[0].mxu0
    %v1470 = vadd.f32 0.0, %v1469
    %v1471 = vpop.f32.mrb[0].mxu0
    %1472 = vdwg.mxu0
    %v1473 = vsel %vm466, %v1283, 0
    %1475 = vmatprep.subr.mxu0 0.0
    %1476 = vmatpush1.msra.mxu0 %v558
    %1477 = vmatprep.subr.mxu0 0.0
    %1478 = vmatpush1.msra.mxu0 %v559
    %1479 = vmatprep.subr.mxu0 0.0
    %1480 = vmatpush1.msra.mxu0 %v560
    %1481 = vmatprep.subr.mxu0 0.0
    %1482 = vmatpush1.msra.mxu0 %v561
    %1483 = vmatprep.subr.mxu0 0.0
    %1484 = vmatpush1.msra.mxu0 0.0
    %1485 = vmatprep.subr.mxu0 0.0
    %1486 = vmatpush1.msra.mxu0 0.0
    %1487 = vmatprep.subr.mxu0 0.0
    %1488 = vmatpush1.msra.mxu0 0.0
    %1489 = vmatprep.subr.mxu0 0.0
    %1490 = vmatpush1.msra.mxu0 0.0
    %1491 = vmatprep.subr.mxu0 0.0
    %1492 = vmatpush1.msra.mxu0 0.0
    %1493 = vmatprep.subr.mxu0 0.0
    %1494 = vmatpush1.msra.mxu0 0.0
    %1495 = vmatprep.subr.mxu0 0.0
    %1496 = vmatpush1.msra.mxu0 0.0
    %1497 = vmatprep.subr.mxu0 0.0
    %1498 = vmatpush1.msra.mxu0 0.0
    %1499 = vmatprep.subr.mxu0 0.0
    %1500 = vmatpush1.msra.mxu0 0.0
    %1501 = vmatprep.subr.mxu0 0.0
    %1502 = vmatpush1.msra.mxu0 0.0
    %1503 = vmatprep.subr.mxu0 0.0
    %1504 = vmatpush1.msra.mxu0 0.0
    %1505 = vmatprep.subr.mxu0 0.0
    %1506 = vmatpush1.msra.mxu0 0.0
    %1507 = vmatprep.subr.mxu0 0.0
    %1508 = vmatpush1.msra.mxu0 0.0
    %1509 = vmatprep.subr.mxu0 0.0
    %1510 = vmatpush1.msra.mxu0 0.0
    %1511 = vmatprep.subr.mxu0 0.0
    %1512 = vmatpush1.msra.mxu0 0.0
    %1513 = vmatprep.subr.mxu0 0.0
    %1514 = vmatpush1.msra.mxu0 0.0
    %1515 = vmatprep.subr.mxu0 0.0
    %1516 = vmatpush1.msra.mxu0 0.0
    %1517 = vmatprep.subr.mxu0 0.0
    %1518 = vmatpush1.msra.mxu0 0.0
    %1519 = vmatprep.subr.mxu0 0.0
    %1520 = vmatpush1.msra.mxu0 0.0
    %1521 = vmatprep.subr.mxu0 0.0
    %1522 = vmatpush1.msra.mxu0 0.0
    %1523 = vmatprep.subr.mxu0 0.0
    %1524 = vmatpush1.msra.mxu0 0.0
    %1525 = vmatprep.subr.mxu0 0.0
    %1526 = vmatpush1.msra.mxu0 0.0
    %1527 = vmatprep.subr.mxu0 0.0
    %1528 = vmatpush1.msra.mxu0 0.0
    %1529 = vmatprep.subr.mxu0 0.0
    %1530 = vmatpush1.msra.mxu0 0.0
    %1531 = vmatprep.subr.mxu0 0.0
    %1532 = vmatpush1.msra.mxu0 0.0
    %1533 = vmatprep.subr.mxu0 0.0
    %1534 = vmatpush1.msra.mxu0 0.0
    %1535 = vmatprep.subr.mxu0 0.0
    %1536 = vmatpush1.msra.mxu0 0.0
    %1537 = vmatprep.subr.mxu0 0.0
    %1538 = vmatpush1.msra.mxu0 0.0
    %1539 = vmatprep.mubr.f32.mxu0 0.0
    %1540 = vmatmul.mubr.f32.gmra.mrb[0].mxu0 %v1473
    %v1541 = vpop.f32.mrb[0].mxu0
    %v1542 = vadd.f32 0.0, %v1541
    %v1543 = vpop.f32.mrb[0].mxu0
    %1544 = vdwg.mxu0
    %v1545 = vadd.f32 %v1470, %v1542
    %v1546 = vadd.f32 %v1545, %v564
    %v1547 = vxor.u32 %v1546, 2147483648
    %v1548 = vmul.f32 %v1547, 1.442695
    %v1549 = vpow.pop %v1548
    %v1550 = vadd.f32 %v1549, 1.0
    %v1551 = vrcp.pop %v1550
    %v1552 = vmul.f32 1.0, %v1551
    %v1553 = vadd.f32 %v1470, %v957
    %v1554 = vadd.f32 %v1542, %v962
    %1556 = vrot.lane.b32.xlu0 %v1554, 64
    %v1557 = vpop.permute.xlu0 %1556
    %v1559 = vmul.f32 %v1552, %v1557
    %1561 = vrot.lane.b32.xlu0 %v1559, 64
    %v1562 = vpop.permute.xlu0 %1561
    %v1564 = vadd.f32 %v1553, %v1562
    %v1565 = vtanh.pop %v1564
    %v1566 = vsub.f32 1.0, %v1552
    %1568 = vrot.lane.b32.xlu0 %v1565, 96
    %v1569 = vpop.permute.xlu0 %1568
    %v1571 = vmul.f32 %v1566, %v1569
    %v1572 = vmul.f32 %v1552, %v1280
    %v1573 = vadd.f32 %v1571, %v1572
    %1575 = vrot.lane.b32.xlu0 %v1573, 96
    %v1576 = vpop.permute.xlu0 %1575
    %1578 = vst.msk [vmem:[#allocation2 + $0x4] sm:$0x3] %vm991, %v1576
    %v1580 = vrot.slane %v1402, 6
    %1581 = vrot.lane.b32.xlu0 %v1580, 96
    %v1582 = vpop.permute.xlu0 %1581
    %v1583 = vsel %vm466, %v1582, 0
    %1585 = vmatprep.subr.mxu0 0.0
    %1586 = vmatpush1.msra.mxu0 %v553
    %1587 = vmatprep.subr.mxu0 0.0
    %1588 = vmatpush1.msra.mxu0 %v554
    %1589 = vmatprep.subr.mxu0 0.0
    %1590 = vmatpush1.msra.mxu0 %v555
    %1591 = vmatprep.subr.mxu0 0.0
    %1592 = vmatpush1.msra.mxu0 %v556
    %1593 = vmatprep.subr.mxu0 0.0
    %1594 = vmatpush1.msra.mxu0 0.0
    %1595 = vmatprep.subr.mxu0 0.0
    %1596 = vmatpush1.msra.mxu0 0.0
    %1597 = vmatprep.subr.mxu0 0.0
    %1598 = vmatpush1.msra.mxu0 0.0
    %1599 = vmatprep.subr.mxu0 0.0
    %1600 = vmatpush1.msra.mxu0 0.0
    %1601 = vmatprep.subr.mxu0 0.0
    %1602 = vmatpush1.msra.mxu0 0.0
    %1603 = vmatprep.subr.mxu0 0.0
    %1604 = vmatpush1.msra.mxu0 0.0
    %1605 = vmatprep.subr.mxu0 0.0
    %1606 = vmatpush1.msra.mxu0 0.0
    %1607 = vmatprep.subr.mxu0 0.0
    %1608 = vmatpush1.msra.mxu0 0.0
    %1609 = vmatprep.subr.mxu0 0.0
    %1610 = vmatpush1.msra.mxu0 0.0
    %1611 = vmatprep.subr.mxu0 0.0
    %1612 = vmatpush1.msra.mxu0 0.0
    %1613 = vmatprep.subr.mxu0 0.0
    %1614 = vmatpush1.msra.mxu0 0.0
    %1615 = vmatprep.subr.mxu0 0.0
    %1616 = vmatpush1.msra.mxu0 0.0
    %1617 = vmatprep.subr.mxu0 0.0
    %1618 = vmatpush1.msra.mxu0 0.0
    %1619 = vmatprep.subr.mxu0 0.0
    %1620 = vmatpush1.msra.mxu0 0.0
    %1621 = vmatprep.subr.mxu0 0.0
    %1622 = vmatpush1.msra.mxu0 0.0
    %1623 = vmatprep.subr.mxu0 0.0
    %1624 = vmatpush1.msra.mxu0 0.0
    %1625 = vmatprep.subr.mxu0 0.0
    %1626 = vmatpush1.msra.mxu0 0.0
    %1627 = vmatprep.subr.mxu0 0.0
    %1628 = vmatpush1.msra.mxu0 0.0
    %1629 = vmatprep.subr.mxu0 0.0
    %1630 = vmatpush1.msra.mxu0 0.0
    %1631 = vmatprep.subr.mxu0 0.0
    %1632 = vmatpush1.msra.mxu0 0.0
    %1633 = vmatprep.subr.mxu0 0.0
    %1634 = vmatpush1.msra.mxu0 0.0
    %1635 = vmatprep.subr.mxu0 0.0
    %1636 = vmatpush1.msra.mxu0 0.0
    %1637 = vmatprep.subr.mxu0 0.0
    %1638 = vmatpush1.msra.mxu0 0.0
    %1639 = vmatprep.subr.mxu0 0.0
    %1640 = vmatpush1.msra.mxu0 0.0
    %1641 = vmatprep.subr.mxu0 0.0
    %1642 = vmatpush1.msra.mxu0 0.0
    %1643 = vmatprep.subr.mxu0 0.0
    %1644 = vmatpush1.msra.mxu0 0.0
    %1645 = vmatprep.subr.mxu0 0.0
    %1646 = vmatpush1.msra.mxu0 0.0
    %1647 = vmatprep.subr.mxu0 0.0
    %1648 = vmatpush1.msra.mxu0 0.0
    %1649 = vmatprep.mubr.f32.mxu0 0.0
    %1650 = vmatmul.mubr.f32.gmra.mrb[0].mxu0 %v1583
    %v1651 = vpop.f32.mrb[0].mxu0
    %v1652 = vadd.f32 0.0, %v1651
    %v1653 = vpop.f32.mrb[0].mxu0
    %1654 = vdwg.mxu0
    %v1655 = vadd.f32 %v545, %v1652
    %v1656 = vadd.f32 %v1655, %v562
    %v1657 = vxor.u32 %v1656, 2147483648
    %v1658 = vmul.f32 %v1657, 1.442695
    %v1659 = vpow.pop %v1658
    %v1660 = vadd.f32 %v1659, 1.0
    %v1661 = vrcp.pop %v1660
    %v1662 = vmul.f32 1.0, %v1661
    %v1663 = vadd.f32 %v545, %v657
    %v1664 = vadd.f32 %v1652, %v662
    %1666 = vrot.lane.b32.xlu0 %v1664, 64
    %v1667 = vpop.permute.xlu0 %1666
    %v1669 = vmul.f32 %v1662, %v1667
    %1671 = vrot.lane.b32.xlu0 %v1669, 64
    %v1672 = vpop.permute.xlu0 %1671
    %v1674 = vadd.f32 %v1663, %v1672
    %v1675 = vtanh.pop %v1674
    %v1676 = vsub.f32 1.0, %v1662
    %1678 = vrot.lane.b32.xlu0 %v1675, 96
    %v1679 = vpop.permute.xlu0 %1678
    %v1681 = vmul.f32 %v1676, %v1679
    %v1683 = vmul.f32 %v1662, %v1580
    %v1684 = vadd.f32 %v1681, %v1683
    %1685 = vmatprep.subr.mxu0 0.0
    %1686 = vmatpush1.msra.mxu0 %v549
    %1687 = vmatprep.subr.mxu0 0.0
    %1688 = vmatpush1.msra.mxu0 %v550
    %1689 = vmatprep.subr.mxu0 0.0
    %1690 = vmatpush1.msra.mxu0 %v551
    %1691 = vmatprep.subr.mxu0 0.0
    %1692 = vmatpush1.msra.mxu0 %v552
    %1693 = vmatprep.subr.mxu0 0.0
    %1694 = vmatpush1.msra.mxu0 0.0
    %1695 = vmatprep.subr.mxu0 0.0
    %1696 = vmatpush1.msra.mxu0 0.0
    %1697 = vmatprep.subr.mxu0 0.0
    %1698 = vmatpush1.msra.mxu0 0.0
    %1699 = vmatprep.subr.mxu0 0.0
    %1700 = vmatpush1.msra.mxu0 0.0
    %1701 = vmatprep.subr.mxu0 0.0
    %1702 = vmatpush1.msra.mxu0 0.0
    %1703 = vmatprep.subr.mxu0 0.0
    %1704 = vmatpush1.msra.mxu0 0.0
    %1705 = vmatprep.subr.mxu0 0.0
    %1706 = vmatpush1.msra.mxu0 0.0
    %1707 = vmatprep.subr.mxu0 0.0
    %1708 = vmatpush1.msra.mxu0 0.0
    %1709 = vmatprep.subr.mxu0 0.0
    %1710 = vmatpush1.msra.mxu0 0.0
    %1711 = vmatprep.subr.mxu0 0.0
    %1712 = vmatpush1.msra.mxu0 0.0
    %1713 = vmatprep.subr.mxu0 0.0
    %1714 = vmatpush1.msra.mxu0 0.0
    %1715 = vmatprep.subr.mxu0 0.0
    %1716 = vmatpush1.msra.mxu0 0.0
    %1717 = vmatprep.subr.mxu0 0.0
    %1718 = vmatpush1.msra.mxu0 0.0
    %1719 = vmatprep.subr.mxu0 0.0
    %1720 = vmatpush1.msra.mxu0 0.0
    %1721 = vmatprep.subr.mxu0 0.0
    %1722 = vmatpush1.msra.mxu0 0.0
    %1723 = vmatprep.subr.mxu0 0.0
    %1724 = vmatpush1.msra.mxu0 0.0
    %1725 = vmatprep.subr.mxu0 0.0
    %1726 = vmatpush1.msra.mxu0 0.0
    %1727 = vmatprep.subr.mxu0 0.0
    %1728 = vmatpush1.msra.mxu0 0.0
    %1729 = vmatprep.subr.mxu0 0.0
    %1730 = vmatpush1.msra.mxu0 0.0
    %1731 = vmatprep.subr.mxu0 0.0
    %1732 = vmatpush1.msra.mxu0 0.0
    %1733 = vmatprep.subr.mxu0 0.0
    %1734 = vmatpush1.msra.mxu0 0.0
    %1735 = vmatprep.subr.mxu0 0.0
    %1736 = vmatpush1.msra.mxu0 0.0
    %1737 = vmatprep.subr.mxu0 0.0
    %1738 = vmatpush1.msra.mxu0 0.0
    %1739 = vmatprep.subr.mxu0 0.0
    %1740 = vmatpush1.msra.mxu0 0.0
    %1741 = vmatprep.subr.mxu0 0.0
    %1742 = vmatpush1.msra.mxu0 0.0
    %1743 = vmatprep.subr.mxu0 0.0
    %1744 = vmatpush1.msra.mxu0 0.0
    %1745 = vmatprep.subr.mxu0 0.0
    %1746 = vmatpush1.msra.mxu0 0.0
    %1747 = vmatprep.subr.mxu0 0.0
    %1748 = vmatpush1.msra.mxu0 0.0
    %1749 = vmatprep.mubr.f32.mxu0 0.0
    %1750 = vmatmul.mubr.f32.gmra.mrb[0].mxu0 %v1583
    %v1751 = vpop.f32.mrb[0].mxu0
    %v1752 = vadd.f32 0.0, %v1751
    %v1753 = vpop.f32.mrb[0].mxu0
    %1754 = vdwg.mxu0
    %v1755 = vsel %vm466, %v1576, 0
    %1757 = vmatprep.subr.mxu0 0.0
    %1758 = vmatpush1.msra.mxu0 %v558
    %1759 = vmatprep.subr.mxu0 0.0
    %1760 = vmatpush1.msra.mxu0 %v559
    %1761 = vmatprep.subr.mxu0 0.0
    %1762 = vmatpush1.msra.mxu0 %v560
    %1763 = vmatprep.subr.mxu0 0.0
    %1764 = vmatpush1.msra.mxu0 %v561
    %1765 = vmatprep.subr.mxu0 0.0
    %1766 = vmatpush1.msra.mxu0 0.0
    %1767 = vmatprep.subr.mxu0 0.0
    %1768 = vmatpush1.msra.mxu0 0.0
    %1769 = vmatprep.subr.mxu0 0.0
    %1770 = vmatpush1.msra.mxu0 0.0
    %1771 = vmatprep.subr.mxu0 0.0
    %1772 = vmatpush1.msra.mxu0 0.0
    %1773 = vmatprep.subr.mxu0 0.0
    %1774 = vmatpush1.msra.mxu0 0.0
    %1775 = vmatprep.subr.mxu0 0.0
    %1776 = vmatpush1.msra.mxu0 0.0
    %1777 = vmatprep.subr.mxu0 0.0
    %1778 = vmatpush1.msra.mxu0 0.0
    %1779 = vmatprep.subr.mxu0 0.0
    %1780 = vmatpush1.msra.mxu0 0.0
    %1781 = vmatprep.subr.mxu0 0.0
    %1782 = vmatpush1.msra.mxu0 0.0
    %1783 = vmatprep.subr.mxu0 0.0
    %1784 = vmatpush1.msra.mxu0 0.0
    %1785 = vmatprep.subr.mxu0 0.0
    %1786 = vmatpush1.msra.mxu0 0.0
    %1787 = vmatprep.subr.mxu0 0.0
    %1788 = vmatpush1.msra.mxu0 0.0
    %1789 = vmatprep.subr.mxu0 0.0
    %1790 = vmatpush1.msra.mxu0 0.0
    %1791 = vmatprep.subr.mxu0 0.0
    %1792 = vmatpush1.msra.mxu0 0.0
    %1793 = vmatprep.subr.mxu0 0.0
    %1794 = vmatpush1.msra.mxu0 0.0
    %1795 = vmatprep.subr.mxu0 0.0
    %1796 = vmatpush1.msra.mxu0 0.0
    %1797 = vmatprep.subr.mxu0 0.0
    %1798 = vmatpush1.msra.mxu0 0.0
    %1799 = vmatprep.subr.mxu0 0.0
    %1800 = vmatpush1.msra.mxu0 0.0
    %1801 = vmatprep.subr.mxu0 0.0
    %1802 = vmatpush1.msra.mxu0 0.0
    %1803 = vmatprep.subr.mxu0 0.0
    %1804 = vmatpush1.msra.mxu0 0.0
    %1805 = vmatprep.subr.mxu0 0.0
    %1806 = vmatpush1.msra.mxu0 0.0
    %1807 = vmatprep.subr.mxu0 0.0
    %1808 = vmatpush1.msra.mxu0 0.0
    %1809 = vmatprep.subr.mxu0 0.0
    %1810 = vmatpush1.msra.mxu0 0.0
    %1811 = vmatprep.subr.mxu0 0.0
    %1812 = vmatpush1.msra.mxu0 0.0
    %1813 = vmatprep.subr.mxu0 0.0
    %1814 = vmatpush1.msra.mxu0 0.0
    %1815 = vmatprep.subr.mxu0 0.0
    %1816 = vmatpush1.msra.mxu0 0.0
    %1817 = vmatprep.subr.mxu0 0.0
    %1818 = vmatpush1.msra.mxu0 0.0
    %1819 = vmatprep.subr.mxu0 0.0
    %1820 = vmatpush1.msra.mxu0 0.0
    %1821 = vmatprep.mubr.f32.mxu0 0.0
    %1822 = vmatmul.mubr.f32.gmra.mrb[0].mxu0 %v1755
    %v1823 = vpop.f32.mrb[0].mxu0
    %v1824 = vadd.f32 0.0, %v1823
    %v1825 = vpop.f32.mrb[0].mxu0
    %1826 = vdwg.mxu0
    %v1827 = vadd.f32 %v1752, %v1824
    %v1828 = vadd.f32 %v1827, %v564
    %v1829 = vxor.u32 %v1828, 2147483648
    %v1830 = vmul.f32 %v1829, 1.442695
    %v1831 = vpow.pop %v1830
    %v1832 = vadd.f32 %v1831, 1.0
    %v1833 = vrcp.pop %v1832
    %v1834 = vmul.f32 1.0, %v1833
    %v1835 = vadd.f32 %v1752, %v957
    %v1836 = vadd.f32 %v1824, %v962
    %1838 = vrot.lane.b32.xlu0 %v1836, 64
    %v1839 = vpop.permute.xlu0 %1838
    %v1841 = vmul.f32 %v1834, %v1839
    %1843 = vrot.lane.b32.xlu0 %v1841, 64
    %v1844 = vpop.permute.xlu0 %1843
    %v1846 = vadd.f32 %v1835, %v1844
    %v1847 = vtanh.pop %v1846
    %v1848 = vsub.f32 1.0, %v1834
    %1850 = vrot.lane.b32.xlu0 %v1847, 96
    %v1851 = vpop.permute.xlu0 %1850
    %v1853 = vmul.f32 %v1848, %v1851
    %v1854 = vmul.f32 %v1834, %v1573
    %v1855 = vadd.f32 %v1853, %v1854
    %1857 = vrot.lane.b32.xlu0 %v1855, 96
    %v1858 = vpop.permute.xlu0 %1857
    %1860 = vst.msk [vmem:[#allocation2 + $0x6] sm:$0x3] %vm991, %v1858
    %1862 = vrot.lane.b32.xlu0 %v1684, 96
    %v1863 = vpop.permute.xlu0 %1862
    %v1864 = vsel %vm466, %v1863, 0
    %1866 = vmatprep.subr.mxu0 0.0
    %1867 = vmatpush1.msra.mxu0 %v553
    %1868 = vmatprep.subr.mxu0 0.0
    %1869 = vmatpush1.msra.mxu0 %v554
    %1870 = vmatprep.subr.mxu0 0.0
    %1871 = vmatpush1.msra.mxu0 %v555
    %1872 = vmatprep.subr.mxu0 0.0
    %1873 = vmatpush1.msra.mxu0 %v556
    %1874 = vmatprep.subr.mxu0 0.0
    %1875 = vmatpush1.msra.mxu0 0.0
    %1876 = vmatprep.subr.mxu0 0.0
    %1877 = vmatpush1.msra.mxu0 0.0
    %1878 = vmatprep.subr.mxu0 0.0
    %1879 = vmatpush1.msra.mxu0 0.0
    %1880 = vmatprep.subr.mxu0 0.0
    %1881 = vmatpush1.msra.mxu0 0.0
    %1882 = vmatprep.subr.mxu0 0.0
    %1883 = vmatpush1.msra.mxu0 0.0
    %1884 = vmatprep.subr.mxu0 0.0
    %1885 = vmatpush1.msra.mxu0 0.0
    %1886 = vmatprep.subr.mxu0 0.0
    %1887 = vmatpush1.msra.mxu0 0.0
    %1888 = vmatprep.subr.mxu0 0.0
    %1889 = vmatpush1.msra.mxu0 0.0
    %1890 = vmatprep.subr.mxu0 0.0
    %1891 = vmatpush1.msra.mxu0 0.0
    %1892 = vmatprep.subr.mxu0 0.0
    %1893 = vmatpush1.msra.mxu0 0.0
    %1894 = vmatprep.subr.mxu0 0.0
    %1895 = vmatpush1.msra.mxu0 0.0
    %1896 = vmatprep.subr.mxu0 0.0
    %1897 = vmatpush1.msra.mxu0 0.0
    %1898 = vmatprep.subr.mxu0 0.0
    %1899 = vmatpush1.msra.mxu0 0.0
    %1900 = vmatprep.subr.mxu0 0.0
    %1901 = vmatpush1.msra.mxu0 0.0
    %1902 = vmatprep.subr.mxu0 0.0
    %1903 = vmatpush1.msra.mxu0 0.0
    %1904 = vmatprep.subr.mxu0 0.0
    %1905 = vmatpush1.msra.mxu0 0.0
    %1906 = vmatprep.subr.mxu0 0.0
    %1907 = vmatpush1.msra.mxu0 0.0
    %1908 = vmatprep.subr.mxu0 0.0
    %1909 = vmatpush1.msra.mxu0 0.0
    %1910 = vmatprep.subr.mxu0 0.0
    %1911 = vmatpush1.msra.mxu0 0.0
    %1912 = vmatprep.subr.mxu0 0.0
    %1913 = vmatpush1.msra.mxu0 0.0
    %1914 = vmatprep.subr.mxu0 0.0
    %1915 = vmatpush1.msra.mxu0 0.0
    %1916 = vmatprep.subr.mxu0 0.0
    %1917 = vmatpush1.msra.mxu0 0.0
    %1918 = vmatprep.subr.mxu0 0.0
    %1919 = vmatpush1.msra.mxu0 0.0
    %1920 = vmatprep.subr.mxu0 0.0
    %1921 = vmatpush1.msra.mxu0 0.0
    %1922 = vmatprep.subr.mxu0 0.0
    %1923 = vmatpush1.msra.mxu0 0.0
    %1924 = vmatprep.subr.mxu0 0.0
    %1925 = vmatpush1.msra.mxu0 0.0
    %1926 = vmatprep.subr.mxu0 0.0
    %1927 = vmatpush1.msra.mxu0 0.0
    %1928 = vmatprep.subr.mxu0 0.0
    %1929 = vmatpush1.msra.mxu0 0.0
    %1930 = vmatprep.mubr.f32.mxu0 0.0
    %1931 = vmatmul.mubr.f32.gmra.mrb[0].mxu0 %v1864
    %v1932 = vpop.f32.mrb[0].mxu0
    %v1933 = vadd.f32 0.0, %v1932
    %v1934 = vpop.f32.mrb[0].mxu0
    %1935 = vdwg.mxu0
    %v1937 = vrot.slane %v1933, 6
    %v1939 = vadd.f32 %v545, %v1937
    %v1940 = vadd.f32 %v1939, %v767
    %v1941 = vxor.u32 %v1940, 2147483648
    %v1942 = vmul.f32 %v1941, 1.442695
    %v1943 = vpow.pop %v1942
    %v1944 = vadd.f32 %v1943, 1.0
    %v1945 = vrcp.pop %v1944
    %v1946 = vmul.f32 1.0, %v1945
    %v1947 = vadd.f32 %v545, %v778
    %v1948 = vadd.f32 %v1933, %v662
    %v1950 = vrot.slane %v1948, 6
    %1951 = vrot.lane.b32.xlu0 %v1950, 64
    %v1952 = vpop.permute.xlu0 %1951
    %v1954 = vmul.f32 %v1946, %v1952
    %1956 = vrot.lane.b32.xlu0 %v1954, 64
    %v1957 = vpop.permute.xlu0 %1956
    %v1959 = vadd.f32 %v1947, %v1957
    %v1960 = vtanh.pop %v1959
    %v1961 = vsub.f32 1.0, %v1946
    %1963 = vrot.lane.b32.xlu0 %v1960, 96
    %v1964 = vpop.permute.xlu0 %1963
    %v1966 = vmul.f32 %v1961, %v1964
    %v1967 = vrot.slane %v1684, 6
    %v1969 = vmul.f32 %v1946, %v1967
    %v1970 = vadd.f32 %v1966, %v1969
    %1971 = vmatprep.subr.mxu0 0.0
    %1972 = vmatpush1.msra.mxu0 %v549
    %1973 = vmatprep.subr.mxu0 0.0
    %1974 = vmatpush1.msra.mxu0 %v550
    %1975 = vmatprep.subr.mxu0 0.0
    %1976 = vmatpush1.msra.mxu0 %v551
    %1977 = vmatprep.subr.mxu0 0.0
    %1978 = vmatpush1.msra.mxu0 %v552
    %1979 = vmatprep.subr.mxu0 0.0
    %1980 = vmatpush1.msra.mxu0 0.0
    %1981 = vmatprep.subr.mxu0 0.0
    %1982 = vmatpush1.msra.mxu0 0.0
    %1983 = vmatprep.subr.mxu0 0.0
    %1984 = vmatpush1.msra.mxu0 0.0
    %1985 = vmatprep.subr.mxu0 0.0
    %1986 = vmatpush1.msra.mxu0 0.0
    %1987 = vmatprep.subr.mxu0 0.0
    %1988 = vmatpush1.msra.mxu0 0.0
    %1989 = vmatprep.subr.mxu0 0.0
    %1990 = vmatpush1.msra.mxu0 0.0
    %1991 = vmatprep.subr.mxu0 0.0
    %1992 = vmatpush1.msra.mxu0 0.0
    %1993 = vmatprep.subr.mxu0 0.0
    %1994 = vmatpush1.msra.mxu0 0.0
    %1995 = vmatprep.subr.mxu0 0.0
    %1996 = vmatpush1.msra.mxu0 0.0
    %1997 = vmatprep.subr.mxu0 0.0
    %1998 = vmatpush1.msra.mxu0 0.0
    %1999 = vmatprep.subr.mxu0 0.0
    %2000 = vmatpush1.msra.mxu0 0.0
    %2001 = vmatprep.subr.mxu0 0.0
    %2002 = vmatpush1.msra.mxu0 0.0
    %2003 = vmatprep.subr.mxu0 0.0
    %2004 = vmatpush1.msra.mxu0 0.0
    %2005 = vmatprep.subr.mxu0 0.0
    %2006 = vmatpush1.msra.mxu0 0.0
    %2007 = vmatprep.subr.mxu0 0.0
    %2008 = vmatpush1.msra.mxu0 0.0
    %2009 = vmatprep.subr.mxu0 0.0
    %2010 = vmatpush1.msra.mxu0 0.0
    %2011 = vmatprep.subr.mxu0 0.0
    %2012 = vmatpush1.msra.mxu0 0.0
    %2013 = vmatprep.subr.mxu0 0.0
    %2014 = vmatpush1.msra.mxu0 0.0
    %2015 = vmatprep.subr.mxu0 0.0
    %2016 = vmatpush1.msra.mxu0 0.0
    %2017 = vmatprep.subr.mxu0 0.0
    %2018 = vmatpush1.msra.mxu0 0.0
    %2019 = vmatprep.subr.mxu0 0.0
    %2020 = vmatpush1.msra.mxu0 0.0
    %2021 = vmatprep.subr.mxu0 0.0
    %2022 = vmatpush1.msra.mxu0 0.0
    %2023 = vmatprep.subr.mxu0 0.0
    %2024 = vmatpush1.msra.mxu0 0.0
    %2025 = vmatprep.subr.mxu0 0.0
    %2026 = vmatpush1.msra.mxu0 0.0
    %2027 = vmatprep.subr.mxu0 0.0
    %2028 = vmatpush1.msra.mxu0 0.0
    %2029 = vmatprep.subr.mxu0 0.0
    %2030 = vmatpush1.msra.mxu0 0.0
    %2031 = vmatprep.subr.mxu0 0.0
    %2032 = vmatpush1.msra.mxu0 0.0
    %2033 = vmatprep.subr.mxu0 0.0
    %2034 = vmatpush1.msra.mxu0 0.0
    %2035 = vmatprep.mubr.f32.mxu0 0.0
    %2036 = vmatmul.mubr.f32.gmra.mrb[0].mxu0 %v1864
    %v2037 = vpop.f32.mrb[0].mxu0
    %v2038 = vadd.f32 0.0, %v2037
    %v2039 = vpop.f32.mrb[0].mxu0
    %2040 = vdwg.mxu0
    %v2041 = vsel %vm466, %v1858, 0
    %2043 = vmatprep.subr.mxu0 0.0
    %2044 = vmatpush1.msra.mxu0 %v558
    %2045 = vmatprep.subr.mxu0 0.0
    %2046 = vmatpush1.msra.mxu0 %v559
    %2047 = vmatprep.subr.mxu0 0.0
    %2048 = vmatpush1.msra.mxu0 %v560
    %2049 = vmatprep.subr.mxu0 0.0
    %2050 = vmatpush1.msra.mxu0 %v561
    %2051 = vmatprep.subr.mxu0 0.0
    %2052 = vmatpush1.msra.mxu0 0.0
    %2053 = vmatprep.subr.mxu0 0.0
    %2054 = vmatpush1.msra.mxu0 0.0
    %2055 = vmatprep.subr.mxu0 0.0
    %2056 = vmatpush1.msra.mxu0 0.0
    %2057 = vmatprep.subr.mxu0 0.0
    %2058 = vmatpush1.msra.mxu0 0.0
    %2059 = vmatprep.subr.mxu0 0.0
    %2060 = vmatpush1.msra.mxu0 0.0
    %2061 = vmatprep.subr.mxu0 0.0
    %2062 = vmatpush1.msra.mxu0 0.0
    %2063 = vmatprep.subr.mxu0 0.0
    %2064 = vmatpush1.msra.mxu0 0.0
    %2065 = vmatprep.subr.mxu0 0.0
    %2066 = vmatpush1.msra.mxu0 0.0
    %2067 = vmatprep.subr.mxu0 0.0
    %2068 = vmatpush1.msra.mxu0 0.0
    %2069 = vmatprep.subr.mxu0 0.0
    %2070 = vmatpush1.msra.mxu0 0.0
    %2071 = vmatprep.subr.mxu0 0.0
    %2072 = vmatpush1.msra.mxu0 0.0
    %2073 = vmatprep.subr.mxu0 0.0
    %2074 = vmatpush1.msra.mxu0 0.0
    %2075 = vmatprep.subr.mxu0 0.0
    %2076 = vmatpush1.msra.mxu0 0.0
    %2077 = vmatprep.subr.mxu0 0.0
    %2078 = vmatpush1.msra.mxu0 0.0
    %2079 = vmatprep.subr.mxu0 0.0
    %2080 = vmatpush1.msra.mxu0 0.0
    %2081 = vmatprep.subr.mxu0 0.0
    %2082 = vmatpush1.msra.mxu0 0.0
    %2083 = vmatprep.subr.mxu0 0.0
    %2084 = vmatpush1.msra.mxu0 0.0
    %2085 = vmatprep.subr.mxu0 0.0
    %2086 = vmatpush1.msra.mxu0 0.0
    %2087 = vmatprep.subr.mxu0 0.0
    %2088 = vmatpush1.msra.mxu0 0.0
    %2089 = vmatprep.subr.mxu0 0.0
    %2090 = vmatpush1.msra.mxu0 0.0
    %2091 = vmatprep.subr.mxu0 0.0
    %2092 = vmatpush1.msra.mxu0 0.0
    %2093 = vmatprep.subr.mxu0 0.0
    %2094 = vmatpush1.msra.mxu0 0.0
    %2095 = vmatprep.subr.mxu0 0.0
    %2096 = vmatpush1.msra.mxu0 0.0
    %2097 = vmatprep.subr.mxu0 0.0
    %2098 = vmatpush1.msra.mxu0 0.0
    %2099 = vmatprep.subr.mxu0 0.0
    %2100 = vmatpush1.msra.mxu0 0.0
    %2101 = vmatprep.subr.mxu0 0.0
    %2102 = vmatpush1.msra.mxu0 0.0
    %2103 = vmatprep.subr.mxu0 0.0
    %2104 = vmatpush1.msra.mxu0 0.0
    %2105 = vmatprep.subr.mxu0 0.0
    %2106 = vmatpush1.msra.mxu0 0.0
    %2107 = vmatprep.mubr.f32.mxu0 0.0
    %2108 = vmatmul.mubr.f32.gmra.mrb[0].mxu0 %v2041
    %v2109 = vpop.f32.mrb[0].mxu0
    %v2110 = vadd.f32 0.0, %v2109
    %v2111 = vpop.f32.mrb[0].mxu0
    %2112 = vdwg.mxu0
    %v2113 = vadd.f32 %v2038, %v2110
    %v2114 = vadd.f32 %v2113, %v564
    %v2115 = vxor.u32 %v2114, 2147483648
    %v2116 = vmul.f32 %v2115, 1.442695
    %v2117 = vpow.pop %v2116
    %v2118 = vadd.f32 %v2117, 1.0
    %v2119 = vrcp.pop %v2118
    %v2120 = vmul.f32 1.0, %v2119
    %v2121 = vadd.f32 %v2038, %v957
    %v2122 = vadd.f32 %v2110, %v962
    %2124 = vrot.lane.b32.xlu0 %v2122, 64
    %v2125 = vpop.permute.xlu0 %2124
    %v2127 = vmul.f32 %v2120, %v2125
    %2129 = vrot.lane.b32.xlu0 %v2127, 64
    %v2130 = vpop.permute.xlu0 %2129
    %v2132 = vadd.f32 %v2121, %v2130
    %v2133 = vtanh.pop %v2132
    %v2134 = vsub.f32 1.0, %v2120
    %2136 = vrot.lane.b32.xlu0 %v2133, 96
    %v2137 = vpop.permute.xlu0 %2136
    %v2139 = vmul.f32 %v2134, %v2137
    %v2140 = vmul.f32 %v2120, %v1855
    %v2141 = vadd.f32 %v2139, %v2140
    %2143 = vrot.lane.b32.xlu0 %v2141, 96
    %v2144 = vpop.permute.xlu0 %2143
    %2146 = vst.msk [vmem:[#allocation2 + $0x8] sm:$0x3] %vm991, %v2144
    %v2148 = vrot.slane %v1970, 2
    %2149 = vrot.lane.b32.xlu0 %v2148, 96
    %v2150 = vpop.permute.xlu0 %2149
    %v2151 = vsel %vm466, %v2150, 0
    %2153 = vmatprep.subr.mxu0 0.0
    %2154 = vmatpush1.msra.mxu0 %v553
    %2155 = vmatprep.subr.mxu0 0.0
    %2156 = vmatpush1.msra.mxu0 %v554
    %2157 = vmatprep.subr.mxu0 0.0
    %2158 = vmatpush1.msra.mxu0 %v555
    %2159 = vmatprep.subr.mxu0 0.0
    %2160 = vmatpush1.msra.mxu0 %v556
    %2161 = vmatprep.subr.mxu0 0.0
    %2162 = vmatpush1.msra.mxu0 0.0
    %2163 = vmatprep.subr.mxu0 0.0
    %2164 = vmatpush1.msra.mxu0 0.0
    %2165 = vmatprep.subr.mxu0 0.0
    %2166 = vmatpush1.msra.mxu0 0.0
    %2167 = vmatprep.subr.mxu0 0.0
    %2168 = vmatpush1.msra.mxu0 0.0
    %2169 = vmatprep.subr.mxu0 0.0
    %2170 = vmatpush1.msra.mxu0 0.0
    %2171 = vmatprep.subr.mxu0 0.0
    %2172 = vmatpush1.msra.mxu0 0.0
    %2173 = vmatprep.subr.mxu0 0.0
    %2174 = vmatpush1.msra.mxu0 0.0
    %2175 = vmatprep.subr.mxu0 0.0
    %2176 = vmatpush1.msra.mxu0 0.0
    %2177 = vmatprep.subr.mxu0 0.0
    %2178 = vmatpush1.msra.mxu0 0.0
    %2179 = vmatprep.subr.mxu0 0.0
    %2180 = vmatpush1.msra.mxu0 0.0
    %2181 = vmatprep.subr.mxu0 0.0
    %2182 = vmatpush1.msra.mxu0 0.0
    %2183 = vmatprep.subr.mxu0 0.0
    %2184 = vmatpush1.msra.mxu0 0.0
    %2185 = vmatprep.subr.mxu0 0.0
    %2186 = vmatpush1.msra.mxu0 0.0
    %2187 = vmatprep.subr.mxu0 0.0
    %2188 = vmatpush1.msra.mxu0 0.0
    %2189 = vmatprep.subr.mxu0 0.0
    %2190 = vmatpush1.msra.mxu0 0.0
    %2191 = vmatprep.subr.mxu0 0.0
    %2192 = vmatpush1.msra.mxu0 0.0
    %2193 = vmatprep.subr.mxu0 0.0
    %2194 = vmatpush1.msra.mxu0 0.0
    %2195 = vmatprep.subr.mxu0 0.0
    %2196 = vmatpush1.msra.mxu0 0.0
    %2197 = vmatprep.subr.mxu0 0.0
    %2198 = vmatpush1.msra.mxu0 0.0
    %2199 = vmatprep.subr.mxu0 0.0
    %2200 = vmatpush1.msra.mxu0 0.0
    %2201 = vmatprep.subr.mxu0 0.0
    %2202 = vmatpush1.msra.mxu0 0.0
    %2203 = vmatprep.subr.mxu0 0.0
    %2204 = vmatpush1.msra.mxu0 0.0
    %2205 = vmatprep.subr.mxu0 0.0
    %2206 = vmatpush1.msra.mxu0 0.0
    %2207 = vmatprep.subr.mxu0 0.0
    %2208 = vmatpush1.msra.mxu0 0.0
    %2209 = vmatprep.subr.mxu0 0.0
    %2210 = vmatpush1.msra.mxu0 0.0
    %2211 = vmatprep.subr.mxu0 0.0
    %2212 = vmatpush1.msra.mxu0 0.0
    %2213 = vmatprep.subr.mxu0 0.0
    %2214 = vmatpush1.msra.mxu0 0.0
    %2215 = vmatprep.subr.mxu0 0.0
    %2216 = vmatpush1.msra.mxu0 0.0
    %2217 = vmatprep.mubr.f32.mxu0 0.0
    %2218 = vmatmul.mubr.f32.gmra.mrb[0].mxu0 %v2151
    %v2219 = vpop.f32.mrb[0].mxu0
    %v2220 = vadd.f32 0.0, %v2219
    %v2221 = vpop.f32.mrb[0].mxu0
    %2222 = vdwg.mxu0
    %v2224 = vrot.slane %v2220, 4
    %v2226 = vadd.f32 %v545, %v2224
    %v2227 = vadd.f32 %v2226, %v1073
    %v2228 = vxor.u32 %v2227, 2147483648
    %v2229 = vmul.f32 %v2228, 1.442695
    %v2230 = vpow.pop %v2229
    %v2231 = vadd.f32 %v2230, 1.0
    %v2232 = vrcp.pop %v2231
    %v2233 = vmul.f32 1.0, %v2232
    %v2234 = vadd.f32 %v545, %v1084
    %v2235 = vadd.f32 %v2220, %v662
    %v2237 = vrot.slane %v2235, 4
    %2238 = vrot.lane.b32.xlu0 %v2237, 64
    %v2239 = vpop.permute.xlu0 %2238
    %v2241 = vmul.f32 %v2233, %v2239
    %2243 = vrot.lane.b32.xlu0 %v2241, 64
    %v2244 = vpop.permute.xlu0 %2243
    %v2246 = vadd.f32 %v2234, %v2244
    %v2247 = vtanh.pop %v2246
    %v2248 = vsub.f32 1.0, %v2233
    %2250 = vrot.lane.b32.xlu0 %v2247, 96
    %v2251 = vpop.permute.xlu0 %2250
    %v2253 = vmul.f32 %v2248, %v2251
    %v2254 = vrot.slane %v1970, 6
    %v2256 = vmul.f32 %v2233, %v2254
    %v2257 = vadd.f32 %v2253, %v2256
    %2258 = vmatprep.subr.mxu0 0.0
    %2259 = vmatpush1.msra.mxu0 %v549
    %2260 = vmatprep.subr.mxu0 0.0
    %2261 = vmatpush1.msra.mxu0 %v550
    %2262 = vmatprep.subr.mxu0 0.0
    %2263 = vmatpush1.msra.mxu0 %v551
    %2264 = vmatprep.subr.mxu0 0.0
    %2265 = vmatpush1.msra.mxu0 %v552
    %2266 = vmatprep.subr.mxu0 0.0
    %2267 = vmatpush1.msra.mxu0 0.0
    %2268 = vmatprep.subr.mxu0 0.0
    %2269 = vmatpush1.msra.mxu0 0.0
    %2270 = vmatprep.subr.mxu0 0.0
    %2271 = vmatpush1.msra.mxu0 0.0
    %2272 = vmatprep.subr.mxu0 0.0
    %2273 = vmatpush1.msra.mxu0 0.0
    %2274 = vmatprep.subr.mxu0 0.0
    %2275 = vmatpush1.msra.mxu0 0.0
    %2276 = vmatprep.subr.mxu0 0.0
    %2277 = vmatpush1.msra.mxu0 0.0
    %2278 = vmatprep.subr.mxu0 0.0
    %2279 = vmatpush1.msra.mxu0 0.0
    %2280 = vmatprep.subr.mxu0 0.0
    %2281 = vmatpush1.msra.mxu0 0.0
    %2282 = vmatprep.subr.mxu0 0.0
    %2283 = vmatpush1.msra.mxu0 0.0
    %2284 = vmatprep.subr.mxu0 0.0
    %2285 = vmatpush1.msra.mxu0 0.0
    %2286 = vmatprep.subr.mxu0 0.0
    %2287 = vmatpush1.msra.mxu0 0.0
    %2288 = vmatprep.subr.mxu0 0.0
    %2289 = vmatpush1.msra.mxu0 0.0
    %2290 = vmatprep.subr.mxu0 0.0
    %2291 = vmatpush1.msra.mxu0 0.0
    %2292 = vmatprep.subr.mxu0 0.0
    %2293 = vmatpush1.msra.mxu0 0.0
    %2294 = vmatprep.subr.mxu0 0.0
    %2295 = vmatpush1.msra.mxu0 0.0
    %2296 = vmatprep.subr.mxu0 0.0
    %2297 = vmatpush1.msra.mxu0 0.0
    %2298 = vmatprep.subr.mxu0 0.0
    %2299 = vmatpush1.msra.mxu0 0.0
    %2300 = vmatprep.subr.mxu0 0.0
    %2301 = vmatpush1.msra.mxu0 0.0
    %2302 = vmatprep.subr.mxu0 0.0
    %2303 = vmatpush1.msra.mxu0 0.0
    %2304 = vmatprep.subr.mxu0 0.0
    %2305 = vmatpush1.msra.mxu0 0.0
    %2306 = vmatprep.subr.mxu0 0.0
    %2307 = vmatpush1.msra.mxu0 0.0
    %2308 = vmatprep.subr.mxu0 0.0
    %2309 = vmatpush1.msra.mxu0 0.0
    %2310 = vmatprep.subr.mxu0 0.0
    %2311 = vmatpush1.msra.mxu0 0.0
    %2312 = vmatprep.subr.mxu0 0.0
    %2313 = vmatpush1.msra.mxu0 0.0
    %2314 = vmatprep.subr.mxu0 0.0
    %2315 = vmatpush1.msra.mxu0 0.0
    %2316 = vmatprep.subr.mxu0 0.0
    %2317 = vmatpush1.msra.mxu0 0.0
    %2318 = vmatprep.subr.mxu0 0.0
    %2319 = vmatpush1.msra.mxu0 0.0
    %2320 = vmatprep.subr.mxu0 0.0
    %2321 = vmatpush1.msra.mxu0 0.0
    %2322 = vmatprep.mubr.f32.mxu0 0.0
    %2323 = vmatmul.mubr.f32.gmra.mrb[0].mxu0 %v2151
    %v2324 = vpop.f32.mrb[0].mxu0
    %v2325 = vadd.f32 0.0, %v2324
    %v2326 = vpop.f32.mrb[0].mxu0
    %2327 = vdwg.mxu0
    %v2328 = vsel %vm466, %v2144, 0
    %2330 = vmatprep.subr.mxu0 0.0
    %2331 = vmatpush1.msra.mxu0 %v558
    %2332 = vmatprep.subr.mxu0 0.0
    %2333 = vmatpush1.msra.mxu0 %v559
    %2334 = vmatprep.subr.mxu0 0.0
    %2335 = vmatpush1.msra.mxu0 %v560
    %2336 = vmatprep.subr.mxu0 0.0
    %2337 = vmatpush1.msra.mxu0 %v561
    %2338 = vmatprep.subr.mxu0 0.0
    %2339 = vmatpush1.msra.mxu0 0.0
    %2340 = vmatprep.subr.mxu0 0.0
    %2341 = vmatpush1.msra.mxu0 0.0
    %2342 = vmatprep.subr.mxu0 0.0
    %2343 = vmatpush1.msra.mxu0 0.0
    %2344 = vmatprep.subr.mxu0 0.0
    %2345 = vmatpush1.msra.mxu0 0.0
    %2346 = vmatprep.subr.mxu0 0.0
    %2347 = vmatpush1.msra.mxu0 0.0
    %2348 = vmatprep.subr.mxu0 0.0
    %2349 = vmatpush1.msra.mxu0 0.0
    %2350 = vmatprep.subr.mxu0 0.0
    %2351 = vmatpush1.msra.mxu0 0.0
    %2352 = vmatprep.subr.mxu0 0.0
    %2353 = vmatpush1.msra.mxu0 0.0
    %2354 = vmatprep.subr.mxu0 0.0
    %2355 = vmatpush1.msra.mxu0 0.0
    %2356 = vmatprep.subr.mxu0 0.0
    %2357 = vmatpush1.msra.mxu0 0.0
    %2358 = vmatprep.subr.mxu0 0.0
    %2359 = vmatpush1.msra.mxu0 0.0
    %2360 = vmatprep.subr.mxu0 0.0
    %2361 = vmatpush1.msra.mxu0 0.0
    %2362 = vmatprep.subr.mxu0 0.0
    %2363 = vmatpush1.msra.mxu0 0.0
    %2364 = vmatprep.subr.mxu0 0.0
    %2365 = vmatpush1.msra.mxu0 0.0
    %2366 = vmatprep.subr.mxu0 0.0
    %2367 = vmatpush1.msra.mxu0 0.0
    %2368 = vmatprep.subr.mxu0 0.0
    %2369 = vmatpush1.msra.mxu0 0.0
    %2370 = vmatprep.subr.mxu0 0.0
    %2371 = vmatpush1.msra.mxu0 0.0
    %2372 = vmatprep.subr.mxu0 0.0
    %2373 = vmatpush1.msra.mxu0 0.0
    %2374 = vmatprep.subr.mxu0 0.0
    %2375 = vmatpush1.msra.mxu0 0.0
    %2376 = vmatprep.subr.mxu0 0.0
    %2377 = vmatpush1.msra.mxu0 0.0
    %2378 = vmatprep.subr.mxu0 0.0
    %2379 = vmatpush1.msra.mxu0 0.0
    %2380 = vmatprep.subr.mxu0 0.0
    %2381 = vmatpush1.msra.mxu0 0.0
    %2382 = vmatprep.subr.mxu0 0.0
    %2383 = vmatpush1.msra.mxu0 0.0
    %2384 = vmatprep.subr.mxu0 0.0
    %2385 = vmatpush1.msra.mxu0 0.0
    %2386 = vmatprep.subr.mxu0 0.0
    %2387 = vmatpush1.msra.mxu0 0.0
    %2388 = vmatprep.subr.mxu0 0.0
    %2389 = vmatpush1.msra.mxu0 0.0
    %2390 = vmatprep.subr.mxu0 0.0
    %2391 = vmatpush1.msra.mxu0 0.0
    %2392 = vmatprep.subr.mxu0 0.0
    %2393 = vmatpush1.msra.mxu0 0.0
    %2394 = vmatprep.mubr.f32.mxu0 0.0
    %2395 = vmatmul.mubr.f32.gmra.mrb[0].mxu0 %v2328
    %v2396 = vpop.f32.mrb[0].mxu0
    %v2397 = vadd.f32 0.0, %v2396
    %v2398 = vpop.f32.mrb[0].mxu0
    %2399 = vdwg.mxu0
    %v2400 = vadd.f32 %v2325, %v2397
    %v2401 = vadd.f32 %v2400, %v564
    %v2402 = vxor.u32 %v2401, 2147483648
    %v2403 = vmul.f32 %v2402, 1.442695
    %v2404 = vpow.pop %v2403
    %v2405 = vadd.f32 %v2404, 1.0
    %v2406 = vrcp.pop %v2405
    %v2407 = vmul.f32 1.0, %v2406
    %v2408 = vadd.f32 %v2325, %v957
    %v2409 = vadd.f32 %v2397, %v962
    %2411 = vrot.lane.b32.xlu0 %v2409, 64
    %v2412 = vpop.permute.xlu0 %2411
    %v2414 = vmul.f32 %v2407, %v2412
    %2416 = vrot.lane.b32.xlu0 %v2414, 64
    %v2417 = vpop.permute.xlu0 %2416
    %v2419 = vadd.f32 %v2408, %v2417
    %v2420 = vtanh.pop %v2419
    %v2421 = vsub.f32 1.0, %v2407
    %2423 = vrot.lane.b32.xlu0 %v2420, 96
    %v2424 = vpop.permute.xlu0 %2423
    %v2426 = vmul.f32 %v2421, %v2424
    %v2427 = vmul.f32 %v2407, %v2141
    %v2428 = vadd.f32 %v2426, %v2427
    %2430 = vrot.lane.b32.xlu0 %v2428, 96
    %v2431 = vpop.permute.xlu0 %2430
    %2433 = vst.msk [vmem:[#allocation2 + $0xa] sm:$0x3] %vm991, %v2431
    %v2435 = vrot.slane %v2257, 4
    %2436 = vrot.lane.b32.xlu0 %v2435, 96
    %v2437 = vpop.permute.xlu0 %2436
    %v2438 = vsel %vm466, %v2437, 0
    %2440 = vmatprep.subr.mxu0 0.0
    %2441 = vmatpush1.msra.mxu0 %v553
    %2442 = vmatprep.subr.mxu0 0.0
    %2443 = vmatpush1.msra.mxu0 %v554
    %2444 = vmatprep.subr.mxu0 0.0
    %2445 = vmatpush1.msra.mxu0 %v555
    %2446 = vmatprep.subr.mxu0 0.0
    %2447 = vmatpush1.msra.mxu0 %v556
    %2448 = vmatprep.subr.mxu0 0.0
    %2449 = vmatpush1.msra.mxu0 0.0
    %2450 = vmatprep.subr.mxu0 0.0
    %2451 = vmatpush1.msra.mxu0 0.0
    %2452 = vmatprep.subr.mxu0 0.0
    %2453 = vmatpush1.msra.mxu0 0.0
    %2454 = vmatprep.subr.mxu0 0.0
    %2455 = vmatpush1.msra.mxu0 0.0
    %2456 = vmatprep.subr.mxu0 0.0
    %2457 = vmatpush1.msra.mxu0 0.0
    %2458 = vmatprep.subr.mxu0 0.0
    %2459 = vmatpush1.msra.mxu0 0.0
    %2460 = vmatprep.subr.mxu0 0.0
    %2461 = vmatpush1.msra.mxu0 0.0
    %2462 = vmatprep.subr.mxu0 0.0
    %2463 = vmatpush1.msra.mxu0 0.0
    %2464 = vmatprep.subr.mxu0 0.0
    %2465 = vmatpush1.msra.mxu0 0.0
    %2466 = vmatprep.subr.mxu0 0.0
    %2467 = vmatpush1.msra.mxu0 0.0
    %2468 = vmatprep.subr.mxu0 0.0
    %2469 = vmatpush1.msra.mxu0 0.0
    %2470 = vmatprep.subr.mxu0 0.0
    %2471 = vmatpush1.msra.mxu0 0.0
    %2472 = vmatprep.subr.mxu0 0.0
    %2473 = vmatpush1.msra.mxu0 0.0
    %2474 = vmatprep.subr.mxu0 0.0
    %2475 = vmatpush1.msra.mxu0 0.0
    %2476 = vmatprep.subr.mxu0 0.0
    %2477 = vmatpush1.msra.mxu0 0.0
    %2478 = vmatprep.subr.mxu0 0.0
    %2479 = vmatpush1.msra.mxu0 0.0
    %2480 = vmatprep.subr.mxu0 0.0
    %2481 = vmatpush1.msra.mxu0 0.0
    %2482 = vmatprep.subr.mxu0 0.0
    %2483 = vmatpush1.msra.mxu0 0.0
    %2484 = vmatprep.subr.mxu0 0.0
    %2485 = vmatpush1.msra.mxu0 0.0
    %2486 = vmatprep.subr.mxu0 0.0
    %2487 = vmatpush1.msra.mxu0 0.0
    %2488 = vmatprep.subr.mxu0 0.0
    %2489 = vmatpush1.msra.mxu0 0.0
    %2490 = vmatprep.subr.mxu0 0.0
    %2491 = vmatpush1.msra.mxu0 0.0
    %2492 = vmatprep.subr.mxu0 0.0
    %2493 = vmatpush1.msra.mxu0 0.0
    %2494 = vmatprep.subr.mxu0 0.0
    %2495 = vmatpush1.msra.mxu0 0.0
    %2496 = vmatprep.subr.mxu0 0.0
    %2497 = vmatpush1.msra.mxu0 0.0
    %2498 = vmatprep.subr.mxu0 0.0
    %2499 = vmatpush1.msra.mxu0 0.0
    %2500 = vmatprep.subr.mxu0 0.0
    %2501 = vmatpush1.msra.mxu0 0.0
    %2502 = vmatprep.subr.mxu0 0.0
    %2503 = vmatpush1.msra.mxu0 0.0
    %2504 = vmatprep.mubr.f32.mxu0 0.0
    %2505 = vmatmul.mubr.f32.gmra.mrb[0].mxu0 %v2438
    %v2506 = vpop.f32.mrb[0].mxu0
    %v2507 = vadd.f32 0.0, %v2506
    %v2508 = vpop.f32.mrb[0].mxu0
    %2509 = vdwg.mxu0
    %v2511 = vrot.slane %v2507, 2
    %v2513 = vadd.f32 %v545, %v2511
    %v2514 = vadd.f32 %v2513, %v1366
    %v2515 = vxor.u32 %v2514, 2147483648
    %v2516 = vmul.f32 %v2515, 1.442695
    %v2517 = vpow.pop %v2516
    %v2518 = vadd.f32 %v2517, 1.0
    %v2519 = vrcp.pop %v2518
    %v2520 = vmul.f32 1.0, %v2519
    %v2521 = vadd.f32 %v545, %v1377
    %v2522 = vadd.f32 %v2507, %v662
    %v2524 = vrot.slane %v2522, 2
    %2525 = vrot.lane.b32.xlu0 %v2524, 64
    %v2526 = vpop.permute.xlu0 %2525
    %v2528 = vmul.f32 %v2520, %v2526
    %2530 = vrot.lane.b32.xlu0 %v2528, 64
    %v2531 = vpop.permute.xlu0 %2530
    %v2533 = vadd.f32 %v2521, %v2531
    %v2534 = vtanh.pop %v2533
    %v2535 = vsub.f32 1.0, %v2520
    %2537 = vrot.lane.b32.xlu0 %v2534, 96
    %v2538 = vpop.permute.xlu0 %2537
    %v2540 = vmul.f32 %v2535, %v2538
    %v2541 = vrot.slane %v2257, 6
    %v2543 = vmul.f32 %v2520, %v2541
    %v2544 = vadd.f32 %v2540, %v2543
    %2545 = vmatprep.subr.mxu0 0.0
    %2546 = vmatpush1.msra.mxu0 %v549
    %2547 = vmatprep.subr.mxu0 0.0
    %2548 = vmatpush1.msra.mxu0 %v550
    %2549 = vmatprep.subr.mxu0 0.0
    %2550 = vmatpush1.msra.mxu0 %v551
    %2551 = vmatprep.subr.mxu0 0.0
    %2552 = vmatpush1.msra.mxu0 %v552
    %2553 = vmatprep.subr.mxu0 0.0
    %2554 = vmatpush1.msra.mxu0 0.0
    %2555 = vmatprep.subr.mxu0 0.0
    %2556 = vmatpush1.msra.mxu0 0.0
    %2557 = vmatprep.subr.mxu0 0.0
    %2558 = vmatpush1.msra.mxu0 0.0
    %2559 = vmatprep.subr.mxu0 0.0
    %2560 = vmatpush1.msra.mxu0 0.0
    %2561 = vmatprep.subr.mxu0 0.0
    %2562 = vmatpush1.msra.mxu0 0.0
    %2563 = vmatprep.subr.mxu0 0.0
    %2564 = vmatpush1.msra.mxu0 0.0
    %2565 = vmatprep.subr.mxu0 0.0
    %2566 = vmatpush1.msra.mxu0 0.0
    %2567 = vmatprep.subr.mxu0 0.0
    %2568 = vmatpush1.msra.mxu0 0.0
    %2569 = vmatprep.subr.mxu0 0.0
    %2570 = vmatpush1.msra.mxu0 0.0
    %2571 = vmatprep.subr.mxu0 0.0
    %2572 = vmatpush1.msra.mxu0 0.0
    %2573 = vmatprep.subr.mxu0 0.0
    %2574 = vmatpush1.msra.mxu0 0.0
    %2575 = vmatprep.subr.mxu0 0.0
    %2576 = vmatpush1.msra.mxu0 0.0
    %2577 = vmatprep.subr.mxu0 0.0
    %2578 = vmatpush1.msra.mxu0 0.0
    %2579 = vmatprep.subr.mxu0 0.0
    %2580 = vmatpush1.msra.mxu0 0.0
    %2581 = vmatprep.subr.mxu0 0.0
    %2582 = vmatpush1.msra.mxu0 0.0
    %2583 = vmatprep.subr.mxu0 0.0
    %2584 = vmatpush1.msra.mxu0 0.0
    %2585 = vmatprep.subr.mxu0 0.0
    %2586 = vmatpush1.msra.mxu0 0.0
    %2587 = vmatprep.subr.mxu0 0.0
    %2588 = vmatpush1.msra.mxu0 0.0
    %2589 = vmatprep.subr.mxu0 0.0
    %2590 = vmatpush1.msra.mxu0 0.0
    %2591 = vmatprep.subr.mxu0 0.0
    %2592 = vmatpush1.msra.mxu0 0.0
    %2593 = vmatprep.subr.mxu0 0.0
    %2594 = vmatpush1.msra.mxu0 0.0
    %2595 = vmatprep.subr.mxu0 0.0
    %2596 = vmatpush1.msra.mxu0 0.0
    %2597 = vmatprep.subr.mxu0 0.0
    %2598 = vmatpush1.msra.mxu0 0.0
    %2599 = vmatprep.subr.mxu0 0.0
    %2600 = vmatpush1.msra.mxu0 0.0
    %2601 = vmatprep.subr.mxu0 0.0
    %2602 = vmatpush1.msra.mxu0 0.0
    %2603 = vmatprep.subr.mxu0 0.0
    %2604 = vmatpush1.msra.mxu0 0.0
    %2605 = vmatprep.subr.mxu0 0.0
    %2606 = vmatpush1.msra.mxu0 0.0
    %2607 = vmatprep.subr.mxu0 0.0
    %2608 = vmatpush1.msra.mxu0 0.0
    %2609 = vmatprep.mubr.f32.mxu0 0.0
    %2610 = vmatmul.mubr.f32.gmra.mrb[0].mxu0 %v2438
    %v2611 = vpop.f32.mrb[0].mxu0
    %v2612 = vadd.f32 0.0, %v2611
    %v2613 = vpop.f32.mrb[0].mxu0
    %2614 = vdwg.mxu0
    %v2615 = vsel %vm466, %v2431, 0
    %2617 = vmatprep.subr.mxu0 0.0
    %2618 = vmatpush1.msra.mxu0 %v558
    %2619 = vmatprep.subr.mxu0 0.0
    %2620 = vmatpush1.msra.mxu0 %v559
    %2621 = vmatprep.subr.mxu0 0.0
    %2622 = vmatpush1.msra.mxu0 %v560
    %2623 = vmatprep.subr.mxu0 0.0
    %2624 = vmatpush1.msra.mxu0 %v561
    %2625 = vmatprep.subr.mxu0 0.0
    %2626 = vmatpush1.msra.mxu0 0.0
    %2627 = vmatprep.subr.mxu0 0.0
    %2628 = vmatpush1.msra.mxu0 0.0
    %2629 = vmatprep.subr.mxu0 0.0
    %2630 = vmatpush1.msra.mxu0 0.0
    %2631 = vmatprep.subr.mxu0 0.0
    %2632 = vmatpush1.msra.mxu0 0.0
    %2633 = vmatprep.subr.mxu0 0.0
    %2634 = vmatpush1.msra.mxu0 0.0
    %2635 = vmatprep.subr.mxu0 0.0
    %2636 = vmatpush1.msra.mxu0 0.0
    %2637 = vmatprep.subr.mxu0 0.0
    %2638 = vmatpush1.msra.mxu0 0.0
    %2639 = vmatprep.subr.mxu0 0.0
    %2640 = vmatpush1.msra.mxu0 0.0
    %2641 = vmatprep.subr.mxu0 0.0
    %2642 = vmatpush1.msra.mxu0 0.0
    %2643 = vmatprep.subr.mxu0 0.0
    %2644 = vmatpush1.msra.mxu0 0.0
    %2645 = vmatprep.subr.mxu0 0.0
    %2646 = vmatpush1.msra.mxu0 0.0
    %2647 = vmatprep.subr.mxu0 0.0
    %2648 = vmatpush1.msra.mxu0 0.0
    %2649 = vmatprep.subr.mxu0 0.0
    %2650 = vmatpush1.msra.mxu0 0.0
    %2651 = vmatprep.subr.mxu0 0.0
    %2652 = vmatpush1.msra.mxu0 0.0
    %2653 = vmatprep.subr.mxu0 0.0
    %2654 = vmatpush1.msra.mxu0 0.0
    %2655 = vmatprep.subr.mxu0 0.0
    %2656 = vmatpush1.msra.mxu0 0.0
    %2657 = vmatprep.subr.mxu0 0.0
    %2658 = vmatpush1.msra.mxu0 0.0
    %2659 = vmatprep.subr.mxu0 0.0
    %2660 = vmatpush1.msra.mxu0 0.0
    %2661 = vmatprep.subr.mxu0 0.0
    %2662 = vmatpush1.msra.mxu0 0.0
    %2663 = vmatprep.subr.mxu0 0.0
    %2664 = vmatpush1.msra.mxu0 0.0
    %2665 = vmatprep.subr.mxu0 0.0
    %2666 = vmatpush1.msra.mxu0 0.0
    %2667 = vmatprep.subr.mxu0 0.0
    %2668 = vmatpush1.msra.mxu0 0.0
    %2669 = vmatprep.subr.mxu0 0.0
    %2670 = vmatpush1.msra.mxu0 0.0
    %2671 = vmatprep.subr.mxu0 0.0
    %2672 = vmatpush1.msra.mxu0 0.0
    %2673 = vmatprep.subr.mxu0 0.0
    %2674 = vmatpush1.msra.mxu0 0.0
    %2675 = vmatprep.subr.mxu0 0.0
    %2676 = vmatpush1.msra.mxu0 0.0
    %2677 = vmatprep.subr.mxu0 0.0
    %2678 = vmatpush1.msra.mxu0 0.0
    %2679 = vmatprep.subr.mxu0 0.0
    %2680 = vmatpush1.msra.mxu0 0.0
    %2681 = vmatprep.mubr.f32.mxu0 0.0
    %2682 = vmatmul.mubr.f32.gmra.mrb[0].mxu0 %v2615
    %v2683 = vpop.f32.mrb[0].mxu0
    %v2684 = vadd.f32 0.0, %v2683
    %v2685 = vpop.f32.mrb[0].mxu0
    %2686 = vdwg.mxu0
    %v2687 = vadd.f32 %v2612, %v2684
    %v2688 = vadd.f32 %v2687, %v564
    %v2689 = vxor.u32 %v2688, 2147483648
    %v2690 = vmul.f32 %v2689, 1.442695
    %v2691 = vpow.pop %v2690
    %v2692 = vadd.f32 %v2691, 1.0
    %v2693 = vrcp.pop %v2692
    %v2694 = vmul.f32 1.0, %v2693
    %v2695 = vadd.f32 %v2612, %v957
    %v2696 = vadd.f32 %v2684, %v962
    %2698 = vrot.lane.b32.xlu0 %v2696, 64
    %v2699 = vpop.permute.xlu0 %2698
    %v2701 = vmul.f32 %v2694, %v2699
    %2703 = vrot.lane.b32.xlu0 %v2701, 64
    %v2704 = vpop.permute.xlu0 %2703
    %v2706 = vadd.f32 %v2695, %v2704
    %v2707 = vtanh.pop %v2706
    %v2708 = vsub.f32 1.0, %v2694
    %2710 = vrot.lane.b32.xlu0 %v2707, 96
    %v2711 = vpop.permute.xlu0 %2710
    %v2713 = vmul.f32 %v2708, %v2711
    %v2714 = vmul.f32 %v2694, %v2428
    %v2715 = vadd.f32 %v2713, %v2714
    %2717 = vrot.lane.b32.xlu0 %v2715, 96
    %v2718 = vpop.permute.xlu0 %2717
    %2720 = vst.msk [vmem:[#allocation2 + $0xc] sm:$0x3] %vm991, %v2718
    %v2722 = vrot.slane %v2544, 6
    %2723 = vrot.lane.b32.xlu0 %v2722, 96
    %v2724 = vpop.permute.xlu0 %2723
    %v2725 = vsel %vm466, %v2724, 0
    %2727 = vmatprep.subr.mxu0 0.0
    %2728 = vmatpush1.msra.mxu0 %v549
    %2729 = vmatprep.subr.mxu0 0.0
    %2730 = vmatpush1.msra.mxu0 %v550
    %2731 = vmatprep.subr.mxu0 0.0
    %2732 = vmatpush1.msra.mxu0 %v551
    %2733 = vmatprep.subr.mxu0 0.0
    %2734 = vmatpush1.msra.mxu0 %v552
    %2735 = vmatprep.subr.mxu0 0.0
    %2736 = vmatpush1.msra.mxu0 0.0
    %2737 = vmatprep.subr.mxu0 0.0
    %2738 = vmatpush1.msra.mxu0 0.0
    %2739 = vmatprep.subr.mxu0 0.0
    %2740 = vmatpush1.msra.mxu0 0.0
    %2741 = vmatprep.subr.mxu0 0.0
    %2742 = vmatpush1.msra.mxu0 0.0
    %2743 = vmatprep.subr.mxu0 0.0
    %2744 = vmatpush1.msra.mxu0 0.0
    %2745 = vmatprep.subr.mxu0 0.0
    %2746 = vmatpush1.msra.mxu0 0.0
    %2747 = vmatprep.subr.mxu0 0.0
    %2748 = vmatpush1.msra.mxu0 0.0
    %2749 = vmatprep.subr.mxu0 0.0
    %2750 = vmatpush1.msra.mxu0 0.0
    %2751 = vmatprep.subr.mxu0 0.0
    %2752 = vmatpush1.msra.mxu0 0.0
    %2753 = vmatprep.subr.mxu0 0.0
    %2754 = vmatpush1.msra.mxu0 0.0
    %2755 = vmatprep.subr.mxu0 0.0
    %2756 = vmatpush1.msra.mxu0 0.0
    %2757 = vmatprep.subr.mxu0 0.0
    %2758 = vmatpush1.msra.mxu0 0.0
    %2759 = vmatprep.subr.mxu0 0.0
    %2760 = vmatpush1.msra.mxu0 0.0
    %2761 = vmatprep.subr.mxu0 0.0
    %2762 = vmatpush1.msra.mxu0 0.0
    %2763 = vmatprep.subr.mxu0 0.0
    %2764 = vmatpush1.msra.mxu0 0.0
    %2765 = vmatprep.subr.mxu0 0.0
    %2766 = vmatpush1.msra.mxu0 0.0
    %2767 = vmatprep.subr.mxu0 0.0
    %2768 = vmatpush1.msra.mxu0 0.0
    %2769 = vmatprep.subr.mxu0 0.0
    %2770 = vmatpush1.msra.mxu0 0.0
    %2771 = vmatprep.subr.mxu0 0.0
    %2772 = vmatpush1.msra.mxu0 0.0
    %2773 = vmatprep.subr.mxu0 0.0
    %2774 = vmatpush1.msra.mxu0 0.0
    %2775 = vmatprep.subr.mxu0 0.0
    %2776 = vmatpush1.msra.mxu0 0.0
    %2777 = vmatprep.subr.mxu0 0.0
    %2778 = vmatpush1.msra.mxu0 0.0
    %2779 = vmatprep.subr.mxu0 0.0
    %2780 = vmatpush1.msra.mxu0 0.0
    %2781 = vmatprep.subr.mxu0 0.0
    %2782 = vmatpush1.msra.mxu0 0.0
    %2783 = vmatprep.subr.mxu0 0.0
    %2784 = vmatpush1.msra.mxu0 0.0
    %2785 = vmatprep.subr.mxu0 0.0
    %2786 = vmatpush1.msra.mxu0 0.0
    %2787 = vmatprep.subr.mxu0 0.0
    %2788 = vmatpush1.msra.mxu0 0.0
    %2789 = vmatprep.subr.mxu0 0.0
    %2790 = vmatpush1.msra.mxu0 0.0
    %2791 = vmatprep.mubr.f32.mxu0 0.0
    %2792 = vmatmul.mubr.f32.gmra.mrb[0].mxu0 %v2725
    %v2793 = vpop.f32.mrb[0].mxu0
    %v2794 = vadd.f32 0.0, %v2793
    %v2795 = vpop.f32.mrb[0].mxu0
    %2796 = vdwg.mxu0
    %v2797 = vsel %vm466, %v2718, 0
    %2799 = vmatprep.subr.mxu0 0.0
    %2800 = vmatpush1.msra.mxu0 %v558
    %2801 = vmatprep.subr.mxu0 0.0
    %2802 = vmatpush1.msra.mxu0 %v559
    %2803 = vmatprep.subr.mxu0 0.0
    %2804 = vmatpush1.msra.mxu0 %v560
    %2805 = vmatprep.subr.mxu0 0.0
    %2806 = vmatpush1.msra.mxu0 %v561
    %2807 = vmatprep.subr.mxu0 0.0
    %2808 = vmatpush1.msra.mxu0 0.0
    %2809 = vmatprep.subr.mxu0 0.0
    %2810 = vmatpush1.msra.mxu0 0.0
    %2811 = vmatprep.subr.mxu0 0.0
    %2812 = vmatpush1.msra.mxu0 0.0
    %2813 = vmatprep.subr.mxu0 0.0
    %2814 = vmatpush1.msra.mxu0 0.0
    %2815 = vmatprep.subr.mxu0 0.0
    %2816 = vmatpush1.msra.mxu0 0.0
    %2817 = vmatprep.subr.mxu0 0.0
    %2818 = vmatpush1.msra.mxu0 0.0
    %2819 = vmatprep.subr.mxu0 0.0
    %2820 = vmatpush1.msra.mxu0 0.0
    %2821 = vmatprep.subr.mxu0 0.0
    %2822 = vmatpush1.msra.mxu0 0.0
    %2823 = vmatprep.subr.mxu0 0.0
    %2824 = vmatpush1.msra.mxu0 0.0
    %2825 = vmatprep.subr.mxu0 0.0
    %2826 = vmatpush1.msra.mxu0 0.0
    %2827 = vmatprep.subr.mxu0 0.0
    %2828 = vmatpush1.msra.mxu0 0.0
    %2829 = vmatprep.subr.mxu0 0.0
    %2830 = vmatpush1.msra.mxu0 0.0
    %2831 = vmatprep.subr.mxu0 0.0
    %2832 = vmatpush1.msra.mxu0 0.0
    %2833 = vmatprep.subr.mxu0 0.0
    %2834 = vmatpush1.msra.mxu0 0.0
    %2835 = vmatprep.subr.mxu0 0.0
    %2836 = vmatpush1.msra.mxu0 0.0
    %2837 = vmatprep.subr.mxu0 0.0
    %2838 = vmatpush1.msra.mxu0 0.0
    %2839 = vmatprep.subr.mxu0 0.0
    %2840 = vmatpush1.msra.mxu0 0.0
    %2841 = vmatprep.subr.mxu0 0.0
    %2842 = vmatpush1.msra.mxu0 0.0
    %2843 = vmatprep.subr.mxu0 0.0
    %2844 = vmatpush1.msra.mxu0 0.0
    %2845 = vmatprep.subr.mxu0 0.0
    %2846 = vmatpush1.msra.mxu0 0.0
    %2847 = vmatprep.subr.mxu0 0.0
    %2848 = vmatpush1.msra.mxu0 0.0
    %2849 = vmatprep.subr.mxu0 0.0
    %2850 = vmatpush1.msra.mxu0 0.0
    %2851 = vmatprep.subr.mxu0 0.0
    %2852 = vmatpush1.msra.mxu0 0.0
    %2853 = vmatprep.subr.mxu0 0.0
    %2854 = vmatpush1.msra.mxu0 0.0
    %2855 = vmatprep.subr.mxu0 0.0
    %2856 = vmatpush1.msra.mxu0 0.0
    %2857 = vmatprep.subr.mxu0 0.0
    %2858 = vmatpush1.msra.mxu0 0.0
    %2859 = vmatprep.subr.mxu0 0.0
    %2860 = vmatpush1.msra.mxu0 0.0
    %2861 = vmatprep.subr.mxu0 0.0
    %2862 = vmatpush1.msra.mxu0 0.0
    %2863 = vmatprep.mubr.f32.mxu0 0.0
    %2864 = vmatmul.mubr.f32.gmra.mrb[0].mxu0 %v2797
    %v2865 = vpop.f32.mrb[0].mxu0
    %v2866 = vadd.f32 0.0, %v2865
    %v2867 = vpop.f32.mrb[0].mxu0
    %2868 = vdwg.mxu0
    %v2869 = vadd.f32 %v2794, %v2866
    %v2870 = vadd.f32 %v2869, %v564
    %v2871 = vxor.u32 %v2870, 2147483648
    %v2872 = vmul.f32 %v2871, 1.442695
    %v2873 = vpow.pop %v2872
    %v2874 = vadd.f32 %v2873, 1.0
    %v2875 = vrcp.pop %v2874
    %v2876 = vmul.f32 1.0, %v2875
    %v2877 = vadd.f32 %v2794, %v957
    %v2878 = vadd.f32 %v2866, %v962
    %2880 = vrot.lane.b32.xlu0 %v2878, 64
    %v2881 = vpop.permute.xlu0 %2880
    %v2883 = vmul.f32 %v2876, %v2881
    %2885 = vrot.lane.b32.xlu0 %v2883, 64
    %v2886 = vpop.permute.xlu0 %2885
    %v2888 = vadd.f32 %v2877, %v2886
    %v2889 = vtanh.pop %v2888
    %v2890 = vsub.f32 1.0, %v2876
    %2892 = vrot.lane.b32.xlu0 %v2889, 96
    %v2893 = vpop.permute.xlu0 %2892
    %v2895 = vmul.f32 %v2890, %v2893
    %v2896 = vmul.f32 %v2876, %v2715
    %v2897 = vadd.f32 %v2895, %v2896
    %2899 = vrot.lane.b32.xlu0 %v2897, 96
    %v2900 = vpop.permute.xlu0 %2899
    %2902 = vst.msk [vmem:[#allocation2 + $0xe] sm:$0x3] %vm991, %v2900
    %v2903 = vld [vmem:[#allocation2] sm:$0xff]
    %v2904 = vld [vmem:[#allocation2 + $0x8] sm:$0xff]
    %v2905 = vld [vmem:[#allocation11] sm:$0xff]
    %v2906 = vld [vmem:[#allocation11 + $0x8] sm:$0xff]
    %v2907 = vld [vmem:[#allocation11 + $0x10] sm:$0xff]
    %v2908 = vld [vmem:[#allocation11 + $0x18] sm:$0xff]
    %v2909 = vld [vmem:[#allocation11 + $0x20] sm:$0xff]
    %v2910 = vld [vmem:[#allocation11 + $0x28] sm:$0xff]
    %v2911 = vld [vmem:[#allocation11 + $0x30] sm:$0xff]
    %v2912 = vld [vmem:[#allocation11 + $0x38] sm:$0xff]
    %v2914 = vsel %vm466, %v2903, 0
    %v2917 = vsel %vm466, %v2904, 0
    %2919 = vmatprep.subr.mxu0 %v2906
    %2920 = vmatpush1.msra.mxu0 %v2905
    %2921 = vmatprep.subr.mxu0 %v2908
    %2922 = vmatpush1.msra.mxu0 %v2907
    %2923 = vmatprep.subr.mxu0 %v2910
    %2924 = vmatpush1.msra.mxu0 %v2909
    %2925 = vmatprep.subr.mxu0 %v2912
    %2926 = vmatpush1.msra.mxu0 %v2911
    %2927 = vmatprep.subr.mxu0 0.0
    %2928 = vmatpush1.msra.mxu0 0.0
    %2929 = vmatprep.subr.mxu0 0.0
    %2930 = vmatpush1.msra.mxu0 0.0
    %2931 = vmatprep.subr.mxu0 0.0
    %2932 = vmatpush1.msra.mxu0 0.0
    %2933 = vmatprep.subr.mxu0 0.0
    %2934 = vmatpush1.msra.mxu0 0.0
    %2935 = vmatprep.subr.mxu0 0.0
    %2936 = vmatpush1.msra.mxu0 0.0
    %2937 = vmatprep.subr.mxu0 0.0
    %2938 = vmatpush1.msra.mxu0 0.0
    %2939 = vmatprep.subr.mxu0 0.0
    %2940 = vmatpush1.msra.mxu0 0.0
    %2941 = vmatprep.subr.mxu0 0.0
    %2942 = vmatpush1.msra.mxu0 0.0
    %2943 = vmatprep.subr.mxu0 0.0
    %2944 = vmatpush1.msra.mxu0 0.0
    %2945 = vmatprep.subr.mxu0 0.0
    %2946 = vmatpush1.msra.mxu0 0.0
    %2947 = vmatprep.subr.mxu0 0.0
    %2948 = vmatpush1.msra.mxu0 0.0
    %2949 = vmatprep.subr.mxu0 0.0
    %2950 = vmatpush1.msra.mxu0 0.0
    %2951 = vmatprep.subr.mxu0 0.0
    %2952 = vmatpush1.msra.mxu0 0.0
    %2953 = vmatprep.subr.mxu0 0.0
    %2954 = vmatpush1.msra.mxu0 0.0
    %2955 = vmatprep.subr.mxu0 0.0
    %2956 = vmatpush1.msra.mxu0 0.0
    %2957 = vmatprep.subr.mxu0 0.0
    %2958 = vmatpush1.msra.mxu0 0.0
    %2959 = vmatprep.subr.mxu0 0.0
    %2960 = vmatpush1.msra.mxu0 0.0
    %2961 = vmatprep.subr.mxu0 0.0
    %2962 = vmatpush1.msra.mxu0 0.0
    %2963 = vmatprep.subr.mxu0 0.0
    %2964 = vmatpush1.msra.mxu0 0.0
    %2965 = vmatprep.subr.mxu0 0.0
    %2966 = vmatpush1.msra.mxu0 0.0
    %2967 = vmatprep.subr.mxu0 0.0
    %2968 = vmatpush1.msra.mxu0 0.0
    %2969 = vmatprep.subr.mxu0 0.0
    %2970 = vmatpush1.msra.mxu0 0.0
    %2971 = vmatprep.subr.mxu0 0.0
    %2972 = vmatpush1.msra.mxu0 0.0
    %2973 = vmatprep.subr.mxu0 0.0
    %2974 = vmatpush1.msra.mxu0 0.0
    %2975 = vmatprep.subr.mxu0 0.0
    %2976 = vmatpush1.msra.mxu0 0.0
    %2977 = vmatprep.subr.mxu0 0.0
    %2978 = vmatpush1.msra.mxu0 0.0
    %2979 = vmatprep.subr.mxu0 0.0
    %2980 = vmatpush1.msra.mxu0 0.0
    %2981 = vmatprep.subr.mxu0 0.0
    %2982 = vmatpush1.msra.mxu0 0.0
    %2983 = vmatprep.mubr.f32.mxu0 0.0
    %2984 = vmatmul.mubr.f32.gmra.mrb[0].mxu0 %v2914
    %v2985 = vpop.f32.mrb[0].mxu0
    %v2986 = vadd.f32 0.0, %v2985
    %v2987 = vpop.f32.mrb[0].mxu0
    %v2988 = vadd.f32 0.0, %v2987
    %2989 = vmatprep.mubr.f32.mxu0 0.0
    %2990 = vmatmul.mubr.f32.gmra.mrb[0].mxu0 %v2917
    %v2991 = vpop.f32.mrb[0].mxu0
    %v2992 = vadd.f32 0.0, %v2991
    %v2993 = vpop.f32.mrb[0].mxu0
    %v2994 = vadd.f32 0.0, %v2993
    %2995 = vdwg.mxu0
    %v2997 = vrot.slane %v2988, 2
    %v2999 = vmax.f32 %v2988, %v2997
    %v3000 = vrot.slane %v2988, 4
    %v3002 = vmax.f32 %v2999, %v3000
    %v3003 = vrot.slane %v2988, 6
    %v3005 = vmax.f32 %v3002, %v3003
    %v3006 = vmax.f32 %v3005, %v2994
    %v3008 = vrot.slane %v2994, 2
    %v3010 = vmax.f32 %v3006, %v3008
    %v3011 = vrot.slane %v2994, 4
    %v3013 = vmax.f32 %v3010, %v3011
    %v3014 = vrot.slane %v2994, 6
    %v3016 = vmax.f32 %v3013, %v3014
    %v3018 = vrot.slane %v2992, 6
    %3019 = vrot.lane.b32.xlu0 %v3018, 96
    %v3020 = vpop.permute.xlu0 %3019
    %v3022 = vadd.f32 %v2986, %v3020
    %3023 = vrot.lane.b32.xlu0 %v2992, 96
    %v3024 = vpop.permute.xlu0 %3023
    %v3026 = vadd.f32 %v2986, %v3024
    %3028 = vrot.lane.b32.xlu0 %v3026, 64
    %v3029 = vpop.permute.xlu0 %3028
    %v3031 = vadd.f32 %v3022, %v3029
    %3032 = vrot.lane.b32.xlu0 %v3000, 96
    %v3033 = vpop.permute.xlu0 %3032
    %v3035 = vadd.f32 %v2988, %v3033
    %3036 = vrot.lane.b32.xlu0 %v3011, 96
    %v3037 = vpop.permute.xlu0 %3036
    %v3039 = vadd.f32 %v2988, %v3037
    %v3041 = vrot.slane %v3039, 4
    %v3043 = vmax.f32 %v3035, %v3041
    %v3044 = vadd.f32 %v2994, %v3037
    %v3045 = vmax.f32 %v3043, %v3044
    %v3046 = vadd.f32 %v3031, %v3045
    %3048 = vrot.lane.b32.xlu0 %v3016, 64
    %v3049 = vpop.permute.xlu0 %3048
    %v3051 = vadd.f32 %v3046, %v3049
    %v3052 = vld [vmem:[%s10] sm:$0x1]
    %v3054 = vlaneseq
    %v3055 = vshrl.u32 %v3054, 7
    %v3056 = vsub.s32 0, %v3055
    %v3057 = vrot.slane %v3052, %v3056
    %v3059 = vadd.f32 %v3051, %v3057
    %3060 = vst.msk [vmem:[#allocation12] sm:$0x3] %vm991, %v3059
    // Predicated region
    $region66: #{tpu_custom_call.1} parent=1 // pred_check
      _
    $region67: #{tpu_custom_call.1} parent=1 // pred_check_branch
      %3062 = sbr.rel (0) target = $region69
    $region68: #{tpu_custom_call.1} parent=1 // pred_region
      %s3064 = ssub.s32 32, 32
      %3065 = vsyncadd [#allocation5], %s3064
      %s3067 = sshll.u32 [#allocation12], 4
      %s3068 = int_to_ptr.vmem [resolvable:$true] %s3067
      %3070 = dma.vmem_to_hbm [thread:$0]  %s3068, 32, %s11, [#allocation5]
    $region69: #{tpu_custom_call.1} parent=1 // pred_fallthru
      _
    // Predicated region
    $region70: #{tpu_custom_call.1} parent=1 // pred_check
      _
    $region71: #{tpu_custom_call.1} parent=1 // pred_check_branch
      %3072 = sbr.rel (0) target = $region73
    $region72: #{tpu_custom_call.1} parent=1 // pred_region
      %3073 = dma.done [#allocation5], 32
    $region73: #{tpu_custom_call.1} parent=1 // pred_fallthru
      _
    %3074 = vsyncpa [#allocation4], 1
    %3075 = vsyncpa [#allocation7], 1
    %3076 = vsyncpa [#allocation10], 1
    %3077 = vsyncpa [#allocation5], 1

</llo_original>
